<compile_context>
chip_gen: v5e
topology: v5e:2x2
jax: 0.10.0
libtpu: 0.0.40
codegen_flags: <defaults>
</compile_context>

<pallas_src>
import jax
import jax.numpy as jnp
from jax import lax
from jax.experimental import pallas as pl
from jax.experimental.pallas import tpu as pltpu

VMEM = pltpu.MemorySpace.VMEM


# ----------------------------------------------------------------------------
# Fused per-level kernel: bidirectional GRU (packed-sequence masking) +
# attention pooling (Linear -> BatchNorm1d(time) -> ReLU -> context score ->
# softmax -> weighted sum) and, optionally, the final FC classifier.
# ----------------------------------------------------------------------------
def make_level_kernel(n_rows, n_pad, T, H, C, num_class=None, eps=1e-5):
    D = 2 * H  # fwd hidden in lanes [0:H], bwd hidden in lanes [H:2H]

    def kernel(x_ref, lens_ref, wi_ref, wh_ref, bi_ref, bh_ref,
               wp_ref, bp_ref, gamma_ref, beta_ref, ctx_ref, *rest):
        if num_class is None:
            (out_ref,) = rest
            fc_w_ref = fc_b_ref = None
        else:
            fc_w_ref, fc_b_ref, out_ref = rest

        x = x_ref[...]        # [T*n_pad, E] bf16, time-major rows (t*n_pad + n)
        lens = lens_ref[...]  # [n_pad, 1] int32 (0 on padded rows)
        bi = bi_ref[...]      # [3, D] f32
        bh = bh_ref[...]      # [3, D] f32

        # lane mask: first H lanes carry the forward direction, last H backward
        lane = lax.broadcasted_iota(jnp.int32, (1, D), 1)
        fwd_f = (lane < H).astype(jnp.float32)   # [1, D]
        bwd_f = 1.0 - fwd_f

        # ---- hoisted input projection: ONE matmul per gate (both directions)
        def in_proj(g):
            return (jnp.dot(x, wi_ref[g], preferred_element_type=jnp.float32)
                    + bi[g:g + 1, :])            # [T*n_pad, D] f32
        gi_r, gi_z, gi_n = in_proj(0), in_proj(1), in_proj(2)

        wh_r, wh_z, wh_n = wh_ref[0], wh_ref[1], wh_ref[2]   # [D, D] block-diag
        bh_r, bh_z, bh_n = bh[0:1, :], bh[1:2, :], bh[2:3, :]

        def rows(a, t):                          # tile-aligned row block @ t
            return a[t * n_pad:(t + 1) * n_pad, :]

        # ---- fused bidirectional GRU recurrence -----------------------------
        # forward walks t = 0..T-1 (lanes 0:H); backward walks t = T-1..0
        # (lanes H:2H).  Packed-sequence semantics: freeze h and zero outputs
        # past each row's length.
        h = jnp.zeros((n_pad, D), jnp.float32)
        steps = []
        # T is small & static -> fully unrolled recurrence.
        # For realistic seq_len (50-100) this should become a lax.fori_loop
        # writing into a VMEM scratch; likewise, at scaled batch sizes a grid
        # over row-blocks with dimension_semantics=("parallel",) should be
        # added (whole-array VMEM blocks are fine only at these toy sizes).
        for it in range(T):
            rit = T - 1 - it
            g_r = fwd_f * rows(gi_r, it) + bwd_f * rows(gi_r, rit)
            g_z = fwd_f * rows(gi_z, it) + bwd_f * rows(gi_z, rit)
            g_n = fwd_f * rows(gi_n, it) + bwd_f * rows(gi_n, rit)
            hb = h.astype(jnp.bfloat16)
            a_r = jnp.dot(hb, wh_r, preferred_element_type=jnp.float32) + bh_r
            a_z = jnp.dot(hb, wh_z, preferred_element_type=jnp.float32) + bh_z
            a_n = jnp.dot(hb, wh_n, preferred_element_type=jnp.float32) + bh_n
            r = jax.nn.sigmoid(g_r + a_r)
            z = jax.nn.sigmoid(g_z + a_z)
            n = jnp.tanh(g_n + r * a_n)
            h_new = (1.0 - z) * n + z * h
            vf = (lens > it).astype(jnp.float32)             # [n_pad, 1]
            vb = (lens > rit).astype(jnp.float32)
            valid = fwd_f * vf + bwd_f * vb                  # [n_pad, D]
            h = valid * h_new + (1.0 - valid) * h
            steps.append(valid * h_new)

        # re-align the backward half in time; keep everything in registers/VMEM
        o_ts = [fwd_f * steps[t] + bwd_f * steps[T - 1 - t] for t in range(T)]
        o = jnp.concatenate(o_ts, axis=0)                    # [T*n_pad, D] f32

        # ---- attention pooling ----------------------------------------------
        wp = wp_ref[...]          # [D, C] bf16
        bp = bp_ref[...]          # [1, C] f32
        gamma = gamma_ref[...]    # [1, T] f32 (BN affine weight per time step)
        beta = beta_ref[...]      # [1, T] f32
        ctx = ctx_ref[...]        # [1, C] f32

        # single projection matmul over all rows and time steps
        proj = (jnp.dot(o.astype(jnp.bfloat16), wp,
                        preferred_element_type=jnp.float32) + bp)  # [T*n_pad,C]

        # training-mode BatchNorm1d(num_features=T): per time step, biased
        # stats over (batch, context).  Padded rows are masked out of stats.
        row = lax.broadcasted_iota(jnp.int32, (n_pad, 1), 0)
        rmask = (row < n_rows).astype(jnp.float32)           # [n_pad, 1]
        cnt = float(n_rows * C)

        logit_cols = []
        for t in range(T):
            blk = rows(proj, t)                              # [n_pad, C]
            mu = jnp.sum(blk * rmask, keepdims=True) / cnt   # [1, 1]
            dev = (blk - mu) * rmask
            var = jnp.sum(dev * dev, keepdims=True) / cnt
            xh = (blk - mu) * lax.rsqrt(var + eps)
            xh = xh * gamma[:, t:t + 1] + beta[:, t:t + 1]
            act = jnp.maximum(xh, 0.0)
            # context score: sum_c act[:, c] * ctx[c]  -> [n_pad, 1]
            logit_cols.append(jnp.sum(act * ctx, axis=1, keepdims=True))
        logits = jnp.concatenate(logit_cols, axis=1)         # [n_pad, T]

        m = jnp.max(logits, axis=1, keepdims=True)
        ex = jnp.exp(logits - m)
        att = ex / jnp.sum(ex, axis=1, keepdims=True)        # [n_pad, T]

        pooled = jnp.zeros((n_pad, D), jnp.float32)
        for t in range(T):
            pooled = pooled + att[:, t:t + 1] * o_ts[t]      # [n_pad, D]

        if num_class is None:
            out_ref[...] = pooled                            # one dense store
        else:
            out_ref[...] = (jnp.dot(pooled.astype(jnp.bfloat16), fc_w_ref[...],
                                    preferred_element_type=jnp.float32)
                            + fc_b_ref[...])

    return kernel


# ----------------------------------------------------------------------------
# Parameter packing: per-gate input weights (fwd|bwd lane-concatenated) and
# per-gate block-diagonal hidden weights so both directions share one matmul.
# ----------------------------------------------------------------------------
def _pack_bigru(params_f, params_b, H):
    wih_f, whh_f, bih_f, bhh_f = params_f
    wih_b, whh_b, bih_b, bhh_b = params_b

    def gate_t(w, g):                      # [3H, X] -> [X, H] (gate g)
        return w[g * H:(g + 1) * H, :].T

    def block_diag(a, b):
        za = jnp.zeros((a.shape[0], b.shape[1]), a.dtype)
        zb = jnp.zeros((b.shape[0], a.shape[1]), b.dtype)
        return jnp.concatenate(
            [jnp.concatenate([a, za], axis=1),
             jnp.concatenate([zb, b], axis=1)], axis=0)

    wi = jnp.stack([jnp.concatenate([gate_t(wih_f, g), gate_t(wih_b, g)], axis=1)
                    for g in range(3)]).astype(jnp.bfloat16)       # [3, E, 2H]
    wh = jnp.stack([block_diag(gate_t(whh_f, g), gate_t(whh_b, g))
                    for g in range(3)]).astype(jnp.bfloat16)       # [3, 2H, 2H]
    bi = jnp.stack([jnp.concatenate([bih_f[g * H:(g + 1) * H],
                                     bih_b[g * H:(g + 1) * H]])
                    for g in range(3)]).astype(jnp.float32)        # [3, 2H]
    bh = jnp.stack([jnp.concatenate([bhh_f[g * H:(g + 1) * H],
                                     bhh_b[g * H:(g + 1) * H]])
                    for g in range(3)]).astype(jnp.float32)        # [3, 2H]
    return wi, wh, bi, bh


def level_forward(x_nte, lens, gru_f, gru_b, proj_w, proj_b, bn_g, bn_b, ctx,
                  fc_w=None, fc_b=None):
    """One HAN level: bi-GRU + attention pooling (+ optional FC), fused."""
    N, T, E = x_nte.shape
    H = gru_f[1].shape[1]
    D = 2 * H
    C = proj_w.shape[0]
    n_pad = (N + 7) // 8 * 8                    # tile-aligned row count

    # time-major, row-padded layout: row = t * n_pad + n  (done in XLA, cheap)
    x_tm = jnp.transpose(x_nte, (1, 0, 2))                   # [T, N, E]
    x_tm = jnp.pad(x_tm, ((0, 0), (0, n_pad - N), (0, 0)))
    x_flat = x_tm.reshape(T * n_pad, E).astype(jnp.bfloat16)

    lens_pad = jnp.pad(lens.astype(jnp.int32), (0, n_pad - N)).reshape(n_pad, 1)

    wi, wh, bi, bh = _pack_bigru(gru_f, gru_b, H)
    wp = proj_w.T.astype(jnp.bfloat16)                       # [D, C]
    bp = proj_b.reshape(1, C).astype(jnp.float32)
    gamma = bn_g.reshape(1, T).astype(jnp.float32)
    beta = bn_b.reshape(1, T).astype(jnp.float32)
    ctx_row = ctx.reshape(1, C).astype(jnp.float32)

    args = [x_flat, lens_pad, wi, wh, bi, bh, wp, bp, gamma, beta, ctx_row]
    if fc_w is None:
        num_class = None
        out_shape = jax.ShapeDtypeStruct((n_pad, D), jnp.float32)
    else:
        num_class = fc_w.shape[0]
        args += [fc_w.T.astype(jnp.bfloat16),
                 fc_b.reshape(1, -1).astype(jnp.float32)]
        out_shape = jax.ShapeDtypeStruct((n_pad, num_class), jnp.float32)

    kern = make_level_kernel(N, n_pad, T, H, C, num_class)
    out = pl.pallas_call(
        kern,
        out_shape=out_shape,
        in_specs=[pl.BlockSpec(memory_space=VMEM)] * len(args),
        out_specs=pl.BlockSpec(memory_space=VMEM),
    )(*args)
    return out[:N]


# ----------------------------------------------------------------------------
# Glue: length computation (HAN.get_sequence_lens / get_num_sentences_lens),
# embedding lookup, parameter setup.
# ----------------------------------------------------------------------------
def get_sequence_lens(x_flat):
    L = x_flat.shape[1]
    idx = jnp.arange(1, L + 1)
    last = jnp.max(jnp.where(x_flat != 0, idx, 0), axis=1)
    return jnp.where(last == 0, 1, last).astype(jnp.int32)


def get_num_sentences_lens(x):
    S = x.shape[1]
    nonpad = jnp.any(x != 0, axis=2)
    idx = jnp.arange(1, S + 1)
    return jnp.max(jnp.where(nonpad, idx, 0), axis=1).astype(jnp.int32)


def init_params(key, cfg):
    def u(k, shape):
        return jax.random.uniform(k, shape, jnp.float32, -0.1, 0.1)

    ks = iter(jax.random.split(key, 32))
    E = cfg["embedding_size"]
    Hw, Hs = cfg["word_hidden_size"], cfg["sentence_hidden_size"]
    Cw, Cs = cfg["word_context_size"], cfg["sentence_context_size"]

    def gru_params(k, in_size, H):
        k1, k2, k3, k4 = jax.random.split(k, 4)
        return (u(k1, (3 * H, in_size)), u(k2, (3 * H, H)),
                u(k3, (3 * H,)), u(k4, (3 * H,)))

    return {
        "emb": jax.random.normal(next(ks), (cfg["vocab_size"], E), jnp.float32),
        "word_gru_f": gru_params(next(ks), E, Hw),
        "word_gru_b": gru_params(next(ks), E, Hw),
        "word_proj_w": u(next(ks), (Cw, 2 * Hw)),
        "word_proj_b": u(next(ks), (Cw,)),
        "word_bn_g": jnp.ones((cfg["sequence_length"],), jnp.float32),
        "word_bn_b": jnp.zeros((cfg["sequence_length"],), jnp.float32),
        "word_ctx": u(next(ks), (Cw, 1)),
        "sent_gru_f": gru_params(next(ks), 2 * Hw, Hs),
        "sent_gru_b": gru_params(next(ks), 2 * Hw, Hs),
        "sent_proj_w": u(next(ks), (Cs, 2 * Hs)),
        "sent_proj_b": u(next(ks), (Cs,)),
        "sent_bn_g": jnp.ones((cfg["num_sentences"],), jnp.float32),
        "sent_bn_b": jnp.zeros((cfg["num_sentences"],), jnp.float32),
        "sent_ctx": u(next(ks), (Cs, 1)),
        "fc_w": u(next(ks), (cfg["num_class"], 2 * Hs)),
        "fc_b": u(next(ks), (cfg["num_class"],)),
    }


def han_forward(params, x):
    B, S, L = x.shape
    x_flat = x.reshape(B * S, L)
    seq_lens = get_sequence_lens(x_flat)          # [B*S]
    sent_lens = get_num_sentences_lens(x)         # [B]

    # ---- word -> sentence (fused bi-GRU + attention, one pallas_call) ----
    emb = jnp.take(params["emb"], x_flat, axis=0)             # [B*S, L, E]
    sent_vec = level_forward(
        emb, seq_lens,
        params["word_gru_f"], params["word_gru_b"],
        params["word_proj_w"], params["word_proj_b"],
        params["word_bn_g"], params["word_bn_b"],
        params["word_ctx"])                                    # [B*S, 2Hw]
    sent_seq = sent_vec.reshape(B, S, -1)

    # ---- sentence -> document + classifier (second fused pallas_call) ----
    return level_forward(
        sent_seq, sent_lens,
        params["sent_gru_f"], params["sent_gru_b"],
        params["sent_proj_w"], params["sent_proj_b"],
        params["sent_bn_g"], params["sent_bn_b"],
        params["sent_ctx"],
        fc_w=params["fc_w"], fc_b=params["fc_b"])              # [B, num_class]


if __name__ == "__main__":
    cfg = dict(
        vocab_size=50, embedding_size=32,
        word_hidden_size=32, word_context_size=32,
        sentence_hidden_size=32, sentence_context_size=32,
        num_sentences=3, sequence_length=8, num_class=5,
    )
    batch = 2

    key = jax.random.PRNGKey(0)
    k_par, k_dat = jax.random.split(key)
    params = init_params(k_par, cfg)

    x = jax.random.randint(
        k_dat, (batch, cfg["num_sentences"], cfg["sequence_length"]),
        1, cfg["vocab_size"], dtype=jnp.int32)
    # introduce padding (trailing zeros) to exercise the packed-sequence
    # masking; the batch max lengths equal the padded lengths, as the
    # BatchNorm channel counts in the PyTorch module require.
    x = x.at[0, 2, :].set(0)     # fully padded sentence
    x = x.at[1, 1, 6:].set(0)    # partially padded sentence

    fwd = jax.jit(han_forward)
    out = jax.block_until_ready(fwd(params, x))
    assert out.shape == (batch, cfg["num_class"])
    assert bool(jnp.all(jnp.isfinite(out)))
    print("KERNEL_OK")
</pallas_src>

<mosaic_0001>
module attributes {stable_mosaic.version = 11 : i64} {
  func.func @kernel(%arg0: memref<64x32xbf16, #tpu.memory_space<vmem>>, %arg1: memref<8x1xi32, #tpu.memory_space<vmem>>, %arg2: memref<3x32x64xbf16, #tpu.memory_space<vmem>>, %arg3: memref<3x64x64xbf16, #tpu.memory_space<vmem>>, %arg4: memref<3x64xf32, #tpu.memory_space<vmem>>, %arg5: memref<3x64xf32, #tpu.memory_space<vmem>>, %arg6: memref<64x32xbf16, #tpu.memory_space<vmem>>, %arg7: memref<1x32xf32, #tpu.memory_space<vmem>>, %arg8: memref<1x8xf32, #tpu.memory_space<vmem>>, %arg9: memref<1x8xf32, #tpu.memory_space<vmem>>, %arg10: memref<1x32xf32, #tpu.memory_space<vmem>>, %arg11: memref<8x64xf32, #tpu.memory_space<vmem>>) attributes {dimension_semantics = [], scalar_prefetch = 0 : i64, scratch_operands = 0 : i64, tpu.core_type = #tpu.core_type<tc>} {
    %c0 = arith.constant 0 : index
    %c0_0 = arith.constant 0 : index
    %0 = vector.load %arg0[%c0, %c0_0] : memref<64x32xbf16, #tpu.memory_space<vmem>>, vector<64x32xbf16>
    %c0_1 = arith.constant 0 : index
    %c0_2 = arith.constant 0 : index
    %1 = vector.load %arg1[%c0_1, %c0_2] : memref<8x1xi32, #tpu.memory_space<vmem>>, vector<8x1xi32>
    %c0_3 = arith.constant 0 : index
    %c0_4 = arith.constant 0 : index
    %2 = vector.load %arg4[%c0_3, %c0_4] : memref<3x64xf32, #tpu.memory_space<vmem>>, vector<3x64xf32>
    %c0_5 = arith.constant 0 : index
    %c0_6 = arith.constant 0 : index
    %3 = vector.load %arg5[%c0_5, %c0_6] : memref<3x64xf32, #tpu.memory_space<vmem>>, vector<3x64xf32>
    %4 = tpu.iota {dimensions = array<i32: 1>} : vector<1x64xi32>
    %c32_i32 = arith.constant 32 : i32
    %5 = vector.broadcast %c32_i32 : i32 to vector<1x64xi32>
    %6 = arith.cmpi slt, %4, %5 : vector<1x64xi32>
    %7 = arith.extui %6 : vector<1x64xi1> to vector<1x64xi32>
    %8 = arith.sitofp %7 : vector<1x64xi32> to vector<1x64xf32>
    %cst = arith.constant 1.000000e+00 : f32
    %9 = vector.broadcast %cst : f32 to vector<1x64xf32>
    %10 = arith.subf %9, %8 : vector<1x64xf32>
    %c0_7 = arith.constant 0 : index
    %c0_8 = arith.constant 0 : index
    %c0_9 = arith.constant 0 : index
    %11 = vector.load %arg2[%c0_7, %c0_8, %c0_9] : memref<3x32x64xbf16, #tpu.memory_space<vmem>>, vector<1x32x64xbf16>
    %12 = vector.shape_cast %11 : vector<1x32x64xbf16> to vector<32x64xbf16>
    %cst_10 = arith.constant dense<0.000000e+00> : vector<64x64xf32>
    %13 = tpu.matmul %0, %12, %cst_10 {dimension_numbers = #tpu.dot_dimension_numbers<[1], [0], [0], [1], [0, 0, 1, 1], [], []>} : vector<64x32xbf16>, vector<32x64xbf16>, vector<64x64xf32> -> vector<64x64xf32>
    %14 = vector.extract_strided_slice %2 {offsets = [0, 0], sizes = [1, 64], strides = [1, 1]} : vector<3x64xf32> to vector<1x64xf32>
    %15 = vector.broadcast %14 : vector<1x64xf32> to vector<64x64xf32>
    %16 = arith.addf %13, %15 : vector<64x64xf32>
    %c1 = arith.constant 1 : index
    %c0_11 = arith.constant 0 : index
    %c0_12 = arith.constant 0 : index
    %17 = vector.load %arg2[%c1, %c0_11, %c0_12] : memref<3x32x64xbf16, #tpu.memory_space<vmem>>, vector<1x32x64xbf16>
    %18 = vector.shape_cast %17 : vector<1x32x64xbf16> to vector<32x64xbf16>
    %cst_13 = arith.constant dense<0.000000e+00> : vector<64x64xf32>
    %19 = tpu.matmul %0, %18, %cst_13 {dimension_numbers = #tpu.dot_dimension_numbers<[1], [0], [0], [1], [0, 0, 1, 1], [], []>} : vector<64x32xbf16>, vector<32x64xbf16>, vector<64x64xf32> -> vector<64x64xf32>
    %20 = vector.extract_strided_slice %2 {offsets = [1, 0], sizes = [1, 64], strides = [1, 1]} : vector<3x64xf32> to vector<1x64xf32>
    %21 = vector.broadcast %20 : vector<1x64xf32> to vector<64x64xf32>
    %22 = arith.addf %19, %21 : vector<64x64xf32>
    %c2 = arith.constant 2 : index
    %c0_14 = arith.constant 0 : index
    %c0_15 = arith.constant 0 : index
    %23 = vector.load %arg2[%c2, %c0_14, %c0_15] : memref<3x32x64xbf16, #tpu.memory_space<vmem>>, vector<1x32x64xbf16>
    %24 = vector.shape_cast %23 : vector<1x32x64xbf16> to vector<32x64xbf16>
    %cst_16 = arith.constant dense<0.000000e+00> : vector<64x64xf32>
    %25 = tpu.matmul %0, %24, %cst_16 {dimension_numbers = #tpu.dot_dimension_numbers<[1], [0], [0], [1], [0, 0, 1, 1], [], []>} : vector<64x32xbf16>, vector<32x64xbf16>, vector<64x64xf32> -> vector<64x64xf32>
    %26 = vector.extract_strided_slice %2 {offsets = [2, 0], sizes = [1, 64], strides = [1, 1]} : vector<3x64xf32> to vector<1x64xf32>
    %27 = vector.broadcast %26 : vector<1x64xf32> to vector<64x64xf32>
    %28 = arith.addf %25, %27 : vector<64x64xf32>
    %c0_17 = arith.constant 0 : index
    %c0_18 = arith.constant 0 : index
    %c0_19 = arith.constant 0 : index
    %29 = vector.load %arg3[%c0_17, %c0_18, %c0_19] : memref<3x64x64xbf16, #tpu.memory_space<vmem>>, vector<1x64x64xbf16>
    %30 = vector.shape_cast %29 : vector<1x64x64xbf16> to vector<64x64xbf16>
    %c1_20 = arith.constant 1 : index
    %c0_21 = arith.constant 0 : index
    %c0_22 = arith.constant 0 : index
    %31 = vector.load %arg3[%c1_20, %c0_21, %c0_22] : memref<3x64x64xbf16, #tpu.memory_space<vmem>>, vector<1x64x64xbf16>
    %32 = vector.shape_cast %31 : vector<1x64x64xbf16> to vector<64x64xbf16>
    %c2_23 = arith.constant 2 : index
    %c0_24 = arith.constant 0 : index
    %c0_25 = arith.constant 0 : index
    %33 = vector.load %arg3[%c2_23, %c0_24, %c0_25] : memref<3x64x64xbf16, #tpu.memory_space<vmem>>, vector<1x64x64xbf16>
    %34 = vector.shape_cast %33 : vector<1x64x64xbf16> to vector<64x64xbf16>
    %35 = vector.extract_strided_slice %3 {offsets = [0, 0], sizes = [1, 64], strides = [1, 1]} : vector<3x64xf32> to vector<1x64xf32>
    %36 = vector.extract_strided_slice %3 {offsets = [1, 0], sizes = [1, 64], strides = [1, 1]} : vector<3x64xf32> to vector<1x64xf32>
    %37 = vector.extract_strided_slice %3 {offsets = [2, 0], sizes = [1, 64], strides = [1, 1]} : vector<3x64xf32> to vector<1x64xf32>
    %cst_26 = arith.constant 0.000000e+00 : f32
    %38 = vector.broadcast %cst_26 : f32 to vector<8x64xf32>
    %39 = vector.extract_strided_slice %16 {offsets = [0, 0], sizes = [8, 64], strides = [1, 1]} : vector<64x64xf32> to vector<8x64xf32>
    %40 = vector.broadcast %8 : vector<1x64xf32> to vector<8x64xf32>
    %41 = arith.mulf %40, %39 : vector<8x64xf32>
    %42 = vector.extract_strided_slice %16 {offsets = [56, 0], sizes = [8, 64], strides = [1, 1]} : vector<64x64xf32> to vector<8x64xf32>
    %43 = vector.broadcast %10 : vector<1x64xf32> to vector<8x64xf32>
    %44 = arith.mulf %43, %42 : vector<8x64xf32>
    %45 = arith.addf %41, %44 : vector<8x64xf32>
    %46 = vector.extract_strided_slice %22 {offsets = [0, 0], sizes = [8, 64], strides = [1, 1]} : vector<64x64xf32> to vector<8x64xf32>
    %47 = vector.broadcast %8 : vector<1x64xf32> to vector<8x64xf32>
    %48 = arith.mulf %47, %46 : vector<8x64xf32>
    %49 = vector.extract_strided_slice %22 {offsets = [56, 0], sizes = [8, 64], strides = [1, 1]} : vector<64x64xf32> to vector<8x64xf32>
    %50 = vector.broadcast %10 : vector<1x64xf32> to vector<8x64xf32>
    %51 = arith.mulf %50, %49 : vector<8x64xf32>
    %52 = arith.addf %48, %51 : vector<8x64xf32>
    %53 = vector.extract_strided_slice %28 {offsets = [0, 0], sizes = [8, 64], strides = [1, 1]} : vector<64x64xf32> to vector<8x64xf32>
    %54 = vector.broadcast %8 : vector<1x64xf32> to vector<8x64xf32>
    %55 = arith.mulf %54, %53 : vector<8x64xf32>
    %56 = vector.extract_strided_slice %28 {offsets = [56, 0], sizes = [8, 64], strides = [1, 1]} : vector<64x64xf32> to vector<8x64xf32>
    %57 = vector.broadcast %10 : vector<1x64xf32> to vector<8x64xf32>
    %58 = arith.mulf %57, %56 : vector<8x64xf32>
    %59 = arith.addf %55, %58 : vector<8x64xf32>
    %60 = arith.truncf %38 : vector<8x64xf32> to vector<8x64xbf16>
    %cst_27 = arith.constant dense<0.000000e+00> : vector<8x64xf32>
    %61 = tpu.matmul %60, %30, %cst_27 {dimension_numbers = #tpu.dot_dimension_numbers<[1], [0], [0], [1], [0, 0, 1, 1], [], []>} : vector<8x64xbf16>, vector<64x64xbf16>, vector<8x64xf32> -> vector<8x64xf32>
    %62 = vector.broadcast %35 : vector<1x64xf32> to vector<8x64xf32>
    %63 = arith.addf %61, %62 : vector<8x64xf32>
    %cst_28 = arith.constant dense<0.000000e+00> : vector<8x64xf32>
    %64 = tpu.matmul %60, %32, %cst_28 {dimension_numbers = #tpu.dot_dimension_numbers<[1], [0], [0], [1], [0, 0, 1, 1], [], []>} : vector<8x64xbf16>, vector<64x64xbf16>, vector<8x64xf32> -> vector<8x64xf32>
    %65 = vector.broadcast %36 : vector<1x64xf32> to vector<8x64xf32>
    %66 = arith.addf %64, %65 : vector<8x64xf32>
    %cst_29 = arith.constant dense<0.000000e+00> : vector<8x64xf32>
    %67 = tpu.matmul %60, %34, %cst_29 {dimension_numbers = #tpu.dot_dimension_numbers<[1], [0], [0], [1], [0, 0, 1, 1], [], []>} : vector<8x64xbf16>, vector<64x64xbf16>, vector<8x64xf32> -> vector<8x64xf32>
    %68 = vector.broadcast %37 : vector<1x64xf32> to vector<8x64xf32>
    %69 = arith.addf %67, %68 : vector<8x64xf32>
    %70 = arith.addf %45, %63 : vector<8x64xf32>
    %71 = arith.negf %70 : vector<8x64xf32>
    %72 = math.exp %71 : vector<8x64xf32>
    %cst_30 = arith.constant 1.000000e+00 : f32
    %73 = vector.broadcast %cst_30 : f32 to vector<8x64xf32>
    %74 = arith.addf %73, %72 : vector<8x64xf32>
    %75 = arith.divf %73, %74 : vector<8x64xf32>
    %76 = arith.addf %52, %66 : vector<8x64xf32>
    %77 = arith.negf %76 : vector<8x64xf32>
    %78 = math.exp %77 : vector<8x64xf32>
    %cst_31 = arith.constant 1.000000e+00 : f32
    %79 = vector.broadcast %cst_31 : f32 to vector<8x64xf32>
    %80 = arith.addf %79, %78 : vector<8x64xf32>
    %81 = arith.divf %79, %80 : vector<8x64xf32>
    %82 = arith.mulf %75, %69 : vector<8x64xf32>
    %83 = arith.addf %59, %82 : vector<8x64xf32>
    %84 = math.tanh %83 : vector<8x64xf32>
    %cst_32 = arith.constant 1.000000e+00 : f32
    %85 = vector.broadcast %cst_32 : f32 to vector<8x64xf32>
    %86 = arith.subf %85, %81 : vector<8x64xf32>
    %87 = arith.mulf %86, %84 : vector<8x64xf32>
    %88 = arith.mulf %81, %38 : vector<8x64xf32>
    %89 = arith.addf %87, %88 : vector<8x64xf32>
    %c0_i32 = arith.constant 0 : i32
    %90 = vector.broadcast %c0_i32 : i32 to vector<8x1xi32>
    %91 = arith.cmpi sgt, %1, %90 : vector<8x1xi32>
    %92 = arith.extui %91 : vector<8x1xi1> to vector<8x1xi32>
    %93 = arith.sitofp %92 : vector<8x1xi32> to vector<8x1xf32>
    %c7_i32 = arith.constant 7 : i32
    %94 = vector.broadcast %c7_i32 : i32 to vector<8x1xi32>
    %95 = arith.cmpi sgt, %1, %94 : vector<8x1xi32>
    %96 = arith.extui %95 : vector<8x1xi1> to vector<8x1xi32>
    %97 = arith.sitofp %96 : vector<8x1xi32> to vector<8x1xf32>
    %98 = vector.broadcast %8 : vector<1x64xf32> to vector<8x64xf32>
    %99 = vector.broadcast %93 : vector<8x1xf32> to vector<8x64xf32>
    %100 = arith.mulf %98, %99 : vector<8x64xf32>
    %101 = vector.broadcast %10 : vector<1x64xf32> to vector<8x64xf32>
    %102 = vector.broadcast %97 : vector<8x1xf32> to vector<8x64xf32>
    %103 = arith.mulf %101, %102 : vector<8x64xf32>
    %104 = arith.addf %100, %103 : vector<8x64xf32>
    %105 = arith.mulf %104, %89 : vector<8x64xf32>
    %cst_33 = arith.constant 1.000000e+00 : f32
    %106 = vector.broadcast %cst_33 : f32 to vector<8x64xf32>
    %107 = arith.subf %106, %104 : vector<8x64xf32>
    %108 = arith.mulf %107, %38 : vector<8x64xf32>
    %109 = arith.addf %105, %108 : vector<8x64xf32>
    %110 = arith.mulf %104, %89 : vector<8x64xf32>
    %111 = vector.extract_strided_slice %16 {offsets = [8, 0], sizes = [8, 64], strides = [1, 1]} : vector<64x64xf32> to vector<8x64xf32>
    %112 = vector.broadcast %8 : vector<1x64xf32> to vector<8x64xf32>
    %113 = arith.mulf %112, %111 : vector<8x64xf32>
    %114 = vector.extract_strided_slice %16 {offsets = [48, 0], sizes = [8, 64], strides = [1, 1]} : vector<64x64xf32> to vector<8x64xf32>
    %115 = vector.broadcast %10 : vector<1x64xf32> to vector<8x64xf32>
    %116 = arith.mulf %115, %114 : vector<8x64xf32>
    %117 = arith.addf %113, %116 : vector<8x64xf32>
    %118 = vector.extract_strided_slice %22 {offsets = [8, 0], sizes = [8, 64], strides = [1, 1]} : vector<64x64xf32> to vector<8x64xf32>
    %119 = vector.broadcast %8 : vector<1x64xf32> to vector<8x64xf32>
    %120 = arith.mulf %119, %118 : vector<8x64xf32>
    %121 = vector.extract_strided_slice %22 {offsets = [48, 0], sizes = [8, 64], strides = [1, 1]} : vector<64x64xf32> to vector<8x64xf32>
    %122 = vector.broadcast %10 : vector<1x64xf32> to vector<8x64xf32>
    %123 = arith.mulf %122, %121 : vector<8x64xf32>
    %124 = arith.addf %120, %123 : vector<8x64xf32>
    %125 = vector.extract_strided_slice %28 {offsets = [8, 0], sizes = [8, 64], strides = [1, 1]} : vector<64x64xf32> to vector<8x64xf32>
    %126 = vector.broadcast %8 : vector<1x64xf32> to vector<8x64xf32>
    %127 = arith.mulf %126, %125 : vector<8x64xf32>
    %128 = vector.extract_strided_slice %28 {offsets = [48, 0], sizes = [8, 64], strides = [1, 1]} : vector<64x64xf32> to vector<8x64xf32>
    %129 = vector.broadcast %10 : vector<1x64xf32> to vector<8x64xf32>
    %130 = arith.mulf %129, %128 : vector<8x64xf32>
    %131 = arith.addf %127, %130 : vector<8x64xf32>
    %132 = arith.truncf %109 : vector<8x64xf32> to vector<8x64xbf16>
    %cst_34 = arith.constant dense<0.000000e+00> : vector<8x64xf32>
    %133 = tpu.matmul %132, %30, %cst_34 {dimension_numbers = #tpu.dot_dimension_numbers<[1], [0], [0], [1], [0, 0, 1, 1], [], []>} : vector<8x64xbf16>, vector<64x64xbf16>, vector<8x64xf32> -> vector<8x64xf32>
    %134 = vector.broadcast %35 : vector<1x64xf32> to vector<8x64xf32>
    %135 = arith.addf %133, %134 : vector<8x64xf32>
    %cst_35 = arith.constant dense<0.000000e+00> : vector<8x64xf32>
    %136 = tpu.matmul %132, %32, %cst_35 {dimension_numbers = #tpu.dot_dimension_numbers<[1], [0], [0], [1], [0, 0, 1, 1], [], []>} : vector<8x64xbf16>, vector<64x64xbf16>, vector<8x64xf32> -> vector<8x64xf32>
    %137 = vector.broadcast %36 : vector<1x64xf32> to vector<8x64xf32>
    %138 = arith.addf %136, %137 : vector<8x64xf32>
    %cst_36 = arith.constant dense<0.000000e+00> : vector<8x64xf32>
    %139 = tpu.matmul %132, %34, %cst_36 {dimension_numbers = #tpu.dot_dimension_numbers<[1], [0], [0], [1], [0, 0, 1, 1], [], []>} : vector<8x64xbf16>, vector<64x64xbf16>, vector<8x64xf32> -> vector<8x64xf32>
    %140 = vector.broadcast %37 : vector<1x64xf32> to vector<8x64xf32>
    %141 = arith.addf %139, %140 : vector<8x64xf32>
    %142 = arith.addf %117, %135 : vector<8x64xf32>
    %143 = arith.negf %142 : vector<8x64xf32>
    %144 = math.exp %143 : vector<8x64xf32>
    %cst_37 = arith.constant 1.000000e+00 : f32
    %145 = vector.broadcast %cst_37 : f32 to vector<8x64xf32>
    %146 = arith.addf %145, %144 : vector<8x64xf32>
    %147 = arith.divf %145, %146 : vector<8x64xf32>
    %148 = arith.addf %124, %138 : vector<8x64xf32>
    %149 = arith.negf %148 : vector<8x64xf32>
    %150 = math.exp %149 : vector<8x64xf32>
    %cst_38 = arith.constant 1.000000e+00 : f32
    %151 = vector.broadcast %cst_38 : f32 to vector<8x64xf32>
    %152 = arith.addf %151, %150 : vector<8x64xf32>
    %153 = arith.divf %151, %152 : vector<8x64xf32>
    %154 = arith.mulf %147, %141 : vector<8x64xf32>
    %155 = arith.addf %131, %154 : vector<8x64xf32>
    %156 = math.tanh %155 : vector<8x64xf32>
    %cst_39 = arith.constant 1.000000e+00 : f32
    %157 = vector.broadcast %cst_39 : f32 to vector<8x64xf32>
    %158 = arith.subf %157, %153 : vector<8x64xf32>
    %159 = arith.mulf %158, %156 : vector<8x64xf32>
    %160 = arith.mulf %153, %109 : vector<8x64xf32>
    %161 = arith.addf %159, %160 : vector<8x64xf32>
    %c1_i32 = arith.constant 1 : i32
    %162 = vector.broadcast %c1_i32 : i32 to vector<8x1xi32>
    %163 = arith.cmpi sgt, %1, %162 : vector<8x1xi32>
    %164 = arith.extui %163 : vector<8x1xi1> to vector<8x1xi32>
    %165 = arith.sitofp %164 : vector<8x1xi32> to vector<8x1xf32>
    %c6_i32 = arith.constant 6 : i32
    %166 = vector.broadcast %c6_i32 : i32 to vector<8x1xi32>
    %167 = arith.cmpi sgt, %1, %166 : vector<8x1xi32>
    %168 = arith.extui %167 : vector<8x1xi1> to vector<8x1xi32>
    %169 = arith.sitofp %168 : vector<8x1xi32> to vector<8x1xf32>
    %170 = vector.broadcast %8 : vector<1x64xf32> to vector<8x64xf32>
    %171 = vector.broadcast %165 : vector<8x1xf32> to vector<8x64xf32>
    %172 = arith.mulf %170, %171 : vector<8x64xf32>
    %173 = vector.broadcast %10 : vector<1x64xf32> to vector<8x64xf32>
    %174 = vector.broadcast %169 : vector<8x1xf32> to vector<8x64xf32>
    %175 = arith.mulf %173, %174 : vector<8x64xf32>
    %176 = arith.addf %172, %175 : vector<8x64xf32>
    %177 = arith.mulf %176, %161 : vector<8x64xf32>
    %cst_40 = arith.constant 1.000000e+00 : f32
    %178 = vector.broadcast %cst_40 : f32 to vector<8x64xf32>
    %179 = arith.subf %178, %176 : vector<8x64xf32>
    %180 = arith.mulf %179, %109 : vector<8x64xf32>
    %181 = arith.addf %177, %180 : vector<8x64xf32>
    %182 = arith.mulf %176, %161 : vector<8x64xf32>
    %183 = vector.extract_strided_slice %16 {offsets = [16, 0], sizes = [8, 64], strides = [1, 1]} : vector<64x64xf32> to vector<8x64xf32>
    %184 = vector.broadcast %8 : vector<1x64xf32> to vector<8x64xf32>
    %185 = arith.mulf %184, %183 : vector<8x64xf32>
    %186 = vector.extract_strided_slice %16 {offsets = [40, 0], sizes = [8, 64], strides = [1, 1]} : vector<64x64xf32> to vector<8x64xf32>
    %187 = vector.broadcast %10 : vector<1x64xf32> to vector<8x64xf32>
    %188 = arith.mulf %187, %186 : vector<8x64xf32>
    %189 = arith.addf %185, %188 : vector<8x64xf32>
    %190 = vector.extract_strided_slice %22 {offsets = [16, 0], sizes = [8, 64], strides = [1, 1]} : vector<64x64xf32> to vector<8x64xf32>
    %191 = vector.broadcast %8 : vector<1x64xf32> to vector<8x64xf32>
    %192 = arith.mulf %191, %190 : vector<8x64xf32>
    %193 = vector.extract_strided_slice %22 {offsets = [40, 0], sizes = [8, 64], strides = [1, 1]} : vector<64x64xf32> to vector<8x64xf32>
    %194 = vector.broadcast %10 : vector<1x64xf32> to vector<8x64xf32>
    %195 = arith.mulf %194, %193 : vector<8x64xf32>
    %196 = arith.addf %192, %195 : vector<8x64xf32>
    %197 = vector.extract_strided_slice %28 {offsets = [16, 0], sizes = [8, 64], strides = [1, 1]} : vector<64x64xf32> to vector<8x64xf32>
    %198 = vector.broadcast %8 : vector<1x64xf32> to vector<8x64xf32>
    %199 = arith.mulf %198, %197 : vector<8x64xf32>
    %200 = vector.extract_strided_slice %28 {offsets = [40, 0], sizes = [8, 64], strides = [1, 1]} : vector<64x64xf32> to vector<8x64xf32>
    %201 = vector.broadcast %10 : vector<1x64xf32> to vector<8x64xf32>
    %202 = arith.mulf %201, %200 : vector<8x64xf32>
    %203 = arith.addf %199, %202 : vector<8x64xf32>
    %204 = arith.truncf %181 : vector<8x64xf32> to vector<8x64xbf16>
    %cst_41 = arith.constant dense<0.000000e+00> : vector<8x64xf32>
    %205 = tpu.matmul %204, %30, %cst_41 {dimension_numbers = #tpu.dot_dimension_numbers<[1], [0], [0], [1], [0, 0, 1, 1], [], []>} : vector<8x64xbf16>, vector<64x64xbf16>, vector<8x64xf32> -> vector<8x64xf32>
    %206 = vector.broadcast %35 : vector<1x64xf32> to vector<8x64xf32>
    %207 = arith.addf %205, %206 : vector<8x64xf32>
    %cst_42 = arith.constant dense<0.000000e+00> : vector<8x64xf32>
    %208 = tpu.matmul %204, %32, %cst_42 {dimension_numbers = #tpu.dot_dimension_numbers<[1], [0], [0], [1], [0, 0, 1, 1], [], []>} : vector<8x64xbf16>, vector<64x64xbf16>, vector<8x64xf32> -> vector<8x64xf32>
    %209 = vector.broadcast %36 : vector<1x64xf32> to vector<8x64xf32>
    %210 = arith.addf %208, %209 : vector<8x64xf32>
    %cst_43 = arith.constant dense<0.000000e+00> : vector<8x64xf32>
    %211 = tpu.matmul %204, %34, %cst_43 {dimension_numbers = #tpu.dot_dimension_numbers<[1], [0], [0], [1], [0, 0, 1, 1], [], []>} : vector<8x64xbf16>, vector<64x64xbf16>, vector<8x64xf32> -> vector<8x64xf32>
    %212 = vector.broadcast %37 : vector<1x64xf32> to vector<8x64xf32>
    %213 = arith.addf %211, %212 : vector<8x64xf32>
    %214 = arith.addf %189, %207 : vector<8x64xf32>
    %215 = arith.negf %214 : vector<8x64xf32>
    %216 = math.exp %215 : vector<8x64xf32>
    %cst_44 = arith.constant 1.000000e+00 : f32
    %217 = vector.broadcast %cst_44 : f32 to vector<8x64xf32>
    %218 = arith.addf %217, %216 : vector<8x64xf32>
    %219 = arith.divf %217, %218 : vector<8x64xf32>
    %220 = arith.addf %196, %210 : vector<8x64xf32>
    %221 = arith.negf %220 : vector<8x64xf32>
    %222 = math.exp %221 : vector<8x64xf32>
    %cst_45 = arith.constant 1.000000e+00 : f32
    %223 = vector.broadcast %cst_45 : f32 to vector<8x64xf32>
    %224 = arith.addf %223, %222 : vector<8x64xf32>
    %225 = arith.divf %223, %224 : vector<8x64xf32>
    %226 = arith.mulf %219, %213 : vector<8x64xf32>
    %227 = arith.addf %203, %226 : vector<8x64xf32>
    %228 = math.tanh %227 : vector<8x64xf32>
    %cst_46 = arith.constant 1.000000e+00 : f32
    %229 = vector.broadcast %cst_46 : f32 to vector<8x64xf32>
    %230 = arith.subf %229, %225 : vector<8x64xf32>
    %231 = arith.mulf %230, %228 : vector<8x64xf32>
    %232 = arith.mulf %225, %181 : vector<8x64xf32>
    %233 = arith.addf %231, %232 : vector<8x64xf32>
    %c2_i32 = arith.constant 2 : i32
    %234 = vector.broadcast %c2_i32 : i32 to vector<8x1xi32>
    %235 = arith.cmpi sgt, %1, %234 : vector<8x1xi32>
    %236 = arith.extui %235 : vector<8x1xi1> to vector<8x1xi32>
    %237 = arith.sitofp %236 : vector<8x1xi32> to vector<8x1xf32>
    %c5_i32 = arith.constant 5 : i32
    %238 = vector.broadcast %c5_i32 : i32 to vector<8x1xi32>
    %239 = arith.cmpi sgt, %1, %238 : vector<8x1xi32>
    %240 = arith.extui %239 : vector<8x1xi1> to vector<8x1xi32>
    %241 = arith.sitofp %240 : vector<8x1xi32> to vector<8x1xf32>
    %242 = vector.broadcast %8 : vector<1x64xf32> to vector<8x64xf32>
    %243 = vector.broadcast %237 : vector<8x1xf32> to vector<8x64xf32>
    %244 = arith.mulf %242, %243 : vector<8x64xf32>
    %245 = vector.broadcast %10 : vector<1x64xf32> to vector<8x64xf32>
    %246 = vector.broadcast %241 : vector<8x1xf32> to vector<8x64xf32>
    %247 = arith.mulf %245, %246 : vector<8x64xf32>
    %248 = arith.addf %244, %247 : vector<8x64xf32>
    %249 = arith.mulf %248, %233 : vector<8x64xf32>
    %cst_47 = arith.constant 1.000000e+00 : f32
    %250 = vector.broadcast %cst_47 : f32 to vector<8x64xf32>
    %251 = arith.subf %250, %248 : vector<8x64xf32>
    %252 = arith.mulf %251, %181 : vector<8x64xf32>
    %253 = arith.addf %249, %252 : vector<8x64xf32>
    %254 = arith.mulf %248, %233 : vector<8x64xf32>
    %255 = vector.extract_strided_slice %16 {offsets = [24, 0], sizes = [8, 64], strides = [1, 1]} : vector<64x64xf32> to vector<8x64xf32>
    %256 = vector.broadcast %8 : vector<1x64xf32> to vector<8x64xf32>
    %257 = arith.mulf %256, %255 : vector<8x64xf32>
    %258 = vector.extract_strided_slice %16 {offsets = [32, 0], sizes = [8, 64], strides = [1, 1]} : vector<64x64xf32> to vector<8x64xf32>
    %259 = vector.broadcast %10 : vector<1x64xf32> to vector<8x64xf32>
    %260 = arith.mulf %259, %258 : vector<8x64xf32>
    %261 = arith.addf %257, %260 : vector<8x64xf32>
    %262 = vector.extract_strided_slice %22 {offsets = [24, 0], sizes = [8, 64], strides = [1, 1]} : vector<64x64xf32> to vector<8x64xf32>
    %263 = vector.broadcast %8 : vector<1x64xf32> to vector<8x64xf32>
    %264 = arith.mulf %263, %262 : vector<8x64xf32>
    %265 = vector.extract_strided_slice %22 {offsets = [32, 0], sizes = [8, 64], strides = [1, 1]} : vector<64x64xf32> to vector<8x64xf32>
    %266 = vector.broadcast %10 : vector<1x64xf32> to vector<8x64xf32>
    %267 = arith.mulf %266, %265 : vector<8x64xf32>
    %268 = arith.addf %264, %267 : vector<8x64xf32>
    %269 = vector.extract_strided_slice %28 {offsets = [24, 0], sizes = [8, 64], strides = [1, 1]} : vector<64x64xf32> to vector<8x64xf32>
    %270 = vector.broadcast %8 : vector<1x64xf32> to vector<8x64xf32>
    %271 = arith.mulf %270, %269 : vector<8x64xf32>
    %272 = vector.extract_strided_slice %28 {offsets = [32, 0], sizes = [8, 64], strides = [1, 1]} : vector<64x64xf32> to vector<8x64xf32>
    %273 = vector.broadcast %10 : vector<1x64xf32> to vector<8x64xf32>
    %274 = arith.mulf %273, %272 : vector<8x64xf32>
    %275 = arith.addf %271, %274 : vector<8x64xf32>
    %276 = arith.truncf %253 : vector<8x64xf32> to vector<8x64xbf16>
    %cst_48 = arith.constant dense<0.000000e+00> : vector<8x64xf32>
    %277 = tpu.matmul %276, %30, %cst_48 {dimension_numbers = #tpu.dot_dimension_numbers<[1], [0], [0], [1], [0, 0, 1, 1], [], []>} : vector<8x64xbf16>, vector<64x64xbf16>, vector<8x64xf32> -> vector<8x64xf32>
    %278 = vector.broadcast %35 : vector<1x64xf32> to vector<8x64xf32>
    %279 = arith.addf %277, %278 : vector<8x64xf32>
    %cst_49 = arith.constant dense<0.000000e+00> : vector<8x64xf32>
    %280 = tpu.matmul %276, %32, %cst_49 {dimension_numbers = #tpu.dot_dimension_numbers<[1], [0], [0], [1], [0, 0, 1, 1], [], []>} : vector<8x64xbf16>, vector<64x64xbf16>, vector<8x64xf32> -> vector<8x64xf32>
    %281 = vector.broadcast %36 : vector<1x64xf32> to vector<8x64xf32>
    %282 = arith.addf %280, %281 : vector<8x64xf32>
    %cst_50 = arith.constant dense<0.000000e+00> : vector<8x64xf32>
    %283 = tpu.matmul %276, %34, %cst_50 {dimension_numbers = #tpu.dot_dimension_numbers<[1], [0], [0], [1], [0, 0, 1, 1], [], []>} : vector<8x64xbf16>, vector<64x64xbf16>, vector<8x64xf32> -> vector<8x64xf32>
    %284 = vector.broadcast %37 : vector<1x64xf32> to vector<8x64xf32>
    %285 = arith.addf %283, %284 : vector<8x64xf32>
    %286 = arith.addf %261, %279 : vector<8x64xf32>
    %287 = arith.negf %286 : vector<8x64xf32>
    %288 = math.exp %287 : vector<8x64xf32>
    %cst_51 = arith.constant 1.000000e+00 : f32
    %289 = vector.broadcast %cst_51 : f32 to vector<8x64xf32>
    %290 = arith.addf %289, %288 : vector<8x64xf32>
    %291 = arith.divf %289, %290 : vector<8x64xf32>
    %292 = arith.addf %268, %282 : vector<8x64xf32>
    %293 = arith.negf %292 : vector<8x64xf32>
    %294 = math.exp %293 : vector<8x64xf32>
    %cst_52 = arith.constant 1.000000e+00 : f32
    %295 = vector.broadcast %cst_52 : f32 to vector<8x64xf32>
    %296 = arith.addf %295, %294 : vector<8x64xf32>
    %297 = arith.divf %295, %296 : vector<8x64xf32>
    %298 = arith.mulf %291, %285 : vector<8x64xf32>
    %299 = arith.addf %275, %298 : vector<8x64xf32>
    %300 = math.tanh %299 : vector<8x64xf32>
    %cst_53 = arith.constant 1.000000e+00 : f32
    %301 = vector.broadcast %cst_53 : f32 to vector<8x64xf32>
    %302 = arith.subf %301, %297 : vector<8x64xf32>
    %303 = arith.mulf %302, %300 : vector<8x64xf32>
    %304 = arith.mulf %297, %253 : vector<8x64xf32>
    %305 = arith.addf %303, %304 : vector<8x64xf32>
    %c3_i32 = arith.constant 3 : i32
    %306 = vector.broadcast %c3_i32 : i32 to vector<8x1xi32>
    %307 = arith.cmpi sgt, %1, %306 : vector<8x1xi32>
    %308 = arith.extui %307 : vector<8x1xi1> to vector<8x1xi32>
    %309 = arith.sitofp %308 : vector<8x1xi32> to vector<8x1xf32>
    %c4_i32 = arith.constant 4 : i32
    %310 = vector.broadcast %c4_i32 : i32 to vector<8x1xi32>
    %311 = arith.cmpi sgt, %1, %310 : vector<8x1xi32>
    %312 = arith.extui %311 : vector<8x1xi1> to vector<8x1xi32>
    %313 = arith.sitofp %312 : vector<8x1xi32> to vector<8x1xf32>
    %314 = vector.broadcast %8 : vector<1x64xf32> to vector<8x64xf32>
    %315 = vector.broadcast %309 : vector<8x1xf32> to vector<8x64xf32>
    %316 = arith.mulf %314, %315 : vector<8x64xf32>
    %317 = vector.broadcast %10 : vector<1x64xf32> to vector<8x64xf32>
    %318 = vector.broadcast %313 : vector<8x1xf32> to vector<8x64xf32>
    %319 = arith.mulf %317, %318 : vector<8x64xf32>
    %320 = arith.addf %316, %319 : vector<8x64xf32>
    %321 = arith.mulf %320, %305 : vector<8x64xf32>
    %cst_54 = arith.constant 1.000000e+00 : f32
    %322 = vector.broadcast %cst_54 : f32 to vector<8x64xf32>
    %323 = arith.subf %322, %320 : vector<8x64xf32>
    %324 = arith.mulf %323, %253 : vector<8x64xf32>
    %325 = arith.addf %321, %324 : vector<8x64xf32>
    %326 = arith.mulf %320, %305 : vector<8x64xf32>
    %327 = vector.extract_strided_slice %16 {offsets = [32, 0], sizes = [8, 64], strides = [1, 1]} : vector<64x64xf32> to vector<8x64xf32>
    %328 = vector.broadcast %8 : vector<1x64xf32> to vector<8x64xf32>
    %329 = arith.mulf %328, %327 : vector<8x64xf32>
    %330 = vector.extract_strided_slice %16 {offsets = [24, 0], sizes = [8, 64], strides = [1, 1]} : vector<64x64xf32> to vector<8x64xf32>
    %331 = vector.broadcast %10 : vector<1x64xf32> to vector<8x64xf32>
    %332 = arith.mulf %331, %330 : vector<8x64xf32>
    %333 = arith.addf %329, %332 : vector<8x64xf32>
    %334 = vector.extract_strided_slice %22 {offsets = [32, 0], sizes = [8, 64], strides = [1, 1]} : vector<64x64xf32> to vector<8x64xf32>
    %335 = vector.broadcast %8 : vector<1x64xf32> to vector<8x64xf32>
    %336 = arith.mulf %335, %334 : vector<8x64xf32>
    %337 = vector.extract_strided_slice %22 {offsets = [24, 0], sizes = [8, 64], strides = [1, 1]} : vector<64x64xf32> to vector<8x64xf32>
    %338 = vector.broadcast %10 : vector<1x64xf32> to vector<8x64xf32>
    %339 = arith.mulf %338, %337 : vector<8x64xf32>
    %340 = arith.addf %336, %339 : vector<8x64xf32>
    %341 = vector.extract_strided_slice %28 {offsets = [32, 0], sizes = [8, 64], strides = [1, 1]} : vector<64x64xf32> to vector<8x64xf32>
    %342 = vector.broadcast %8 : vector<1x64xf32> to vector<8x64xf32>
    %343 = arith.mulf %342, %341 : vector<8x64xf32>
    %344 = vector.extract_strided_slice %28 {offsets = [24, 0], sizes = [8, 64], strides = [1, 1]} : vector<64x64xf32> to vector<8x64xf32>
    %345 = vector.broadcast %10 : vector<1x64xf32> to vector<8x64xf32>
    %346 = arith.mulf %345, %344 : vector<8x64xf32>
    %347 = arith.addf %343, %346 : vector<8x64xf32>
    %348 = arith.truncf %325 : vector<8x64xf32> to vector<8x64xbf16>
    %cst_55 = arith.constant dense<0.000000e+00> : vector<8x64xf32>
    %349 = tpu.matmul %348, %30, %cst_55 {dimension_numbers = #tpu.dot_dimension_numbers<[1], [0], [0], [1], [0, 0, 1, 1], [], []>} : vector<8x64xbf16>, vector<64x64xbf16>, vector<8x64xf32> -> vector<8x64xf32>
    %350 = vector.broadcast %35 : vector<1x64xf32> to vector<8x64xf32>
    %351 = arith.addf %349, %350 : vector<8x64xf32>
    %cst_56 = arith.constant dense<0.000000e+00> : vector<8x64xf32>
    %352 = tpu.matmul %348, %32, %cst_56 {dimension_numbers = #tpu.dot_dimension_numbers<[1], [0], [0], [1], [0, 0, 1, 1], [], []>} : vector<8x64xbf16>, vector<64x64xbf16>, vector<8x64xf32> -> vector<8x64xf32>
    %353 = vector.broadcast %36 : vector<1x64xf32> to vector<8x64xf32>
    %354 = arith.addf %352, %353 : vector<8x64xf32>
    %cst_57 = arith.constant dense<0.000000e+00> : vector<8x64xf32>
    %355 = tpu.matmul %348, %34, %cst_57 {dimension_numbers = #tpu.dot_dimension_numbers<[1], [0], [0], [1], [0, 0, 1, 1], [], []>} : vector<8x64xbf16>, vector<64x64xbf16>, vector<8x64xf32> -> vector<8x64xf32>
    %356 = vector.broadcast %37 : vector<1x64xf32> to vector<8x64xf32>
    %357 = arith.addf %355, %356 : vector<8x64xf32>
    %358 = arith.addf %333, %351 : vector<8x64xf32>
    %359 = arith.negf %358 : vector<8x64xf32>
    %360 = math.exp %359 : vector<8x64xf32>
    %cst_58 = arith.constant 1.000000e+00 : f32
    %361 = vector.broadcast %cst_58 : f32 to vector<8x64xf32>
    %362 = arith.addf %361, %360 : vector<8x64xf32>
    %363 = arith.divf %361, %362 : vector<8x64xf32>
    %364 = arith.addf %340, %354 : vector<8x64xf32>
    %365 = arith.negf %364 : vector<8x64xf32>
    %366 = math.exp %365 : vector<8x64xf32>
    %cst_59 = arith.constant 1.000000e+00 : f32
    %367 = vector.broadcast %cst_59 : f32 to vector<8x64xf32>
    %368 = arith.addf %367, %366 : vector<8x64xf32>
    %369 = arith.divf %367, %368 : vector<8x64xf32>
    %370 = arith.mulf %363, %357 : vector<8x64xf32>
    %371 = arith.addf %347, %370 : vector<8x64xf32>
    %372 = math.tanh %371 : vector<8x64xf32>
    %cst_60 = arith.constant 1.000000e+00 : f32
    %373 = vector.broadcast %cst_60 : f32 to vector<8x64xf32>
    %374 = arith.subf %373, %369 : vector<8x64xf32>
    %375 = arith.mulf %374, %372 : vector<8x64xf32>
    %376 = arith.mulf %369, %325 : vector<8x64xf32>
    %377 = arith.addf %375, %376 : vector<8x64xf32>
    %c4_i32_61 = arith.constant 4 : i32
    %378 = vector.broadcast %c4_i32_61 : i32 to vector<8x1xi32>
    %379 = arith.cmpi sgt, %1, %378 : vector<8x1xi32>
    %380 = arith.extui %379 : vector<8x1xi1> to vector<8x1xi32>
    %381 = arith.sitofp %380 : vector<8x1xi32> to vector<8x1xf32>
    %c3_i32_62 = arith.constant 3 : i32
    %382 = vector.broadcast %c3_i32_62 : i32 to vector<8x1xi32>
    %383 = arith.cmpi sgt, %1, %382 : vector<8x1xi32>
    %384 = arith.extui %383 : vector<8x1xi1> to vector<8x1xi32>
    %385 = arith.sitofp %384 : vector<8x1xi32> to vector<8x1xf32>
    %386 = vector.broadcast %8 : vector<1x64xf32> to vector<8x64xf32>
    %387 = vector.broadcast %381 : vector<8x1xf32> to vector<8x64xf32>
    %388 = arith.mulf %386, %387 : vector<8x64xf32>
    %389 = vector.broadcast %10 : vector<1x64xf32> to vector<8x64xf32>
    %390 = vector.broadcast %385 : vector<8x1xf32> to vector<8x64xf32>
    %391 = arith.mulf %389, %390 : vector<8x64xf32>
    %392 = arith.addf %388, %391 : vector<8x64xf32>
    %393 = arith.mulf %392, %377 : vector<8x64xf32>
    %cst_63 = arith.constant 1.000000e+00 : f32
    %394 = vector.broadcast %cst_63 : f32 to vector<8x64xf32>
    %395 = arith.subf %394, %392 : vector<8x64xf32>
    %396 = arith.mulf %395, %325 : vector<8x64xf32>
    %397 = arith.addf %393, %396 : vector<8x64xf32>
    %398 = arith.mulf %392, %377 : vector<8x64xf32>
    %399 = vector.extract_strided_slice %16 {offsets = [40, 0], sizes = [8, 64], strides = [1, 1]} : vector<64x64xf32> to vector<8x64xf32>
    %400 = vector.broadcast %8 : vector<1x64xf32> to vector<8x64xf32>
    %401 = arith.mulf %400, %399 : vector<8x64xf32>
    %402 = vector.extract_strided_slice %16 {offsets = [16, 0], sizes = [8, 64], strides = [1, 1]} : vector<64x64xf32> to vector<8x64xf32>
    %403 = vector.broadcast %10 : vector<1x64xf32> to vector<8x64xf32>
    %404 = arith.mulf %403, %402 : vector<8x64xf32>
    %405 = arith.addf %401, %404 : vector<8x64xf32>
    %406 = vector.extract_strided_slice %22 {offsets = [40, 0], sizes = [8, 64], strides = [1, 1]} : vector<64x64xf32> to vector<8x64xf32>
    %407 = vector.broadcast %8 : vector<1x64xf32> to vector<8x64xf32>
    %408 = arith.mulf %407, %406 : vector<8x64xf32>
    %409 = vector.extract_strided_slice %22 {offsets = [16, 0], sizes = [8, 64], strides = [1, 1]} : vector<64x64xf32> to vector<8x64xf32>
    %410 = vector.broadcast %10 : vector<1x64xf32> to vector<8x64xf32>
    %411 = arith.mulf %410, %409 : vector<8x64xf32>
    %412 = arith.addf %408, %411 : vector<8x64xf32>
    %413 = vector.extract_strided_slice %28 {offsets = [40, 0], sizes = [8, 64], strides = [1, 1]} : vector<64x64xf32> to vector<8x64xf32>
    %414 = vector.broadcast %8 : vector<1x64xf32> to vector<8x64xf32>
    %415 = arith.mulf %414, %413 : vector<8x64xf32>
    %416 = vector.extract_strided_slice %28 {offsets = [16, 0], sizes = [8, 64], strides = [1, 1]} : vector<64x64xf32> to vector<8x64xf32>
    %417 = vector.broadcast %10 : vector<1x64xf32> to vector<8x64xf32>
    %418 = arith.mulf %417, %416 : vector<8x64xf32>
    %419 = arith.addf %415, %418 : vector<8x64xf32>
    %420 = arith.truncf %397 : vector<8x64xf32> to vector<8x64xbf16>
    %cst_64 = arith.constant dense<0.000000e+00> : vector<8x64xf32>
    %421 = tpu.matmul %420, %30, %cst_64 {dimension_numbers = #tpu.dot_dimension_numbers<[1], [0], [0], [1], [0, 0, 1, 1], [], []>} : vector<8x64xbf16>, vector<64x64xbf16>, vector<8x64xf32> -> vector<8x64xf32>
    %422 = vector.broadcast %35 : vector<1x64xf32> to vector<8x64xf32>
    %423 = arith.addf %421, %422 : vector<8x64xf32>
    %cst_65 = arith.constant dense<0.000000e+00> : vector<8x64xf32>
    %424 = tpu.matmul %420, %32, %cst_65 {dimension_numbers = #tpu.dot_dimension_numbers<[1], [0], [0], [1], [0, 0, 1, 1], [], []>} : vector<8x64xbf16>, vector<64x64xbf16>, vector<8x64xf32> -> vector<8x64xf32>
    %425 = vector.broadcast %36 : vector<1x64xf32> to vector<8x64xf32>
    %426 = arith.addf %424, %425 : vector<8x64xf32>
    %cst_66 = arith.constant dense<0.000000e+00> : vector<8x64xf32>
    %427 = tpu.matmul %420, %34, %cst_66 {dimension_numbers = #tpu.dot_dimension_numbers<[1], [0], [0], [1], [0, 0, 1, 1], [], []>} : vector<8x64xbf16>, vector<64x64xbf16>, vector<8x64xf32> -> vector<8x64xf32>
    %428 = vector.broadcast %37 : vector<1x64xf32> to vector<8x64xf32>
    %429 = arith.addf %427, %428 : vector<8x64xf32>
    %430 = arith.addf %405, %423 : vector<8x64xf32>
    %431 = arith.negf %430 : vector<8x64xf32>
    %432 = math.exp %431 : vector<8x64xf32>
    %cst_67 = arith.constant 1.000000e+00 : f32
    %433 = vector.broadcast %cst_67 : f32 to vector<8x64xf32>
    %434 = arith.addf %433, %432 : vector<8x64xf32>
    %435 = arith.divf %433, %434 : vector<8x64xf32>
    %436 = arith.addf %412, %426 : vector<8x64xf32>
    %437 = arith.negf %436 : vector<8x64xf32>
    %438 = math.exp %437 : vector<8x64xf32>
    %cst_68 = arith.constant 1.000000e+00 : f32
    %439 = vector.broadcast %cst_68 : f32 to vector<8x64xf32>
    %440 = arith.addf %439, %438 : vector<8x64xf32>
    %441 = arith.divf %439, %440 : vector<8x64xf32>
    %442 = arith.mulf %435, %429 : vector<8x64xf32>
    %443 = arith.addf %419, %442 : vector<8x64xf32>
    %444 = math.tanh %443 : vector<8x64xf32>
    %cst_69 = arith.constant 1.000000e+00 : f32
    %445 = vector.broadcast %cst_69 : f32 to vector<8x64xf32>
    %446 = arith.subf %445, %441 : vector<8x64xf32>
    %447 = arith.mulf %446, %444 : vector<8x64xf32>
    %448 = arith.mulf %441, %397 : vector<8x64xf32>
    %449 = arith.addf %447, %448 : vector<8x64xf32>
    %c5_i32_70 = arith.constant 5 : i32
    %450 = vector.broadcast %c5_i32_70 : i32 to vector<8x1xi32>
    %451 = arith.cmpi sgt, %1, %450 : vector<8x1xi32>
    %452 = arith.extui %451 : vector<8x1xi1> to vector<8x1xi32>
    %453 = arith.sitofp %452 : vector<8x1xi32> to vector<8x1xf32>
    %c2_i32_71 = arith.constant 2 : i32
    %454 = vector.broadcast %c2_i32_71 : i32 to vector<8x1xi32>
    %455 = arith.cmpi sgt, %1, %454 : vector<8x1xi32>
    %456 = arith.extui %455 : vector<8x1xi1> to vector<8x1xi32>
    %457 = arith.sitofp %456 : vector<8x1xi32> to vector<8x1xf32>
    %458 = vector.broadcast %8 : vector<1x64xf32> to vector<8x64xf32>
    %459 = vector.broadcast %453 : vector<8x1xf32> to vector<8x64xf32>
    %460 = arith.mulf %458, %459 : vector<8x64xf32>
    %461 = vector.broadcast %10 : vector<1x64xf32> to vector<8x64xf32>
    %462 = vector.broadcast %457 : vector<8x1xf32> to vector<8x64xf32>
    %463 = arith.mulf %461, %462 : vector<8x64xf32>
    %464 = arith.addf %460, %463 : vector<8x64xf32>
    %465 = arith.mulf %464, %449 : vector<8x64xf32>
    %cst_72 = arith.constant 1.000000e+00 : f32
    %466 = vector.broadcast %cst_72 : f32 to vector<8x64xf32>
    %467 = arith.subf %466, %464 : vector<8x64xf32>
    %468 = arith.mulf %467, %397 : vector<8x64xf32>
    %469 = arith.addf %465, %468 : vector<8x64xf32>
    %470 = arith.mulf %464, %449 : vector<8x64xf32>
    %471 = vector.extract_strided_slice %16 {offsets = [48, 0], sizes = [8, 64], strides = [1, 1]} : vector<64x64xf32> to vector<8x64xf32>
    %472 = vector.broadcast %8 : vector<1x64xf32> to vector<8x64xf32>
    %473 = arith.mulf %472, %471 : vector<8x64xf32>
    %474 = vector.extract_strided_slice %16 {offsets = [8, 0], sizes = [8, 64], strides = [1, 1]} : vector<64x64xf32> to vector<8x64xf32>
    %475 = vector.broadcast %10 : vector<1x64xf32> to vector<8x64xf32>
    %476 = arith.mulf %475, %474 : vector<8x64xf32>
    %477 = arith.addf %473, %476 : vector<8x64xf32>
    %478 = vector.extract_strided_slice %22 {offsets = [48, 0], sizes = [8, 64], strides = [1, 1]} : vector<64x64xf32> to vector<8x64xf32>
    %479 = vector.broadcast %8 : vector<1x64xf32> to vector<8x64xf32>
    %480 = arith.mulf %479, %478 : vector<8x64xf32>
    %481 = vector.extract_strided_slice %22 {offsets = [8, 0], sizes = [8, 64], strides = [1, 1]} : vector<64x64xf32> to vector<8x64xf32>
    %482 = vector.broadcast %10 : vector<1x64xf32> to vector<8x64xf32>
    %483 = arith.mulf %482, %481 : vector<8x64xf32>
    %484 = arith.addf %480, %483 : vector<8x64xf32>
    %485 = vector.extract_strided_slice %28 {offsets = [48, 0], sizes = [8, 64], strides = [1, 1]} : vector<64x64xf32> to vector<8x64xf32>
    %486 = vector.broadcast %8 : vector<1x64xf32> to vector<8x64xf32>
    %487 = arith.mulf %486, %485 : vector<8x64xf32>
    %488 = vector.extract_strided_slice %28 {offsets = [8, 0], sizes = [8, 64], strides = [1, 1]} : vector<64x64xf32> to vector<8x64xf32>
    %489 = vector.broadcast %10 : vector<1x64xf32> to vector<8x64xf32>
    %490 = arith.mulf %489, %488 : vector<8x64xf32>
    %491 = arith.addf %487, %490 : vector<8x64xf32>
    %492 = arith.truncf %469 : vector<8x64xf32> to vector<8x64xbf16>
    %cst_73 = arith.constant dense<0.000000e+00> : vector<8x64xf32>
    %493 = tpu.matmul %492, %30, %cst_73 {dimension_numbers = #tpu.dot_dimension_numbers<[1], [0], [0], [1], [0, 0, 1, 1], [], []>} : vector<8x64xbf16>, vector<64x64xbf16>, vector<8x64xf32> -> vector<8x64xf32>
    %494 = vector.broadcast %35 : vector<1x64xf32> to vector<8x64xf32>
    %495 = arith.addf %493, %494 : vector<8x64xf32>
    %cst_74 = arith.constant dense<0.000000e+00> : vector<8x64xf32>
    %496 = tpu.matmul %492, %32, %cst_74 {dimension_numbers = #tpu.dot_dimension_numbers<[1], [0], [0], [1], [0, 0, 1, 1], [], []>} : vector<8x64xbf16>, vector<64x64xbf16>, vector<8x64xf32> -> vector<8x64xf32>
    %497 = vector.broadcast %36 : vector<1x64xf32> to vector<8x64xf32>
    %498 = arith.addf %496, %497 : vector<8x64xf32>
    %cst_75 = arith.constant dense<0.000000e+00> : vector<8x64xf32>
    %499 = tpu.matmul %492, %34, %cst_75 {dimension_numbers = #tpu.dot_dimension_numbers<[1], [0], [0], [1], [0, 0, 1, 1], [], []>} : vector<8x64xbf16>, vector<64x64xbf16>, vector<8x64xf32> -> vector<8x64xf32>
    %500 = vector.broadcast %37 : vector<1x64xf32> to vector<8x64xf32>
    %501 = arith.addf %499, %500 : vector<8x64xf32>
    %502 = arith.addf %477, %495 : vector<8x64xf32>
    %503 = arith.negf %502 : vector<8x64xf32>
    %504 = math.exp %503 : vector<8x64xf32>
    %cst_76 = arith.constant 1.000000e+00 : f32
    %505 = vector.broadcast %cst_76 : f32 to vector<8x64xf32>
    %506 = arith.addf %505, %504 : vector<8x64xf32>
    %507 = arith.divf %505, %506 : vector<8x64xf32>
    %508 = arith.addf %484, %498 : vector<8x64xf32>
    %509 = arith.negf %508 : vector<8x64xf32>
    %510 = math.exp %509 : vector<8x64xf32>
    %cst_77 = arith.constant 1.000000e+00 : f32
    %511 = vector.broadcast %cst_77 : f32 to vector<8x64xf32>
    %512 = arith.addf %511, %510 : vector<8x64xf32>
    %513 = arith.divf %511, %512 : vector<8x64xf32>
    %514 = arith.mulf %507, %501 : vector<8x64xf32>
    %515 = arith.addf %491, %514 : vector<8x64xf32>
    %516 = math.tanh %515 : vector<8x64xf32>
    %cst_78 = arith.constant 1.000000e+00 : f32
    %517 = vector.broadcast %cst_78 : f32 to vector<8x64xf32>
    %518 = arith.subf %517, %513 : vector<8x64xf32>
    %519 = arith.mulf %518, %516 : vector<8x64xf32>
    %520 = arith.mulf %513, %469 : vector<8x64xf32>
    %521 = arith.addf %519, %520 : vector<8x64xf32>
    %c6_i32_79 = arith.constant 6 : i32
    %522 = vector.broadcast %c6_i32_79 : i32 to vector<8x1xi32>
    %523 = arith.cmpi sgt, %1, %522 : vector<8x1xi32>
    %524 = arith.extui %523 : vector<8x1xi1> to vector<8x1xi32>
    %525 = arith.sitofp %524 : vector<8x1xi32> to vector<8x1xf32>
    %c1_i32_80 = arith.constant 1 : i32
    %526 = vector.broadcast %c1_i32_80 : i32 to vector<8x1xi32>
    %527 = arith.cmpi sgt, %1, %526 : vector<8x1xi32>
    %528 = arith.extui %527 : vector<8x1xi1> to vector<8x1xi32>
    %529 = arith.sitofp %528 : vector<8x1xi32> to vector<8x1xf32>
    %530 = vector.broadcast %8 : vector<1x64xf32> to vector<8x64xf32>
    %531 = vector.broadcast %525 : vector<8x1xf32> to vector<8x64xf32>
    %532 = arith.mulf %530, %531 : vector<8x64xf32>
    %533 = vector.broadcast %10 : vector<1x64xf32> to vector<8x64xf32>
    %534 = vector.broadcast %529 : vector<8x1xf32> to vector<8x64xf32>
    %535 = arith.mulf %533, %534 : vector<8x64xf32>
    %536 = arith.addf %532, %535 : vector<8x64xf32>
    %537 = arith.mulf %536, %521 : vector<8x64xf32>
    %cst_81 = arith.constant 1.000000e+00 : f32
    %538 = vector.broadcast %cst_81 : f32 to vector<8x64xf32>
    %539 = arith.subf %538, %536 : vector<8x64xf32>
    %540 = arith.mulf %539, %469 : vector<8x64xf32>
    %541 = arith.addf %537, %540 : vector<8x64xf32>
    %542 = arith.mulf %536, %521 : vector<8x64xf32>
    %543 = vector.extract_strided_slice %16 {offsets = [56, 0], sizes = [8, 64], strides = [1, 1]} : vector<64x64xf32> to vector<8x64xf32>
    %544 = vector.broadcast %8 : vector<1x64xf32> to vector<8x64xf32>
    %545 = arith.mulf %544, %543 : vector<8x64xf32>
    %546 = vector.extract_strided_slice %16 {offsets = [0, 0], sizes = [8, 64], strides = [1, 1]} : vector<64x64xf32> to vector<8x64xf32>
    %547 = vector.broadcast %10 : vector<1x64xf32> to vector<8x64xf32>
    %548 = arith.mulf %547, %546 : vector<8x64xf32>
    %549 = arith.addf %545, %548 : vector<8x64xf32>
    %550 = vector.extract_strided_slice %22 {offsets = [56, 0], sizes = [8, 64], strides = [1, 1]} : vector<64x64xf32> to vector<8x64xf32>
    %551 = vector.broadcast %8 : vector<1x64xf32> to vector<8x64xf32>
    %552 = arith.mulf %551, %550 : vector<8x64xf32>
    %553 = vector.extract_strided_slice %22 {offsets = [0, 0], sizes = [8, 64], strides = [1, 1]} : vector<64x64xf32> to vector<8x64xf32>
    %554 = vector.broadcast %10 : vector<1x64xf32> to vector<8x64xf32>
    %555 = arith.mulf %554, %553 : vector<8x64xf32>
    %556 = arith.addf %552, %555 : vector<8x64xf32>
    %557 = vector.extract_strided_slice %28 {offsets = [56, 0], sizes = [8, 64], strides = [1, 1]} : vector<64x64xf32> to vector<8x64xf32>
    %558 = vector.broadcast %8 : vector<1x64xf32> to vector<8x64xf32>
    %559 = arith.mulf %558, %557 : vector<8x64xf32>
    %560 = vector.extract_strided_slice %28 {offsets = [0, 0], sizes = [8, 64], strides = [1, 1]} : vector<64x64xf32> to vector<8x64xf32>
    %561 = vector.broadcast %10 : vector<1x64xf32> to vector<8x64xf32>
    %562 = arith.mulf %561, %560 : vector<8x64xf32>
    %563 = arith.addf %559, %562 : vector<8x64xf32>
    %564 = arith.truncf %541 : vector<8x64xf32> to vector<8x64xbf16>
    %cst_82 = arith.constant dense<0.000000e+00> : vector<8x64xf32>
    %565 = tpu.matmul %564, %30, %cst_82 {dimension_numbers = #tpu.dot_dimension_numbers<[1], [0], [0], [1], [0, 0, 1, 1], [], []>} : vector<8x64xbf16>, vector<64x64xbf16>, vector<8x64xf32> -> vector<8x64xf32>
    %566 = vector.broadcast %35 : vector<1x64xf32> to vector<8x64xf32>
    %567 = arith.addf %565, %566 : vector<8x64xf32>
    %cst_83 = arith.constant dense<0.000000e+00> : vector<8x64xf32>
    %568 = tpu.matmul %564, %32, %cst_83 {dimension_numbers = #tpu.dot_dimension_numbers<[1], [0], [0], [1], [0, 0, 1, 1], [], []>} : vector<8x64xbf16>, vector<64x64xbf16>, vector<8x64xf32> -> vector<8x64xf32>
    %569 = vector.broadcast %36 : vector<1x64xf32> to vector<8x64xf32>
    %570 = arith.addf %568, %569 : vector<8x64xf32>
    %cst_84 = arith.constant dense<0.000000e+00> : vector<8x64xf32>
    %571 = tpu.matmul %564, %34, %cst_84 {dimension_numbers = #tpu.dot_dimension_numbers<[1], [0], [0], [1], [0, 0, 1, 1], [], []>} : vector<8x64xbf16>, vector<64x64xbf16>, vector<8x64xf32> -> vector<8x64xf32>
    %572 = vector.broadcast %37 : vector<1x64xf32> to vector<8x64xf32>
    %573 = arith.addf %571, %572 : vector<8x64xf32>
    %574 = arith.addf %549, %567 : vector<8x64xf32>
    %575 = arith.negf %574 : vector<8x64xf32>
    %576 = math.exp %575 : vector<8x64xf32>
    %cst_85 = arith.constant 1.000000e+00 : f32
    %577 = vector.broadcast %cst_85 : f32 to vector<8x64xf32>
    %578 = arith.addf %577, %576 : vector<8x64xf32>
    %579 = arith.divf %577, %578 : vector<8x64xf32>
    %580 = arith.addf %556, %570 : vector<8x64xf32>
    %581 = arith.negf %580 : vector<8x64xf32>
    %582 = math.exp %581 : vector<8x64xf32>
    %cst_86 = arith.constant 1.000000e+00 : f32
    %583 = vector.broadcast %cst_86 : f32 to vector<8x64xf32>
    %584 = arith.addf %583, %582 : vector<8x64xf32>
    %585 = arith.divf %583, %584 : vector<8x64xf32>
    %586 = arith.mulf %579, %573 : vector<8x64xf32>
    %587 = arith.addf %563, %586 : vector<8x64xf32>
    %588 = math.tanh %587 : vector<8x64xf32>
    %cst_87 = arith.constant 1.000000e+00 : f32
    %589 = vector.broadcast %cst_87 : f32 to vector<8x64xf32>
    %590 = arith.subf %589, %585 : vector<8x64xf32>
    %591 = arith.mulf %590, %588 : vector<8x64xf32>
    %592 = arith.mulf %585, %541 : vector<8x64xf32>
    %593 = arith.addf %591, %592 : vector<8x64xf32>
    %c7_i32_88 = arith.constant 7 : i32
    %594 = vector.broadcast %c7_i32_88 : i32 to vector<8x1xi32>
    %595 = arith.cmpi sgt, %1, %594 : vector<8x1xi32>
    %596 = arith.extui %595 : vector<8x1xi1> to vector<8x1xi32>
    %597 = arith.sitofp %596 : vector<8x1xi32> to vector<8x1xf32>
    %c0_i32_89 = arith.constant 0 : i32
    %598 = vector.broadcast %c0_i32_89 : i32 to vector<8x1xi32>
    %599 = arith.cmpi sgt, %1, %598 : vector<8x1xi32>
    %600 = arith.extui %599 : vector<8x1xi1> to vector<8x1xi32>
    %601 = arith.sitofp %600 : vector<8x1xi32> to vector<8x1xf32>
    %602 = vector.broadcast %8 : vector<1x64xf32> to vector<8x64xf32>
    %603 = vector.broadcast %597 : vector<8x1xf32> to vector<8x64xf32>
    %604 = arith.mulf %602, %603 : vector<8x64xf32>
    %605 = vector.broadcast %10 : vector<1x64xf32> to vector<8x64xf32>
    %606 = vector.broadcast %601 : vector<8x1xf32> to vector<8x64xf32>
    %607 = arith.mulf %605, %606 : vector<8x64xf32>
    %608 = arith.addf %604, %607 : vector<8x64xf32>
    %609 = arith.mulf %608, %593 : vector<8x64xf32>
    %610 = vector.broadcast %8 : vector<1x64xf32> to vector<8x64xf32>
    %611 = arith.mulf %610, %110 : vector<8x64xf32>
    %612 = vector.broadcast %10 : vector<1x64xf32> to vector<8x64xf32>
    %613 = arith.mulf %612, %609 : vector<8x64xf32>
    %614 = arith.addf %611, %613 : vector<8x64xf32>
    %615 = vector.broadcast %8 : vector<1x64xf32> to vector<8x64xf32>
    %616 = arith.mulf %615, %182 : vector<8x64xf32>
    %617 = vector.broadcast %10 : vector<1x64xf32> to vector<8x64xf32>
    %618 = arith.mulf %617, %542 : vector<8x64xf32>
    %619 = arith.addf %616, %618 : vector<8x64xf32>
    %620 = vector.broadcast %8 : vector<1x64xf32> to vector<8x64xf32>
    %621 = arith.mulf %620, %254 : vector<8x64xf32>
    %622 = vector.broadcast %10 : vector<1x64xf32> to vector<8x64xf32>
    %623 = arith.mulf %622, %470 : vector<8x64xf32>
    %624 = arith.addf %621, %623 : vector<8x64xf32>
    %625 = vector.broadcast %8 : vector<1x64xf32> to vector<8x64xf32>
    %626 = arith.mulf %625, %326 : vector<8x64xf32>
    %627 = vector.broadcast %10 : vector<1x64xf32> to vector<8x64xf32>
    %628 = arith.mulf %627, %398 : vector<8x64xf32>
    %629 = arith.addf %626, %628 : vector<8x64xf32>
    %630 = vector.broadcast %8 : vector<1x64xf32> to vector<8x64xf32>
    %631 = arith.mulf %630, %398 : vector<8x64xf32>
    %632 = vector.broadcast %10 : vector<1x64xf32> to vector<8x64xf32>
    %633 = arith.mulf %632, %326 : vector<8x64xf32>
    %634 = arith.addf %631, %633 : vector<8x64xf32>
    %635 = vector.broadcast %8 : vector<1x64xf32> to vector<8x64xf32>
    %636 = arith.mulf %635, %470 : vector<8x64xf32>
    %637 = vector.broadcast %10 : vector<1x64xf32> to vector<8x64xf32>
    %638 = arith.mulf %637, %254 : vector<8x64xf32>
    %639 = arith.addf %636, %638 : vector<8x64xf32>
    %640 = vector.broadcast %8 : vector<1x64xf32> to vector<8x64xf32>
    %641 = arith.mulf %640, %542 : vector<8x64xf32>
    %642 = vector.broadcast %10 : vector<1x64xf32> to vector<8x64xf32>
    %643 = arith.mulf %642, %182 : vector<8x64xf32>
    %644 = arith.addf %641, %643 : vector<8x64xf32>
    %645 = vector.broadcast %8 : vector<1x64xf32> to vector<8x64xf32>
    %646 = arith.mulf %645, %609 : vector<8x64xf32>
    %647 = vector.broadcast %10 : vector<1x64xf32> to vector<8x64xf32>
    %648 = arith.mulf %647, %110 : vector<8x64xf32>
    %649 = arith.addf %646, %648 : vector<8x64xf32>
    %650 = tpu.concatenate %614, %619, %624, %629, %634, %639, %644, %649 in 0 : vector<8x64xf32>, vector<8x64xf32>, vector<8x64xf32>, vector<8x64xf32>, vector<8x64xf32>, vector<8x64xf32>, vector<8x64xf32>, vector<8x64xf32> -> vector<64x64xf32>
    %c0_90 = arith.constant 0 : index
    %c0_91 = arith.constant 0 : index
    %651 = vector.load %arg6[%c0_90, %c0_91] : memref<64x32xbf16, #tpu.memory_space<vmem>>, vector<64x32xbf16>
    %c0_92 = arith.constant 0 : index
    %c0_93 = arith.constant 0 : index
    %652 = vector.load %arg7[%c0_92, %c0_93] : memref<1x32xf32, #tpu.memory_space<vmem>>, vector<1x32xf32>
    %c0_94 = arith.constant 0 : index
    %c0_95 = arith.constant 0 : index
    %653 = vector.load %arg8[%c0_94, %c0_95] : memref<1x8xf32, #tpu.memory_space<vmem>>, vector<1x8xf32>
    %c0_96 = arith.constant 0 : index
    %c0_97 = arith.constant 0 : index
    %654 = vector.load %arg9[%c0_96, %c0_97] : memref<1x8xf32, #tpu.memory_space<vmem>>, vector<1x8xf32>
    %c0_98 = arith.constant 0 : index
    %c0_99 = arith.constant 0 : index
    %655 = vector.load %arg10[%c0_98, %c0_99] : memref<1x32xf32, #tpu.memory_space<vmem>>, vector<1x32xf32>
    %656 = arith.truncf %650 : vector<64x64xf32> to vector<64x64xbf16>
    %cst_100 = arith.constant dense<0.000000e+00> : vector<64x32xf32>
    %657 = tpu.matmul %656, %651, %cst_100 {dimension_numbers = #tpu.dot_dimension_numbers<[1], [0], [0], [1], [0, 0, 1, 1], [], []>} : vector<64x64xbf16>, vector<64x32xbf16>, vector<64x32xf32> -> vector<64x32xf32>
    %658 = vector.broadcast %652 : vector<1x32xf32> to vector<64x32xf32>
    %659 = arith.addf %657, %658 : vector<64x32xf32>
    %660 = tpu.iota {dimensions = array<i32: 0>} : vector<8x1xi32>
    %c6_i32_101 = arith.constant 6 : i32
    %661 = vector.broadcast %c6_i32_101 : i32 to vector<8x1xi32>
    %662 = arith.cmpi slt, %660, %661 : vector<8x1xi32>
    %663 = arith.extui %662 : vector<8x1xi1> to vector<8x1xi32>
    %664 = arith.sitofp %663 : vector<8x1xi32> to vector<8x1xf32>
    %665 = vector.extract_strided_slice %659 {offsets = [0, 0], sizes = [8, 32], strides = [1, 1]} : vector<64x32xf32> to vector<8x32xf32>
    %666 = vector.broadcast %664 : vector<8x1xf32> to vector<8x32xf32>
    %667 = arith.mulf %665, %666 : vector<8x32xf32>
    %668 = vector.shape_cast %667 : vector<8x32xf32> to vector<1x8x32xf32>
    %cst_102 = arith.constant dense<0.000000e+00> : vector<1xf32>
    %669 = vector.multi_reduction <add>, %668, %cst_102 [1, 2] : vector<1x8x32xf32> to vector<1xf32>
    %670 = vector.shape_cast %669 : vector<1xf32> to vector<1x1x1xf32>
    %671 = vector.extract %670[0, 0, 0] : f32 from vector<1x1x1xf32>
    %672 = vector.broadcast %671 : f32 to vector<1x1xf32>
    %cst_103 = arith.constant 1.920000e+02 : f32
    %673 = vector.broadcast %cst_103 : f32 to vector<1x1xf32>
    %674 = arith.divf %672, %673 : vector<1x1xf32>
    %675 = vector.broadcast %674 : vector<1x1xf32> to vector<8x32xf32>
    %676 = arith.subf %665, %675 : vector<8x32xf32>
    %677 = vector.broadcast %664 : vector<8x1xf32> to vector<8x32xf32>
    %678 = arith.mulf %676, %677 : vector<8x32xf32>
    %679 = arith.mulf %678, %678 : vector<8x32xf32>
    %680 = vector.shape_cast %679 : vector<8x32xf32> to vector<1x8x32xf32>
    %cst_104 = arith.constant dense<0.000000e+00> : vector<1xf32>
    %681 = vector.multi_reduction <add>, %680, %cst_104 [1, 2] : vector<1x8x32xf32> to vector<1xf32>
    %682 = vector.shape_cast %681 : vector<1xf32> to vector<1x1x1xf32>
    %683 = vector.extract %682[0, 0, 0] : f32 from vector<1x1x1xf32>
    %684 = vector.broadcast %683 : f32 to vector<1x1xf32>
    %cst_105 = arith.constant 1.920000e+02 : f32
    %685 = vector.broadcast %cst_105 : f32 to vector<1x1xf32>
    %686 = arith.divf %684, %685 : vector<1x1xf32>
    %687 = vector.broadcast %674 : vector<1x1xf32> to vector<8x32xf32>
    %688 = arith.subf %665, %687 : vector<8x32xf32>
    %cst_106 = arith.constant 9.99999974E-6 : f32
    %689 = vector.broadcast %cst_106 : f32 to vector<1x1xf32>
    %690 = arith.addf %686, %689 : vector<1x1xf32>
    %691 = math.rsqrt %690 : vector<1x1xf32>
    %692 = vector.broadcast %691 : vector<1x1xf32> to vector<8x32xf32>
    %693 = arith.mulf %688, %692 : vector<8x32xf32>
    %694 = vector.extract_strided_slice %653 {offsets = [0, 0], sizes = [1, 1], strides = [1, 1]} : vector<1x8xf32> to vector<1x1xf32>
    %695 = vector.broadcast %694 : vector<1x1xf32> to vector<8x32xf32>
    %696 = arith.mulf %693, %695 : vector<8x32xf32>
    %697 = vector.extract_strided_slice %654 {offsets = [0, 0], sizes = [1, 1], strides = [1, 1]} : vector<1x8xf32> to vector<1x1xf32>
    %698 = vector.broadcast %697 : vector<1x1xf32> to vector<8x32xf32>
    %699 = arith.addf %696, %698 : vector<8x32xf32>
    %cst_107 = arith.constant 0.000000e+00 : f32
    %700 = vector.broadcast %cst_107 : f32 to vector<8x32xf32>
    %701 = arith.maximumf %699, %700 : vector<8x32xf32>
    %702 = vector.broadcast %655 : vector<1x32xf32> to vector<8x32xf32>
    %703 = arith.mulf %701, %702 : vector<8x32xf32>
    %cst_108 = arith.constant dense<0.000000e+00> : vector<8xf32>
    %704 = vector.multi_reduction <add>, %703, %cst_108 [1] : vector<8x32xf32> to vector<8xf32>
    %705 = vector.shape_cast %704 : vector<8xf32> to vector<8x1xf32>
    %706 = vector.extract_strided_slice %659 {offsets = [8, 0], sizes = [8, 32], strides = [1, 1]} : vector<64x32xf32> to vector<8x32xf32>
    %707 = vector.broadcast %664 : vector<8x1xf32> to vector<8x32xf32>
    %708 = arith.mulf %706, %707 : vector<8x32xf32>
    %709 = vector.shape_cast %708 : vector<8x32xf32> to vector<1x8x32xf32>
    %cst_109 = arith.constant dense<0.000000e+00> : vector<1xf32>
    %710 = vector.multi_reduction <add>, %709, %cst_109 [1, 2] : vector<1x8x32xf32> to vector<1xf32>
    %711 = vector.shape_cast %710 : vector<1xf32> to vector<1x1x1xf32>
    %712 = vector.extract %711[0, 0, 0] : f32 from vector<1x1x1xf32>
    %713 = vector.broadcast %712 : f32 to vector<1x1xf32>
    %cst_110 = arith.constant 1.920000e+02 : f32
    %714 = vector.broadcast %cst_110 : f32 to vector<1x1xf32>
    %715 = arith.divf %713, %714 : vector<1x1xf32>
    %716 = vector.broadcast %715 : vector<1x1xf32> to vector<8x32xf32>
    %717 = arith.subf %706, %716 : vector<8x32xf32>
    %718 = vector.broadcast %664 : vector<8x1xf32> to vector<8x32xf32>
    %719 = arith.mulf %717, %718 : vector<8x32xf32>
    %720 = arith.mulf %719, %719 : vector<8x32xf32>
    %721 = vector.shape_cast %720 : vector<8x32xf32> to vector<1x8x32xf32>
    %cst_111 = arith.constant dense<0.000000e+00> : vector<1xf32>
    %722 = vector.multi_reduction <add>, %721, %cst_111 [1, 2] : vector<1x8x32xf32> to vector<1xf32>
    %723 = vector.shape_cast %722 : vector<1xf32> to vector<1x1x1xf32>
    %724 = vector.extract %723[0, 0, 0] : f32 from vector<1x1x1xf32>
    %725 = vector.broadcast %724 : f32 to vector<1x1xf32>
    %cst_112 = arith.constant 1.920000e+02 : f32
    %726 = vector.broadcast %cst_112 : f32 to vector<1x1xf32>
    %727 = arith.divf %725, %726 : vector<1x1xf32>
    %728 = vector.broadcast %715 : vector<1x1xf32> to vector<8x32xf32>
    %729 = arith.subf %706, %728 : vector<8x32xf32>
    %cst_113 = arith.constant 9.99999974E-6 : f32
    %730 = vector.broadcast %cst_113 : f32 to vector<1x1xf32>
    %731 = arith.addf %727, %730 : vector<1x1xf32>
    %732 = math.rsqrt %731 : vector<1x1xf32>
    %733 = vector.broadcast %732 : vector<1x1xf32> to vector<8x32xf32>
    %734 = arith.mulf %729, %733 : vector<8x32xf32>
    %735 = vector.extract_strided_slice %653 {offsets = [0, 1], sizes = [1, 1], strides = [1, 1]} : vector<1x8xf32> to vector<1x1xf32>
    %736 = vector.broadcast %735 : vector<1x1xf32> to vector<8x32xf32>
    %737 = arith.mulf %734, %736 : vector<8x32xf32>
    %738 = vector.extract_strided_slice %654 {offsets = [0, 1], sizes = [1, 1], strides = [1, 1]} : vector<1x8xf32> to vector<1x1xf32>
    %739 = vector.broadcast %738 : vector<1x1xf32> to vector<8x32xf32>
    %740 = arith.addf %737, %739 : vector<8x32xf32>
    %cst_114 = arith.constant 0.000000e+00 : f32
    %741 = vector.broadcast %cst_114 : f32 to vector<8x32xf32>
    %742 = arith.maximumf %740, %741 : vector<8x32xf32>
    %743 = vector.broadcast %655 : vector<1x32xf32> to vector<8x32xf32>
    %744 = arith.mulf %742, %743 : vector<8x32xf32>
    %cst_115 = arith.constant dense<0.000000e+00> : vector<8xf32>
    %745 = vector.multi_reduction <add>, %744, %cst_115 [1] : vector<8x32xf32> to vector<8xf32>
    %746 = vector.shape_cast %745 : vector<8xf32> to vector<8x1xf32>
    %747 = vector.extract_strided_slice %659 {offsets = [16, 0], sizes = [8, 32], strides = [1, 1]} : vector<64x32xf32> to vector<8x32xf32>
    %748 = vector.broadcast %664 : vector<8x1xf32> to vector<8x32xf32>
    %749 = arith.mulf %747, %748 : vector<8x32xf32>
    %750 = vector.shape_cast %749 : vector<8x32xf32> to vector<1x8x32xf32>
    %cst_116 = arith.constant dense<0.000000e+00> : vector<1xf32>
    %751 = vector.multi_reduction <add>, %750, %cst_116 [1, 2] : vector<1x8x32xf32> to vector<1xf32>
    %752 = vector.shape_cast %751 : vector<1xf32> to vector<1x1x1xf32>
    %753 = vector.extract %752[0, 0, 0] : f32 from vector<1x1x1xf32>
    %754 = vector.broadcast %753 : f32 to vector<1x1xf32>
    %cst_117 = arith.constant 1.920000e+02 : f32
    %755 = vector.broadcast %cst_117 : f32 to vector<1x1xf32>
    %756 = arith.divf %754, %755 : vector<1x1xf32>
    %757 = vector.broadcast %756 : vector<1x1xf32> to vector<8x32xf32>
    %758 = arith.subf %747, %757 : vector<8x32xf32>
    %759 = vector.broadcast %664 : vector<8x1xf32> to vector<8x32xf32>
    %760 = arith.mulf %758, %759 : vector<8x32xf32>
    %761 = arith.mulf %760, %760 : vector<8x32xf32>
    %762 = vector.shape_cast %761 : vector<8x32xf32> to vector<1x8x32xf32>
    %cst_118 = arith.constant dense<0.000000e+00> : vector<1xf32>
    %763 = vector.multi_reduction <add>, %762, %cst_118 [1, 2] : vector<1x8x32xf32> to vector<1xf32>
    %764 = vector.shape_cast %763 : vector<1xf32> to vector<1x1x1xf32>
    %765 = vector.extract %764[0, 0, 0] : f32 from vector<1x1x1xf32>
    %766 = vector.broadcast %765 : f32 to vector<1x1xf32>
    %cst_119 = arith.constant 1.920000e+02 : f32
    %767 = vector.broadcast %cst_119 : f32 to vector<1x1xf32>
    %768 = arith.divf %766, %767 : vector<1x1xf32>
    %769 = vector.broadcast %756 : vector<1x1xf32> to vector<8x32xf32>
    %770 = arith.subf %747, %769 : vector<8x32xf32>
    %cst_120 = arith.constant 9.99999974E-6 : f32
    %771 = vector.broadcast %cst_120 : f32 to vector<1x1xf32>
    %772 = arith.addf %768, %771 : vector<1x1xf32>
    %773 = math.rsqrt %772 : vector<1x1xf32>
    %774 = vector.broadcast %773 : vector<1x1xf32> to vector<8x32xf32>
    %775 = arith.mulf %770, %774 : vector<8x32xf32>
    %776 = vector.extract_strided_slice %653 {offsets = [0, 2], sizes = [1, 1], strides = [1, 1]} : vector<1x8xf32> to vector<1x1xf32>
    %777 = vector.broadcast %776 : vector<1x1xf32> to vector<8x32xf32>
    %778 = arith.mulf %775, %777 : vector<8x32xf32>
    %779 = vector.extract_strided_slice %654 {offsets = [0, 2], sizes = [1, 1], strides = [1, 1]} : vector<1x8xf32> to vector<1x1xf32>
    %780 = vector.broadcast %779 : vector<1x1xf32> to vector<8x32xf32>
    %781 = arith.addf %778, %780 : vector<8x32xf32>
    %cst_121 = arith.constant 0.000000e+00 : f32
    %782 = vector.broadcast %cst_121 : f32 to vector<8x32xf32>
    %783 = arith.maximumf %781, %782 : vector<8x32xf32>
    %784 = vector.broadcast %655 : vector<1x32xf32> to vector<8x32xf32>
    %785 = arith.mulf %783, %784 : vector<8x32xf32>
    %cst_122 = arith.constant dense<0.000000e+00> : vector<8xf32>
    %786 = vector.multi_reduction <add>, %785, %cst_122 [1] : vector<8x32xf32> to vector<8xf32>
    %787 = vector.shape_cast %786 : vector<8xf32> to vector<8x1xf32>
    %788 = vector.extract_strided_slice %659 {offsets = [24, 0], sizes = [8, 32], strides = [1, 1]} : vector<64x32xf32> to vector<8x32xf32>
    %789 = vector.broadcast %664 : vector<8x1xf32> to vector<8x32xf32>
    %790 = arith.mulf %788, %789 : vector<8x32xf32>
    %791 = vector.shape_cast %790 : vector<8x32xf32> to vector<1x8x32xf32>
    %cst_123 = arith.constant dense<0.000000e+00> : vector<1xf32>
    %792 = vector.multi_reduction <add>, %791, %cst_123 [1, 2] : vector<1x8x32xf32> to vector<1xf32>
    %793 = vector.shape_cast %792 : vector<1xf32> to vector<1x1x1xf32>
    %794 = vector.extract %793[0, 0, 0] : f32 from vector<1x1x1xf32>
    %795 = vector.broadcast %794 : f32 to vector<1x1xf32>
    %cst_124 = arith.constant 1.920000e+02 : f32
    %796 = vector.broadcast %cst_124 : f32 to vector<1x1xf32>
    %797 = arith.divf %795, %796 : vector<1x1xf32>
    %798 = vector.broadcast %797 : vector<1x1xf32> to vector<8x32xf32>
    %799 = arith.subf %788, %798 : vector<8x32xf32>
    %800 = vector.broadcast %664 : vector<8x1xf32> to vector<8x32xf32>
    %801 = arith.mulf %799, %800 : vector<8x32xf32>
    %802 = arith.mulf %801, %801 : vector<8x32xf32>
    %803 = vector.shape_cast %802 : vector<8x32xf32> to vector<1x8x32xf32>
    %cst_125 = arith.constant dense<0.000000e+00> : vector<1xf32>
    %804 = vector.multi_reduction <add>, %803, %cst_125 [1, 2] : vector<1x8x32xf32> to vector<1xf32>
    %805 = vector.shape_cast %804 : vector<1xf32> to vector<1x1x1xf32>
    %806 = vector.extract %805[0, 0, 0] : f32 from vector<1x1x1xf32>
    %807 = vector.broadcast %806 : f32 to vector<1x1xf32>
    %cst_126 = arith.constant 1.920000e+02 : f32
    %808 = vector.broadcast %cst_126 : f32 to vector<1x1xf32>
    %809 = arith.divf %807, %808 : vector<1x1xf32>
    %810 = vector.broadcast %797 : vector<1x1xf32> to vector<8x32xf32>
    %811 = arith.subf %788, %810 : vector<8x32xf32>
    %cst_127 = arith.constant 9.99999974E-6 : f32
    %812 = vector.broadcast %cst_127 : f32 to vector<1x1xf32>
    %813 = arith.addf %809, %812 : vector<1x1xf32>
    %814 = math.rsqrt %813 : vector<1x1xf32>
    %815 = vector.broadcast %814 : vector<1x1xf32> to vector<8x32xf32>
    %816 = arith.mulf %811, %815 : vector<8x32xf32>
    %817 = vector.extract_strided_slice %653 {offsets = [0, 3], sizes = [1, 1], strides = [1, 1]} : vector<1x8xf32> to vector<1x1xf32>
    %818 = vector.broadcast %817 : vector<1x1xf32> to vector<8x32xf32>
    %819 = arith.mulf %816, %818 : vector<8x32xf32>
    %820 = vector.extract_strided_slice %654 {offsets = [0, 3], sizes = [1, 1], strides = [1, 1]} : vector<1x8xf32> to vector<1x1xf32>
    %821 = vector.broadcast %820 : vector<1x1xf32> to vector<8x32xf32>
    %822 = arith.addf %819, %821 : vector<8x32xf32>
    %cst_128 = arith.constant 0.000000e+00 : f32
    %823 = vector.broadcast %cst_128 : f32 to vector<8x32xf32>
    %824 = arith.maximumf %822, %823 : vector<8x32xf32>
    %825 = vector.broadcast %655 : vector<1x32xf32> to vector<8x32xf32>
    %826 = arith.mulf %824, %825 : vector<8x32xf32>
    %cst_129 = arith.constant dense<0.000000e+00> : vector<8xf32>
    %827 = vector.multi_reduction <add>, %826, %cst_129 [1] : vector<8x32xf32> to vector<8xf32>
    %828 = vector.shape_cast %827 : vector<8xf32> to vector<8x1xf32>
    %829 = vector.extract_strided_slice %659 {offsets = [32, 0], sizes = [8, 32], strides = [1, 1]} : vector<64x32xf32> to vector<8x32xf32>
    %830 = vector.broadcast %664 : vector<8x1xf32> to vector<8x32xf32>
    %831 = arith.mulf %829, %830 : vector<8x32xf32>
    %832 = vector.shape_cast %831 : vector<8x32xf32> to vector<1x8x32xf32>
    %cst_130 = arith.constant dense<0.000000e+00> : vector<1xf32>
    %833 = vector.multi_reduction <add>, %832, %cst_130 [1, 2] : vector<1x8x32xf32> to vector<1xf32>
    %834 = vector.shape_cast %833 : vector<1xf32> to vector<1x1x1xf32>
    %835 = vector.extract %834[0, 0, 0] : f32 from vector<1x1x1xf32>
    %836 = vector.broadcast %835 : f32 to vector<1x1xf32>
    %cst_131 = arith.constant 1.920000e+02 : f32
    %837 = vector.broadcast %cst_131 : f32 to vector<1x1xf32>
    %838 = arith.divf %836, %837 : vector<1x1xf32>
    %839 = vector.broadcast %838 : vector<1x1xf32> to vector<8x32xf32>
    %840 = arith.subf %829, %839 : vector<8x32xf32>
    %841 = vector.broadcast %664 : vector<8x1xf32> to vector<8x32xf32>
    %842 = arith.mulf %840, %841 : vector<8x32xf32>
    %843 = arith.mulf %842, %842 : vector<8x32xf32>
    %844 = vector.shape_cast %843 : vector<8x32xf32> to vector<1x8x32xf32>
    %cst_132 = arith.constant dense<0.000000e+00> : vector<1xf32>
    %845 = vector.multi_reduction <add>, %844, %cst_132 [1, 2] : vector<1x8x32xf32> to vector<1xf32>
    %846 = vector.shape_cast %845 : vector<1xf32> to vector<1x1x1xf32>
    %847 = vector.extract %846[0, 0, 0] : f32 from vector<1x1x1xf32>
    %848 = vector.broadcast %847 : f32 to vector<1x1xf32>
    %cst_133 = arith.constant 1.920000e+02 : f32
    %849 = vector.broadcast %cst_133 : f32 to vector<1x1xf32>
    %850 = arith.divf %848, %849 : vector<1x1xf32>
    %851 = vector.broadcast %838 : vector<1x1xf32> to vector<8x32xf32>
    %852 = arith.subf %829, %851 : vector<8x32xf32>
    %cst_134 = arith.constant 9.99999974E-6 : f32
    %853 = vector.broadcast %cst_134 : f32 to vector<1x1xf32>
    %854 = arith.addf %850, %853 : vector<1x1xf32>
    %855 = math.rsqrt %854 : vector<1x1xf32>
    %856 = vector.broadcast %855 : vector<1x1xf32> to vector<8x32xf32>
    %857 = arith.mulf %852, %856 : vector<8x32xf32>
    %858 = vector.extract_strided_slice %653 {offsets = [0, 4], sizes = [1, 1], strides = [1, 1]} : vector<1x8xf32> to vector<1x1xf32>
    %859 = vector.broadcast %858 : vector<1x1xf32> to vector<8x32xf32>
    %860 = arith.mulf %857, %859 : vector<8x32xf32>
    %861 = vector.extract_strided_slice %654 {offsets = [0, 4], sizes = [1, 1], strides = [1, 1]} : vector<1x8xf32> to vector<1x1xf32>
    %862 = vector.broadcast %861 : vector<1x1xf32> to vector<8x32xf32>
    %863 = arith.addf %860, %862 : vector<8x32xf32>
    %cst_135 = arith.constant 0.000000e+00 : f32
    %864 = vector.broadcast %cst_135 : f32 to vector<8x32xf32>
    %865 = arith.maximumf %863, %864 : vector<8x32xf32>
    %866 = vector.broadcast %655 : vector<1x32xf32> to vector<8x32xf32>
    %867 = arith.mulf %865, %866 : vector<8x32xf32>
    %cst_136 = arith.constant dense<0.000000e+00> : vector<8xf32>
    %868 = vector.multi_reduction <add>, %867, %cst_136 [1] : vector<8x32xf32> to vector<8xf32>
    %869 = vector.shape_cast %868 : vector<8xf32> to vector<8x1xf32>
    %870 = vector.extract_strided_slice %659 {offsets = [40, 0], sizes = [8, 32], strides = [1, 1]} : vector<64x32xf32> to vector<8x32xf32>
    %871 = vector.broadcast %664 : vector<8x1xf32> to vector<8x32xf32>
    %872 = arith.mulf %870, %871 : vector<8x32xf32>
    %873 = vector.shape_cast %872 : vector<8x32xf32> to vector<1x8x32xf32>
    %cst_137 = arith.constant dense<0.000000e+00> : vector<1xf32>
    %874 = vector.multi_reduction <add>, %873, %cst_137 [1, 2] : vector<1x8x32xf32> to vector<1xf32>
    %875 = vector.shape_cast %874 : vector<1xf32> to vector<1x1x1xf32>
    %876 = vector.extract %875[0, 0, 0] : f32 from vector<1x1x1xf32>
    %877 = vector.broadcast %876 : f32 to vector<1x1xf32>
    %cst_138 = arith.constant 1.920000e+02 : f32
    %878 = vector.broadcast %cst_138 : f32 to vector<1x1xf32>
    %879 = arith.divf %877, %878 : vector<1x1xf32>
    %880 = vector.broadcast %879 : vector<1x1xf32> to vector<8x32xf32>
    %881 = arith.subf %870, %880 : vector<8x32xf32>
    %882 = vector.broadcast %664 : vector<8x1xf32> to vector<8x32xf32>
    %883 = arith.mulf %881, %882 : vector<8x32xf32>
    %884 = arith.mulf %883, %883 : vector<8x32xf32>
    %885 = vector.shape_cast %884 : vector<8x32xf32> to vector<1x8x32xf32>
    %cst_139 = arith.constant dense<0.000000e+00> : vector<1xf32>
    %886 = vector.multi_reduction <add>, %885, %cst_139 [1, 2] : vector<1x8x32xf32> to vector<1xf32>
    %887 = vector.shape_cast %886 : vector<1xf32> to vector<1x1x1xf32>
    %888 = vector.extract %887[0, 0, 0] : f32 from vector<1x1x1xf32>
    %889 = vector.broadcast %888 : f32 to vector<1x1xf32>
    %cst_140 = arith.constant 1.920000e+02 : f32
    %890 = vector.broadcast %cst_140 : f32 to vector<1x1xf32>
    %891 = arith.divf %889, %890 : vector<1x1xf32>
    %892 = vector.broadcast %879 : vector<1x1xf32> to vector<8x32xf32>
    %893 = arith.subf %870, %892 : vector<8x32xf32>
    %cst_141 = arith.constant 9.99999974E-6 : f32
    %894 = vector.broadcast %cst_141 : f32 to vector<1x1xf32>
    %895 = arith.addf %891, %894 : vector<1x1xf32>
    %896 = math.rsqrt %895 : vector<1x1xf32>
    %897 = vector.broadcast %896 : vector<1x1xf32> to vector<8x32xf32>
    %898 = arith.mulf %893, %897 : vector<8x32xf32>
    %899 = vector.extract_strided_slice %653 {offsets = [0, 5], sizes = [1, 1], strides = [1, 1]} : vector<1x8xf32> to vector<1x1xf32>
    %900 = vector.broadcast %899 : vector<1x1xf32> to vector<8x32xf32>
    %901 = arith.mulf %898, %900 : vector<8x32xf32>
    %902 = vector.extract_strided_slice %654 {offsets = [0, 5], sizes = [1, 1], strides = [1, 1]} : vector<1x8xf32> to vector<1x1xf32>
    %903 = vector.broadcast %902 : vector<1x1xf32> to vector<8x32xf32>
    %904 = arith.addf %901, %903 : vector<8x32xf32>
    %cst_142 = arith.constant 0.000000e+00 : f32
    %905 = vector.broadcast %cst_142 : f32 to vector<8x32xf32>
    %906 = arith.maximumf %904, %905 : vector<8x32xf32>
    %907 = vector.broadcast %655 : vector<1x32xf32> to vector<8x32xf32>
    %908 = arith.mulf %906, %907 : vector<8x32xf32>
    %cst_143 = arith.constant dense<0.000000e+00> : vector<8xf32>
    %909 = vector.multi_reduction <add>, %908, %cst_143 [1] : vector<8x32xf32> to vector<8xf32>
    %910 = vector.shape_cast %909 : vector<8xf32> to vector<8x1xf32>
    %911 = vector.extract_strided_slice %659 {offsets = [48, 0], sizes = [8, 32], strides = [1, 1]} : vector<64x32xf32> to vector<8x32xf32>
    %912 = vector.broadcast %664 : vector<8x1xf32> to vector<8x32xf32>
    %913 = arith.mulf %911, %912 : vector<8x32xf32>
    %914 = vector.shape_cast %913 : vector<8x32xf32> to vector<1x8x32xf32>
    %cst_144 = arith.constant dense<0.000000e+00> : vector<1xf32>
    %915 = vector.multi_reduction <add>, %914, %cst_144 [1, 2] : vector<1x8x32xf32> to vector<1xf32>
    %916 = vector.shape_cast %915 : vector<1xf32> to vector<1x1x1xf32>
    %917 = vector.extract %916[0, 0, 0] : f32 from vector<1x1x1xf32>
    %918 = vector.broadcast %917 : f32 to vector<1x1xf32>
    %cst_145 = arith.constant 1.920000e+02 : f32
    %919 = vector.broadcast %cst_145 : f32 to vector<1x1xf32>
    %920 = arith.divf %918, %919 : vector<1x1xf32>
    %921 = vector.broadcast %920 : vector<1x1xf32> to vector<8x32xf32>
    %922 = arith.subf %911, %921 : vector<8x32xf32>
    %923 = vector.broadcast %664 : vector<8x1xf32> to vector<8x32xf32>
    %924 = arith.mulf %922, %923 : vector<8x32xf32>
    %925 = arith.mulf %924, %924 : vector<8x32xf32>
    %926 = vector.shape_cast %925 : vector<8x32xf32> to vector<1x8x32xf32>
    %cst_146 = arith.constant dense<0.000000e+00> : vector<1xf32>
    %927 = vector.multi_reduction <add>, %926, %cst_146 [1, 2] : vector<1x8x32xf32> to vector<1xf32>
    %928 = vector.shape_cast %927 : vector<1xf32> to vector<1x1x1xf32>
    %929 = vector.extract %928[0, 0, 0] : f32 from vector<1x1x1xf32>
    %930 = vector.broadcast %929 : f32 to vector<1x1xf32>
    %cst_147 = arith.constant 1.920000e+02 : f32
    %931 = vector.broadcast %cst_147 : f32 to vector<1x1xf32>
    %932 = arith.divf %930, %931 : vector<1x1xf32>
    %933 = vector.broadcast %920 : vector<1x1xf32> to vector<8x32xf32>
    %934 = arith.subf %911, %933 : vector<8x32xf32>
    %cst_148 = arith.constant 9.99999974E-6 : f32
    %935 = vector.broadcast %cst_148 : f32 to vector<1x1xf32>
    %936 = arith.addf %932, %935 : vector<1x1xf32>
    %937 = math.rsqrt %936 : vector<1x1xf32>
    %938 = vector.broadcast %937 : vector<1x1xf32> to vector<8x32xf32>
    %939 = arith.mulf %934, %938 : vector<8x32xf32>
    %940 = vector.extract_strided_slice %653 {offsets = [0, 6], sizes = [1, 1], strides = [1, 1]} : vector<1x8xf32> to vector<1x1xf32>
    %941 = vector.broadcast %940 : vector<1x1xf32> to vector<8x32xf32>
    %942 = arith.mulf %939, %941 : vector<8x32xf32>
    %943 = vector.extract_strided_slice %654 {offsets = [0, 6], sizes = [1, 1], strides = [1, 1]} : vector<1x8xf32> to vector<1x1xf32>
    %944 = vector.broadcast %943 : vector<1x1xf32> to vector<8x32xf32>
    %945 = arith.addf %942, %944 : vector<8x32xf32>
    %cst_149 = arith.constant 0.000000e+00 : f32
    %946 = vector.broadcast %cst_149 : f32 to vector<8x32xf32>
    %947 = arith.maximumf %945, %946 : vector<8x32xf32>
    %948 = vector.broadcast %655 : vector<1x32xf32> to vector<8x32xf32>
    %949 = arith.mulf %947, %948 : vector<8x32xf32>
    %cst_150 = arith.constant dense<0.000000e+00> : vector<8xf32>
    %950 = vector.multi_reduction <add>, %949, %cst_150 [1] : vector<8x32xf32> to vector<8xf32>
    %951 = vector.shape_cast %950 : vector<8xf32> to vector<8x1xf32>
    %952 = vector.extract_strided_slice %659 {offsets = [56, 0], sizes = [8, 32], strides = [1, 1]} : vector<64x32xf32> to vector<8x32xf32>
    %953 = vector.broadcast %664 : vector<8x1xf32> to vector<8x32xf32>
    %954 = arith.mulf %952, %953 : vector<8x32xf32>
    %955 = vector.shape_cast %954 : vector<8x32xf32> to vector<1x8x32xf32>
    %cst_151 = arith.constant dense<0.000000e+00> : vector<1xf32>
    %956 = vector.multi_reduction <add>, %955, %cst_151 [1, 2] : vector<1x8x32xf32> to vector<1xf32>
    %957 = vector.shape_cast %956 : vector<1xf32> to vector<1x1x1xf32>
    %958 = vector.extract %957[0, 0, 0] : f32 from vector<1x1x1xf32>
    %959 = vector.broadcast %958 : f32 to vector<1x1xf32>
    %cst_152 = arith.constant 1.920000e+02 : f32
    %960 = vector.broadcast %cst_152 : f32 to vector<1x1xf32>
    %961 = arith.divf %959, %960 : vector<1x1xf32>
    %962 = vector.broadcast %961 : vector<1x1xf32> to vector<8x32xf32>
    %963 = arith.subf %952, %962 : vector<8x32xf32>
    %964 = vector.broadcast %664 : vector<8x1xf32> to vector<8x32xf32>
    %965 = arith.mulf %963, %964 : vector<8x32xf32>
    %966 = arith.mulf %965, %965 : vector<8x32xf32>
    %967 = vector.shape_cast %966 : vector<8x32xf32> to vector<1x8x32xf32>
    %cst_153 = arith.constant dense<0.000000e+00> : vector<1xf32>
    %968 = vector.multi_reduction <add>, %967, %cst_153 [1, 2] : vector<1x8x32xf32> to vector<1xf32>
    %969 = vector.shape_cast %968 : vector<1xf32> to vector<1x1x1xf32>
    %970 = vector.extract %969[0, 0, 0] : f32 from vector<1x1x1xf32>
    %971 = vector.broadcast %970 : f32 to vector<1x1xf32>
    %cst_154 = arith.constant 1.920000e+02 : f32
    %972 = vector.broadcast %cst_154 : f32 to vector<1x1xf32>
    %973 = arith.divf %971, %972 : vector<1x1xf32>
    %974 = vector.broadcast %961 : vector<1x1xf32> to vector<8x32xf32>
    %975 = arith.subf %952, %974 : vector<8x32xf32>
    %cst_155 = arith.constant 9.99999974E-6 : f32
    %976 = vector.broadcast %cst_155 : f32 to vector<1x1xf32>
    %977 = arith.addf %973, %976 : vector<1x1xf32>
    %978 = math.rsqrt %977 : vector<1x1xf32>
    %979 = vector.broadcast %978 : vector<1x1xf32> to vector<8x32xf32>
    %980 = arith.mulf %975, %979 : vector<8x32xf32>
    %981 = vector.extract_strided_slice %653 {offsets = [0, 7], sizes = [1, 1], strides = [1, 1]} : vector<1x8xf32> to vector<1x1xf32>
    %982 = vector.broadcast %981 : vector<1x1xf32> to vector<8x32xf32>
    %983 = arith.mulf %980, %982 : vector<8x32xf32>
    %984 = vector.extract_strided_slice %654 {offsets = [0, 7], sizes = [1, 1], strides = [1, 1]} : vector<1x8xf32> to vector<1x1xf32>
    %985 = vector.broadcast %984 : vector<1x1xf32> to vector<8x32xf32>
    %986 = arith.addf %983, %985 : vector<8x32xf32>
    %cst_156 = arith.constant 0.000000e+00 : f32
    %987 = vector.broadcast %cst_156 : f32 to vector<8x32xf32>
    %988 = arith.maximumf %986, %987 : vector<8x32xf32>
    %989 = vector.broadcast %655 : vector<1x32xf32> to vector<8x32xf32>
    %990 = arith.mulf %988, %989 : vector<8x32xf32>
    %cst_157 = arith.constant dense<0.000000e+00> : vector<8xf32>
    %991 = vector.multi_reduction <add>, %990, %cst_157 [1] : vector<8x32xf32> to vector<8xf32>
    %992 = vector.shape_cast %991 : vector<8xf32> to vector<8x1xf32>
    %993 = tpu.concatenate %705, %746, %787, %828, %869, %910, %951, %992 in 1 : vector<8x1xf32>, vector<8x1xf32>, vector<8x1xf32>, vector<8x1xf32>, vector<8x1xf32>, vector<8x1xf32>, vector<8x1xf32>, vector<8x1xf32> -> vector<8x8xf32>
    %cst_158 = arith.constant dense<0xFF800000> : vector<8xf32>
    %994 = vector.multi_reduction <maximumf>, %993, %cst_158 [1] : vector<8x8xf32> to vector<8xf32>
    %995 = vector.shape_cast %994 : vector<8xf32> to vector<8x1xf32>
    %996 = vector.broadcast %995 : vector<8x1xf32> to vector<8x8xf32>
    %997 = arith.subf %993, %996 : vector<8x8xf32>
    %998 = math.exp %997 : vector<8x8xf32>
    %cst_159 = arith.constant dense<0.000000e+00> : vector<8xf32>
    %999 = vector.multi_reduction <add>, %998, %cst_159 [1] : vector<8x8xf32> to vector<8xf32>
    %1000 = vector.shape_cast %999 : vector<8xf32> to vector<8x1xf32>
    %1001 = vector.broadcast %1000 : vector<8x1xf32> to vector<8x8xf32>
    %1002 = arith.divf %998, %1001 : vector<8x8xf32>
    %cst_160 = arith.constant 0.000000e+00 : f32
    %1003 = vector.broadcast %cst_160 : f32 to vector<8x64xf32>
    %1004 = vector.extract_strided_slice %1002 {offsets = [0, 0], sizes = [8, 1], strides = [1, 1]} : vector<8x8xf32> to vector<8x1xf32>
    %1005 = vector.broadcast %1004 : vector<8x1xf32> to vector<8x64xf32>
    %1006 = arith.mulf %1005, %614 : vector<8x64xf32>
    %1007 = arith.addf %1003, %1006 : vector<8x64xf32>
    %1008 = vector.extract_strided_slice %1002 {offsets = [0, 1], sizes = [8, 1], strides = [1, 1]} : vector<8x8xf32> to vector<8x1xf32>
    %1009 = vector.broadcast %1008 : vector<8x1xf32> to vector<8x64xf32>
    %1010 = arith.mulf %1009, %619 : vector<8x64xf32>
    %1011 = arith.addf %1007, %1010 : vector<8x64xf32>
    %1012 = vector.extract_strided_slice %1002 {offsets = [0, 2], sizes = [8, 1], strides = [1, 1]} : vector<8x8xf32> to vector<8x1xf32>
    %1013 = vector.broadcast %1012 : vector<8x1xf32> to vector<8x64xf32>
    %1014 = arith.mulf %1013, %624 : vector<8x64xf32>
    %1015 = arith.addf %1011, %1014 : vector<8x64xf32>
    %1016 = vector.extract_strided_slice %1002 {offsets = [0, 3], sizes = [8, 1], strides = [1, 1]} : vector<8x8xf32> to vector<8x1xf32>
    %1017 = vector.broadcast %1016 : vector<8x1xf32> to vector<8x64xf32>
    %1018 = arith.mulf %1017, %629 : vector<8x64xf32>
    %1019 = arith.addf %1015, %1018 : vector<8x64xf32>
    %1020 = vector.extract_strided_slice %1002 {offsets = [0, 4], sizes = [8, 1], strides = [1, 1]} : vector<8x8xf32> to vector<8x1xf32>
    %1021 = vector.broadcast %1020 : vector<8x1xf32> to vector<8x64xf32>
    %1022 = arith.mulf %1021, %634 : vector<8x64xf32>
    %1023 = arith.addf %1019, %1022 : vector<8x64xf32>
    %1024 = vector.extract_strided_slice %1002 {offsets = [0, 5], sizes = [8, 1], strides = [1, 1]} : vector<8x8xf32> to vector<8x1xf32>
    %1025 = vector.broadcast %1024 : vector<8x1xf32> to vector<8x64xf32>
    %1026 = arith.mulf %1025, %639 : vector<8x64xf32>
    %1027 = arith.addf %1023, %1026 : vector<8x64xf32>
    %1028 = vector.extract_strided_slice %1002 {offsets = [0, 6], sizes = [8, 1], strides = [1, 1]} : vector<8x8xf32> to vector<8x1xf32>
    %1029 = vector.broadcast %1028 : vector<8x1xf32> to vector<8x64xf32>
    %1030 = arith.mulf %1029, %644 : vector<8x64xf32>
    %1031 = arith.addf %1027, %1030 : vector<8x64xf32>
    %1032 = vector.extract_strided_slice %1002 {offsets = [0, 7], sizes = [8, 1], strides = [1, 1]} : vector<8x8xf32> to vector<8x1xf32>
    %1033 = vector.broadcast %1032 : vector<8x1xf32> to vector<8x64xf32>
    %1034 = arith.mulf %1033, %649 : vector<8x64xf32>
    %1035 = arith.addf %1031, %1034 : vector<8x64xf32>
    %c0_161 = arith.constant 0 : index
    %c0_162 = arith.constant 0 : index
    %1036 = vector.load %arg11[%c0_161, %c0_162] : memref<8x64xf32, #tpu.memory_space<vmem>>, vector<8x64xf32>
    tpu.vector_store %arg11[%c0_161, %c0_162], %1035 {strides = array<i32>} : memref<8x64xf32, #tpu.memory_space<vmem>>, vector<8x64xf32>,
    return
  }
}

module attributes {stable_mosaic.version = 11 : i64} {
  func.func @kernel(%arg0: memref<24x64xbf16, #tpu.memory_space<vmem>>, %arg1: memref<8x1xi32, #tpu.memory_space<vmem>>, %arg2: memref<3x64x64xbf16, #tpu.memory_space<vmem>>, %arg3: memref<3x64x64xbf16, #tpu.memory_space<vmem>>, %arg4: memref<3x64xf32, #tpu.memory_space<vmem>>, %arg5: memref<3x64xf32, #tpu.memory_space<vmem>>, %arg6: memref<64x32xbf16, #tpu.memory_space<vmem>>, %arg7: memref<1x32xf32, #tpu.memory_space<vmem>>, %arg8: memref<1x3xf32, #tpu.memory_space<vmem>>, %arg9: memref<1x3xf32, #tpu.memory_space<vmem>>, %arg10: memref<1x32xf32, #tpu.memory_space<vmem>>, %arg11: memref<64x5xbf16, #tpu.memory_space<vmem>>, %arg12: memref<1x5xf32, #tpu.memory_space<vmem>>, %arg13: memref<8x5xf32, #tpu.memory_space<vmem>>) attributes {dimension_semantics = [], scalar_prefetch = 0 : i64, scratch_operands = 0 : i64, tpu.core_type = #tpu.core_type<tc>} {
    %c0 = arith.constant 0 : index
    %c0_0 = arith.constant 0 : index
    %0 = vector.load %arg0[%c0, %c0_0] : memref<24x64xbf16, #tpu.memory_space<vmem>>, vector<24x64xbf16>
    %c0_1 = arith.constant 0 : index
    %c0_2 = arith.constant 0 : index
    %1 = vector.load %arg1[%c0_1, %c0_2] : memref<8x1xi32, #tpu.memory_space<vmem>>, vector<8x1xi32>
    %c0_3 = arith.constant 0 : index
    %c0_4 = arith.constant 0 : index
    %2 = vector.load %arg4[%c0_3, %c0_4] : memref<3x64xf32, #tpu.memory_space<vmem>>, vector<3x64xf32>
    %c0_5 = arith.constant 0 : index
    %c0_6 = arith.constant 0 : index
    %3 = vector.load %arg5[%c0_5, %c0_6] : memref<3x64xf32, #tpu.memory_space<vmem>>, vector<3x64xf32>
    %4 = tpu.iota {dimensions = array<i32: 1>} : vector<1x64xi32>
    %c32_i32 = arith.constant 32 : i32
    %5 = vector.broadcast %c32_i32 : i32 to vector<1x64xi32>
    %6 = arith.cmpi slt, %4, %5 : vector<1x64xi32>
    %7 = arith.extui %6 : vector<1x64xi1> to vector<1x64xi32>
    %8 = arith.sitofp %7 : vector<1x64xi32> to vector<1x64xf32>
    %cst = arith.constant 1.000000e+00 : f32
    %9 = vector.broadcast %cst : f32 to vector<1x64xf32>
    %10 = arith.subf %9, %8 : vector<1x64xf32>
    %c0_7 = arith.constant 0 : index
    %c0_8 = arith.constant 0 : index
    %c0_9 = arith.constant 0 : index
    %11 = vector.load %arg2[%c0_7, %c0_8, %c0_9] : memref<3x64x64xbf16, #tpu.memory_space<vmem>>, vector<1x64x64xbf16>
    %12 = vector.shape_cast %11 : vector<1x64x64xbf16> to vector<64x64xbf16>
    %cst_10 = arith.constant dense<0.000000e+00> : vector<24x64xf32>
    %13 = tpu.matmul %0, %12, %cst_10 {dimension_numbers = #tpu.dot_dimension_numbers<[1], [0], [0], [1], [0, 0, 1, 1], [], []>} : vector<24x64xbf16>, vector<64x64xbf16>, vector<24x64xf32> -> vector<24x64xf32>
    %14 = vector.extract_strided_slice %2 {offsets = [0, 0], sizes = [1, 64], strides = [1, 1]} : vector<3x64xf32> to vector<1x64xf32>
    %15 = vector.broadcast %14 : vector<1x64xf32> to vector<24x64xf32>
    %16 = arith.addf %13, %15 : vector<24x64xf32>
    %c1 = arith.constant 1 : index
    %c0_11 = arith.constant 0 : index
    %c0_12 = arith.constant 0 : index
    %17 = vector.load %arg2[%c1, %c0_11, %c0_12] : memref<3x64x64xbf16, #tpu.memory_space<vmem>>, vector<1x64x64xbf16>
    %18 = vector.shape_cast %17 : vector<1x64x64xbf16> to vector<64x64xbf16>
    %cst_13 = arith.constant dense<0.000000e+00> : vector<24x64xf32>
    %19 = tpu.matmul %0, %18, %cst_13 {dimension_numbers = #tpu.dot_dimension_numbers<[1], [0], [0], [1], [0, 0, 1, 1], [], []>} : vector<24x64xbf16>, vector<64x64xbf16>, vector<24x64xf32> -> vector<24x64xf32>
    %20 = vector.extract_strided_slice %2 {offsets = [1, 0], sizes = [1, 64], strides = [1, 1]} : vector<3x64xf32> to vector<1x64xf32>
    %21 = vector.broadcast %20 : vector<1x64xf32> to vector<24x64xf32>
    %22 = arith.addf %19, %21 : vector<24x64xf32>
    %c2 = arith.constant 2 : index
    %c0_14 = arith.constant 0 : index
    %c0_15 = arith.constant 0 : index
    %23 = vector.load %arg2[%c2, %c0_14, %c0_15] : memref<3x64x64xbf16, #tpu.memory_space<vmem>>, vector<1x64x64xbf16>
    %24 = vector.shape_cast %23 : vector<1x64x64xbf16> to vector<64x64xbf16>
    %cst_16 = arith.constant dense<0.000000e+00> : vector<24x64xf32>
    %25 = tpu.matmul %0, %24, %cst_16 {dimension_numbers = #tpu.dot_dimension_numbers<[1], [0], [0], [1], [0, 0, 1, 1], [], []>} : vector<24x64xbf16>, vector<64x64xbf16>, vector<24x64xf32> -> vector<24x64xf32>
    %26 = vector.extract_strided_slice %2 {offsets = [2, 0], sizes = [1, 64], strides = [1, 1]} : vector<3x64xf32> to vector<1x64xf32>
    %27 = vector.broadcast %26 : vector<1x64xf32> to vector<24x64xf32>
    %28 = arith.addf %25, %27 : vector<24x64xf32>
    %c0_17 = arith.constant 0 : index
    %c0_18 = arith.constant 0 : index
    %c0_19 = arith.constant 0 : index
    %29 = vector.load %arg3[%c0_17, %c0_18, %c0_19] : memref<3x64x64xbf16, #tpu.memory_space<vmem>>, vector<1x64x64xbf16>
    %30 = vector.shape_cast %29 : vector<1x64x64xbf16> to vector<64x64xbf16>
    %c1_20 = arith.constant 1 : index
    %c0_21 = arith.constant 0 : index
    %c0_22 = arith.constant 0 : index
    %31 = vector.load %arg3[%c1_20, %c0_21, %c0_22] : memref<3x64x64xbf16, #tpu.memory_space<vmem>>, vector<1x64x64xbf16>
    %32 = vector.shape_cast %31 : vector<1x64x64xbf16> to vector<64x64xbf16>
    %c2_23 = arith.constant 2 : index
    %c0_24 = arith.constant 0 : index
    %c0_25 = arith.constant 0 : index
    %33 = vector.load %arg3[%c2_23, %c0_24, %c0_25] : memref<3x64x64xbf16, #tpu.memory_space<vmem>>, vector<1x64x64xbf16>
    %34 = vector.shape_cast %33 : vector<1x64x64xbf16> to vector<64x64xbf16>
    %35 = vector.extract_strided_slice %3 {offsets = [0, 0], sizes = [1, 64], strides = [1, 1]} : vector<3x64xf32> to vector<1x64xf32>
    %36 = vector.extract_strided_slice %3 {offsets = [1, 0], sizes = [1, 64], strides = [1, 1]} : vector<3x64xf32> to vector<1x64xf32>
    %37 = vector.extract_strided_slice %3 {offsets = [2, 0], sizes = [1, 64], strides = [1, 1]} : vector<3x64xf32> to vector<1x64xf32>
    %cst_26 = arith.constant 0.000000e+00 : f32
    %38 = vector.broadcast %cst_26 : f32 to vector<8x64xf32>
    %39 = vector.extract_strided_slice %16 {offsets = [0, 0], sizes = [8, 64], strides = [1, 1]} : vector<24x64xf32> to vector<8x64xf32>
    %40 = vector.broadcast %8 : vector<1x64xf32> to vector<8x64xf32>
    %41 = arith.mulf %40, %39 : vector<8x64xf32>
    %42 = vector.extract_strided_slice %16 {offsets = [16, 0], sizes = [8, 64], strides = [1, 1]} : vector<24x64xf32> to vector<8x64xf32>
    %43 = vector.broadcast %10 : vector<1x64xf32> to vector<8x64xf32>
    %44 = arith.mulf %43, %42 : vector<8x64xf32>
    %45 = arith.addf %41, %44 : vector<8x64xf32>
    %46 = vector.extract_strided_slice %22 {offsets = [0, 0], sizes = [8, 64], strides = [1, 1]} : vector<24x64xf32> to vector<8x64xf32>
    %47 = vector.broadcast %8 : vector<1x64xf32> to vector<8x64xf32>
    %48 = arith.mulf %47, %46 : vector<8x64xf32>
    %49 = vector.extract_strided_slice %22 {offsets = [16, 0], sizes = [8, 64], strides = [1, 1]} : vector<24x64xf32> to vector<8x64xf32>
    %50 = vector.broadcast %10 : vector<1x64xf32> to vector<8x64xf32>
    %51 = arith.mulf %50, %49 : vector<8x64xf32>
    %52 = arith.addf %48, %51 : vector<8x64xf32>
    %53 = vector.extract_strided_slice %28 {offsets = [0, 0], sizes = [8, 64], strides = [1, 1]} : vector<24x64xf32> to vector<8x64xf32>
    %54 = vector.broadcast %8 : vector<1x64xf32> to vector<8x64xf32>
    %55 = arith.mulf %54, %53 : vector<8x64xf32>
    %56 = vector.extract_strided_slice %28 {offsets = [16, 0], sizes = [8, 64], strides = [1, 1]} : vector<24x64xf32> to vector<8x64xf32>
    %57 = vector.broadcast %10 : vector<1x64xf32> to vector<8x64xf32>
    %58 = arith.mulf %57, %56 : vector<8x64xf32>
    %59 = arith.addf %55, %58 : vector<8x64xf32>
    %60 = arith.truncf %38 : vector<8x64xf32> to vector<8x64xbf16>
    %cst_27 = arith.constant dense<0.000000e+00> : vector<8x64xf32>
    %61 = tpu.matmul %60, %30, %cst_27 {dimension_numbers = #tpu.dot_dimension_numbers<[1], [0], [0], [1], [0, 0, 1, 1], [], []>} : vector<8x64xbf16>, vector<64x64xbf16>, vector<8x64xf32> -> vector<8x64xf32>
    %62 = vector.broadcast %35 : vector<1x64xf32> to vector<8x64xf32>
    %63 = arith.addf %61, %62 : vector<8x64xf32>
    %cst_28 = arith.constant dense<0.000000e+00> : vector<8x64xf32>
    %64 = tpu.matmul %60, %32, %cst_28 {dimension_numbers = #tpu.dot_dimension_numbers<[1], [0], [0], [1], [0, 0, 1, 1], [], []>} : vector<8x64xbf16>, vector<64x64xbf16>, vector<8x64xf32> -> vector<8x64xf32>
    %65 = vector.broadcast %36 : vector<1x64xf32> to vector<8x64xf32>
    %66 = arith.addf %64, %65 : vector<8x64xf32>
    %cst_29 = arith.constant dense<0.000000e+00> : vector<8x64xf32>
    %67 = tpu.matmul %60, %34, %cst_29 {dimension_numbers = #tpu.dot_dimension_numbers<[1], [0], [0], [1], [0, 0, 1, 1], [], []>} : vector<8x64xbf16>, vector<64x64xbf16>, vector<8x64xf32> -> vector<8x64xf32>
    %68 = vector.broadcast %37 : vector<1x64xf32> to vector<8x64xf32>
    %69 = arith.addf %67, %68 : vector<8x64xf32>
    %70 = arith.addf %45, %63 : vector<8x64xf32>
    %71 = arith.negf %70 : vector<8x64xf32>
    %72 = math.exp %71 : vector<8x64xf32>
    %cst_30 = arith.constant 1.000000e+00 : f32
    %73 = vector.broadcast %cst_30 : f32 to vector<8x64xf32>
    %74 = arith.addf %73, %72 : vector<8x64xf32>
    %75 = arith.divf %73, %74 : vector<8x64xf32>
    %76 = arith.addf %52, %66 : vector<8x64xf32>
    %77 = arith.negf %76 : vector<8x64xf32>
    %78 = math.exp %77 : vector<8x64xf32>
    %cst_31 = arith.constant 1.000000e+00 : f32
    %79 = vector.broadcast %cst_31 : f32 to vector<8x64xf32>
    %80 = arith.addf %79, %78 : vector<8x64xf32>
    %81 = arith.divf %79, %80 : vector<8x64xf32>
    %82 = arith.mulf %75, %69 : vector<8x64xf32>
    %83 = arith.addf %59, %82 : vector<8x64xf32>
    %84 = math.tanh %83 : vector<8x64xf32>
    %cst_32 = arith.constant 1.000000e+00 : f32
    %85 = vector.broadcast %cst_32 : f32 to vector<8x64xf32>
    %86 = arith.subf %85, %81 : vector<8x64xf32>
    %87 = arith.mulf %86, %84 : vector<8x64xf32>
    %88 = arith.mulf %81, %38 : vector<8x64xf32>
    %89 = arith.addf %87, %88 : vector<8x64xf32>
    %c0_i32 = arith.constant 0 : i32
    %90 = vector.broadcast %c0_i32 : i32 to vector<8x1xi32>
    %91 = arith.cmpi sgt, %1, %90 : vector<8x1xi32>
    %92 = arith.extui %91 : vector<8x1xi1> to vector<8x1xi32>
    %93 = arith.sitofp %92 : vector<8x1xi32> to vector<8x1xf32>
    %c2_i32 = arith.constant 2 : i32
    %94 = vector.broadcast %c2_i32 : i32 to vector<8x1xi32>
    %95 = arith.cmpi sgt, %1, %94 : vector<8x1xi32>
    %96 = arith.extui %95 : vector<8x1xi1> to vector<8x1xi32>
    %97 = arith.sitofp %96 : vector<8x1xi32> to vector<8x1xf32>
    %98 = vector.broadcast %8 : vector<1x64xf32> to vector<8x64xf32>
    %99 = vector.broadcast %93 : vector<8x1xf32> to vector<8x64xf32>
    %100 = arith.mulf %98, %99 : vector<8x64xf32>
    %101 = vector.broadcast %10 : vector<1x64xf32> to vector<8x64xf32>
    %102 = vector.broadcast %97 : vector<8x1xf32> to vector<8x64xf32>
    %103 = arith.mulf %101, %102 : vector<8x64xf32>
    %104 = arith.addf %100, %103 : vector<8x64xf32>
    %105 = arith.mulf %104, %89 : vector<8x64xf32>
    %cst_33 = arith.constant 1.000000e+00 : f32
    %106 = vector.broadcast %cst_33 : f32 to vector<8x64xf32>
    %107 = arith.subf %106, %104 : vector<8x64xf32>
    %108 = arith.mulf %107, %38 : vector<8x64xf32>
    %109 = arith.addf %105, %108 : vector<8x64xf32>
    %110 = arith.mulf %104, %89 : vector<8x64xf32>
    %111 = vector.extract_strided_slice %16 {offsets = [8, 0], sizes = [8, 64], strides = [1, 1]} : vector<24x64xf32> to vector<8x64xf32>
    %112 = vector.broadcast %8 : vector<1x64xf32> to vector<8x64xf32>
    %113 = arith.mulf %112, %111 : vector<8x64xf32>
    %114 = vector.extract_strided_slice %16 {offsets = [8, 0], sizes = [8, 64], strides = [1, 1]} : vector<24x64xf32> to vector<8x64xf32>
    %115 = vector.broadcast %10 : vector<1x64xf32> to vector<8x64xf32>
    %116 = arith.mulf %115, %114 : vector<8x64xf32>
    %117 = arith.addf %113, %116 : vector<8x64xf32>
    %118 = vector.extract_strided_slice %22 {offsets = [8, 0], sizes = [8, 64], strides = [1, 1]} : vector<24x64xf32> to vector<8x64xf32>
    %119 = vector.broadcast %8 : vector<1x64xf32> to vector<8x64xf32>
    %120 = arith.mulf %119, %118 : vector<8x64xf32>
    %121 = vector.extract_strided_slice %22 {offsets = [8, 0], sizes = [8, 64], strides = [1, 1]} : vector<24x64xf32> to vector<8x64xf32>
    %122 = vector.broadcast %10 : vector<1x64xf32> to vector<8x64xf32>
    %123 = arith.mulf %122, %121 : vector<8x64xf32>
    %124 = arith.addf %120, %123 : vector<8x64xf32>
    %125 = vector.extract_strided_slice %28 {offsets = [8, 0], sizes = [8, 64], strides = [1, 1]} : vector<24x64xf32> to vector<8x64xf32>
    %126 = vector.broadcast %8 : vector<1x64xf32> to vector<8x64xf32>
    %127 = arith.mulf %126, %125 : vector<8x64xf32>
    %128 = vector.extract_strided_slice %28 {offsets = [8, 0], sizes = [8, 64], strides = [1, 1]} : vector<24x64xf32> to vector<8x64xf32>
    %129 = vector.broadcast %10 : vector<1x64xf32> to vector<8x64xf32>
    %130 = arith.mulf %129, %128 : vector<8x64xf32>
    %131 = arith.addf %127, %130 : vector<8x64xf32>
    %132 = arith.truncf %109 : vector<8x64xf32> to vector<8x64xbf16>
    %cst_34 = arith.constant dense<0.000000e+00> : vector<8x64xf32>
    %133 = tpu.matmul %132, %30, %cst_34 {dimension_numbers = #tpu.dot_dimension_numbers<[1], [0], [0], [1], [0, 0, 1, 1], [], []>} : vector<8x64xbf16>, vector<64x64xbf16>, vector<8x64xf32> -> vector<8x64xf32>
    %134 = vector.broadcast %35 : vector<1x64xf32> to vector<8x64xf32>
    %135 = arith.addf %133, %134 : vector<8x64xf32>
    %cst_35 = arith.constant dense<0.000000e+00> : vector<8x64xf32>
    %136 = tpu.matmul %132, %32, %cst_35 {dimension_numbers = #tpu.dot_dimension_numbers<[1], [0], [0], [1], [0, 0, 1, 1], [], []>} : vector<8x64xbf16>, vector<64x64xbf16>, vector<8x64xf32> -> vector<8x64xf32>
    %137 = vector.broadcast %36 : vector<1x64xf32> to vector<8x64xf32>
    %138 = arith.addf %136, %137 : vector<8x64xf32>
    %cst_36 = arith.constant dense<0.000000e+00> : vector<8x64xf32>
    %139 = tpu.matmul %132, %34, %cst_36 {dimension_numbers = #tpu.dot_dimension_numbers<[1], [0], [0], [1], [0, 0, 1, 1], [], []>} : vector<8x64xbf16>, vector<64x64xbf16>, vector<8x64xf32> -> vector<8x64xf32>
    %140 = vector.broadcast %37 : vector<1x64xf32> to vector<8x64xf32>
    %141 = arith.addf %139, %140 : vector<8x64xf32>
    %142 = arith.addf %117, %135 : vector<8x64xf32>
    %143 = arith.negf %142 : vector<8x64xf32>
    %144 = math.exp %143 : vector<8x64xf32>
    %cst_37 = arith.constant 1.000000e+00 : f32
    %145 = vector.broadcast %cst_37 : f32 to vector<8x64xf32>
    %146 = arith.addf %145, %144 : vector<8x64xf32>
    %147 = arith.divf %145, %146 : vector<8x64xf32>
    %148 = arith.addf %124, %138 : vector<8x64xf32>
    %149 = arith.negf %148 : vector<8x64xf32>
    %150 = math.exp %149 : vector<8x64xf32>
    %cst_38 = arith.constant 1.000000e+00 : f32
    %151 = vector.broadcast %cst_38 : f32 to vector<8x64xf32>
    %152 = arith.addf %151, %150 : vector<8x64xf32>
    %153 = arith.divf %151, %152 : vector<8x64xf32>
    %154 = arith.mulf %147, %141 : vector<8x64xf32>
    %155 = arith.addf %131, %154 : vector<8x64xf32>
    %156 = math.tanh %155 : vector<8x64xf32>
    %cst_39 = arith.constant 1.000000e+00 : f32
    %157 = vector.broadcast %cst_39 : f32 to vector<8x64xf32>
    %158 = arith.subf %157, %153 : vector<8x64xf32>
    %159 = arith.mulf %158, %156 : vector<8x64xf32>
    %160 = arith.mulf %153, %109 : vector<8x64xf32>
    %161 = arith.addf %159, %160 : vector<8x64xf32>
    %c1_i32 = arith.constant 1 : i32
    %162 = vector.broadcast %c1_i32 : i32 to vector<8x1xi32>
    %163 = arith.cmpi sgt, %1, %162 : vector<8x1xi32>
    %164 = arith.extui %163 : vector<8x1xi1> to vector<8x1xi32>
    %165 = arith.sitofp %164 : vector<8x1xi32> to vector<8x1xf32>
    %c1_i32_40 = arith.constant 1 : i32
    %166 = vector.broadcast %c1_i32_40 : i32 to vector<8x1xi32>
    %167 = arith.cmpi sgt, %1, %166 : vector<8x1xi32>
    %168 = arith.extui %167 : vector<8x1xi1> to vector<8x1xi32>
    %169 = arith.sitofp %168 : vector<8x1xi32> to vector<8x1xf32>
    %170 = vector.broadcast %8 : vector<1x64xf32> to vector<8x64xf32>
    %171 = vector.broadcast %165 : vector<8x1xf32> to vector<8x64xf32>
    %172 = arith.mulf %170, %171 : vector<8x64xf32>
    %173 = vector.broadcast %10 : vector<1x64xf32> to vector<8x64xf32>
    %174 = vector.broadcast %169 : vector<8x1xf32> to vector<8x64xf32>
    %175 = arith.mulf %173, %174 : vector<8x64xf32>
    %176 = arith.addf %172, %175 : vector<8x64xf32>
    %177 = arith.mulf %176, %161 : vector<8x64xf32>
    %cst_41 = arith.constant 1.000000e+00 : f32
    %178 = vector.broadcast %cst_41 : f32 to vector<8x64xf32>
    %179 = arith.subf %178, %176 : vector<8x64xf32>
    %180 = arith.mulf %179, %109 : vector<8x64xf32>
    %181 = arith.addf %177, %180 : vector<8x64xf32>
    %182 = arith.mulf %176, %161 : vector<8x64xf32>
    %183 = vector.extract_strided_slice %16 {offsets = [16, 0], sizes = [8, 64], strides = [1, 1]} : vector<24x64xf32> to vector<8x64xf32>
    %184 = vector.broadcast %8 : vector<1x64xf32> to vector<8x64xf32>
    %185 = arith.mulf %184, %183 : vector<8x64xf32>
    %186 = vector.extract_strided_slice %16 {offsets = [0, 0], sizes = [8, 64], strides = [1, 1]} : vector<24x64xf32> to vector<8x64xf32>
    %187 = vector.broadcast %10 : vector<1x64xf32> to vector<8x64xf32>
    %188 = arith.mulf %187, %186 : vector<8x64xf32>
    %189 = arith.addf %185, %188 : vector<8x64xf32>
    %190 = vector.extract_strided_slice %22 {offsets = [16, 0], sizes = [8, 64], strides = [1, 1]} : vector<24x64xf32> to vector<8x64xf32>
    %191 = vector.broadcast %8 : vector<1x64xf32> to vector<8x64xf32>
    %192 = arith.mulf %191, %190 : vector<8x64xf32>
    %193 = vector.extract_strided_slice %22 {offsets = [0, 0], sizes = [8, 64], strides = [1, 1]} : vector<24x64xf32> to vector<8x64xf32>
    %194 = vector.broadcast %10 : vector<1x64xf32> to vector<8x64xf32>
    %195 = arith.mulf %194, %193 : vector<8x64xf32>
    %196 = arith.addf %192, %195 : vector<8x64xf32>
    %197 = vector.extract_strided_slice %28 {offsets = [16, 0], sizes = [8, 64], strides = [1, 1]} : vector<24x64xf32> to vector<8x64xf32>
    %198 = vector.broadcast %8 : vector<1x64xf32> to vector<8x64xf32>
    %199 = arith.mulf %198, %197 : vector<8x64xf32>
    %200 = vector.extract_strided_slice %28 {offsets = [0, 0], sizes = [8, 64], strides = [1, 1]} : vector<24x64xf32> to vector<8x64xf32>
    %201 = vector.broadcast %10 : vector<1x64xf32> to vector<8x64xf32>
    %202 = arith.mulf %201, %200 : vector<8x64xf32>
    %203 = arith.addf %199, %202 : vector<8x64xf32>
    %204 = arith.truncf %181 : vector<8x64xf32> to vector<8x64xbf16>
    %cst_42 = arith.constant dense<0.000000e+00> : vector<8x64xf32>
    %205 = tpu.matmul %204, %30, %cst_42 {dimension_numbers = #tpu.dot_dimension_numbers<[1], [0], [0], [1], [0, 0, 1, 1], [], []>} : vector<8x64xbf16>, vector<64x64xbf16>, vector<8x64xf32> -> vector<8x64xf32>
    %206 = vector.broadcast %35 : vector<1x64xf32> to vector<8x64xf32>
    %207 = arith.addf %205, %206 : vector<8x64xf32>
    %cst_43 = arith.constant dense<0.000000e+00> : vector<8x64xf32>
    %208 = tpu.matmul %204, %32, %cst_43 {dimension_numbers = #tpu.dot_dimension_numbers<[1], [0], [0], [1], [0, 0, 1, 1], [], []>} : vector<8x64xbf16>, vector<64x64xbf16>, vector<8x64xf32> -> vector<8x64xf32>
    %209 = vector.broadcast %36 : vector<1x64xf32> to vector<8x64xf32>
    %210 = arith.addf %208, %209 : vector<8x64xf32>
    %cst_44 = arith.constant dense<0.000000e+00> : vector<8x64xf32>
    %211 = tpu.matmul %204, %34, %cst_44 {dimension_numbers = #tpu.dot_dimension_numbers<[1], [0], [0], [1], [0, 0, 1, 1], [], []>} : vector<8x64xbf16>, vector<64x64xbf16>, vector<8x64xf32> -> vector<8x64xf32>
    %212 = vector.broadcast %37 : vector<1x64xf32> to vector<8x64xf32>
    %213 = arith.addf %211, %212 : vector<8x64xf32>
    %214 = arith.addf %189, %207 : vector<8x64xf32>
    %215 = arith.negf %214 : vector<8x64xf32>
    %216 = math.exp %215 : vector<8x64xf32>
    %cst_45 = arith.constant 1.000000e+00 : f32
    %217 = vector.broadcast %cst_45 : f32 to vector<8x64xf32>
    %218 = arith.addf %217, %216 : vector<8x64xf32>
    %219 = arith.divf %217, %218 : vector<8x64xf32>
    %220 = arith.addf %196, %210 : vector<8x64xf32>
    %221 = arith.negf %220 : vector<8x64xf32>
    %222 = math.exp %221 : vector<8x64xf32>
    %cst_46 = arith.constant 1.000000e+00 : f32
    %223 = vector.broadcast %cst_46 : f32 to vector<8x64xf32>
    %224 = arith.addf %223, %222 : vector<8x64xf32>
    %225 = arith.divf %223, %224 : vector<8x64xf32>
    %226 = arith.mulf %219, %213 : vector<8x64xf32>
    %227 = arith.addf %203, %226 : vector<8x64xf32>
    %228 = math.tanh %227 : vector<8x64xf32>
    %cst_47 = arith.constant 1.000000e+00 : f32
    %229 = vector.broadcast %cst_47 : f32 to vector<8x64xf32>
    %230 = arith.subf %229, %225 : vector<8x64xf32>
    %231 = arith.mulf %230, %228 : vector<8x64xf32>
    %232 = arith.mulf %225, %181 : vector<8x64xf32>
    %233 = arith.addf %231, %232 : vector<8x64xf32>
    %c2_i32_48 = arith.constant 2 : i32
    %234 = vector.broadcast %c2_i32_48 : i32 to vector<8x1xi32>
    %235 = arith.cmpi sgt, %1, %234 : vector<8x1xi32>
    %236 = arith.extui %235 : vector<8x1xi1> to vector<8x1xi32>
    %237 = arith.sitofp %236 : vector<8x1xi32> to vector<8x1xf32>
    %c0_i32_49 = arith.constant 0 : i32
    %238 = vector.broadcast %c0_i32_49 : i32 to vector<8x1xi32>
    %239 = arith.cmpi sgt, %1, %238 : vector<8x1xi32>
    %240 = arith.extui %239 : vector<8x1xi1> to vector<8x1xi32>
    %241 = arith.sitofp %240 : vector<8x1xi32> to vector<8x1xf32>
    %242 = vector.broadcast %8 : vector<1x64xf32> to vector<8x64xf32>
    %243 = vector.broadcast %237 : vector<8x1xf32> to vector<8x64xf32>
    %244 = arith.mulf %242, %243 : vector<8x64xf32>
    %245 = vector.broadcast %10 : vector<1x64xf32> to vector<8x64xf32>
    %246 = vector.broadcast %241 : vector<8x1xf32> to vector<8x64xf32>
    %247 = arith.mulf %245, %246 : vector<8x64xf32>
    %248 = arith.addf %244, %247 : vector<8x64xf32>
    %249 = arith.mulf %248, %233 : vector<8x64xf32>
    %250 = vector.broadcast %8 : vector<1x64xf32> to vector<8x64xf32>
    %251 = arith.mulf %250, %110 : vector<8x64xf32>
    %252 = vector.broadcast %10 : vector<1x64xf32> to vector<8x64xf32>
    %253 = arith.mulf %252, %249 : vector<8x64xf32>
    %254 = arith.addf %251, %253 : vector<8x64xf32>
    %255 = vector.broadcast %8 : vector<1x64xf32> to vector<8x64xf32>
    %256 = arith.mulf %255, %182 : vector<8x64xf32>
    %257 = vector.broadcast %10 : vector<1x64xf32> to vector<8x64xf32>
    %258 = arith.mulf %257, %182 : vector<8x64xf32>
    %259 = arith.addf %256, %258 : vector<8x64xf32>
    %260 = vector.broadcast %8 : vector<1x64xf32> to vector<8x64xf32>
    %261 = arith.mulf %260, %249 : vector<8x64xf32>
    %262 = vector.broadcast %10 : vector<1x64xf32> to vector<8x64xf32>
    %263 = arith.mulf %262, %110 : vector<8x64xf32>
    %264 = arith.addf %261, %263 : vector<8x64xf32>
    %265 = tpu.concatenate %254, %259, %264 in 0 : vector<8x64xf32>, vector<8x64xf32>, vector<8x64xf32> -> vector<24x64xf32>
    %c0_50 = arith.constant 0 : index
    %c0_51 = arith.constant 0 : index
    %266 = vector.load %arg6[%c0_50, %c0_51] : memref<64x32xbf16, #tpu.memory_space<vmem>>, vector<64x32xbf16>
    %c0_52 = arith.constant 0 : index
    %c0_53 = arith.constant 0 : index
    %267 = vector.load %arg7[%c0_52, %c0_53] : memref<1x32xf32, #tpu.memory_space<vmem>>, vector<1x32xf32>
    %c0_54 = arith.constant 0 : index
    %c0_55 = arith.constant 0 : index
    %268 = vector.load %arg8[%c0_54, %c0_55] : memref<1x3xf32, #tpu.memory_space<vmem>>, vector<1x3xf32>
    %c0_56 = arith.constant 0 : index
    %c0_57 = arith.constant 0 : index
    %269 = vector.load %arg9[%c0_56, %c0_57] : memref<1x3xf32, #tpu.memory_space<vmem>>, vector<1x3xf32>
    %c0_58 = arith.constant 0 : index
    %c0_59 = arith.constant 0 : index
    %270 = vector.load %arg10[%c0_58, %c0_59] : memref<1x32xf32, #tpu.memory_space<vmem>>, vector<1x32xf32>
    %271 = arith.truncf %265 : vector<24x64xf32> to vector<24x64xbf16>
    %cst_60 = arith.constant dense<0.000000e+00> : vector<24x32xf32>
    %272 = tpu.matmul %271, %266, %cst_60 {dimension_numbers = #tpu.dot_dimension_numbers<[1], [0], [0], [1], [0, 0, 1, 1], [], []>} : vector<24x64xbf16>, vector<64x32xbf16>, vector<24x32xf32> -> vector<24x32xf32>
    %273 = vector.broadcast %267 : vector<1x32xf32> to vector<24x32xf32>
    %274 = arith.addf %272, %273 : vector<24x32xf32>
    %275 = tpu.iota {dimensions = array<i32: 0>} : vector<8x1xi32>
    %c2_i32_61 = arith.constant 2 : i32
    %276 = vector.broadcast %c2_i32_61 : i32 to vector<8x1xi32>
    %277 = arith.cmpi slt, %275, %276 : vector<8x1xi32>
    %278 = arith.extui %277 : vector<8x1xi1> to vector<8x1xi32>
    %279 = arith.sitofp %278 : vector<8x1xi32> to vector<8x1xf32>
    %280 = vector.extract_strided_slice %274 {offsets = [0, 0], sizes = [8, 32], strides = [1, 1]} : vector<24x32xf32> to vector<8x32xf32>
    %281 = vector.broadcast %279 : vector<8x1xf32> to vector<8x32xf32>
    %282 = arith.mulf %280, %281 : vector<8x32xf32>
    %283 = vector.shape_cast %282 : vector<8x32xf32> to vector<1x8x32xf32>
    %cst_62 = arith.constant dense<0.000000e+00> : vector<1xf32>
    %284 = vector.multi_reduction <add>, %283, %cst_62 [1, 2] : vector<1x8x32xf32> to vector<1xf32>
    %285 = vector.shape_cast %284 : vector<1xf32> to vector<1x1x1xf32>
    %286 = vector.extract %285[0, 0, 0] : f32 from vector<1x1x1xf32>
    %287 = vector.broadcast %286 : f32 to vector<1x1xf32>
    %cst_63 = arith.constant 6.400000e+01 : f32
    %288 = vector.broadcast %cst_63 : f32 to vector<1x1xf32>
    %289 = arith.divf %287, %288 : vector<1x1xf32>
    %290 = vector.broadcast %289 : vector<1x1xf32> to vector<8x32xf32>
    %291 = arith.subf %280, %290 : vector<8x32xf32>
    %292 = vector.broadcast %279 : vector<8x1xf32> to vector<8x32xf32>
    %293 = arith.mulf %291, %292 : vector<8x32xf32>
    %294 = arith.mulf %293, %293 : vector<8x32xf32>
    %295 = vector.shape_cast %294 : vector<8x32xf32> to vector<1x8x32xf32>
    %cst_64 = arith.constant dense<0.000000e+00> : vector<1xf32>
    %296 = vector.multi_reduction <add>, %295, %cst_64 [1, 2] : vector<1x8x32xf32> to vector<1xf32>
    %297 = vector.shape_cast %296 : vector<1xf32> to vector<1x1x1xf32>
    %298 = vector.extract %297[0, 0, 0] : f32 from vector<1x1x1xf32>
    %299 = vector.broadcast %298 : f32 to vector<1x1xf32>
    %cst_65 = arith.constant 6.400000e+01 : f32
    %300 = vector.broadcast %cst_65 : f32 to vector<1x1xf32>
    %301 = arith.divf %299, %300 : vector<1x1xf32>
    %302 = vector.broadcast %289 : vector<1x1xf32> to vector<8x32xf32>
    %303 = arith.subf %280, %302 : vector<8x32xf32>
    %cst_66 = arith.constant 9.99999974E-6 : f32
    %304 = vector.broadcast %cst_66 : f32 to vector<1x1xf32>
    %305 = arith.addf %301, %304 : vector<1x1xf32>
    %306 = math.rsqrt %305 : vector<1x1xf32>
    %307 = vector.broadcast %306 : vector<1x1xf32> to vector<8x32xf32>
    %308 = arith.mulf %303, %307 : vector<8x32xf32>
    %309 = vector.extract_strided_slice %268 {offsets = [0, 0], sizes = [1, 1], strides = [1, 1]} : vector<1x3xf32> to vector<1x1xf32>
    %310 = vector.broadcast %309 : vector<1x1xf32> to vector<8x32xf32>
    %311 = arith.mulf %308, %310 : vector<8x32xf32>
    %312 = vector.extract_strided_slice %269 {offsets = [0, 0], sizes = [1, 1], strides = [1, 1]} : vector<1x3xf32> to vector<1x1xf32>
    %313 = vector.broadcast %312 : vector<1x1xf32> to vector<8x32xf32>
    %314 = arith.addf %311, %313 : vector<8x32xf32>
    %cst_67 = arith.constant 0.000000e+00 : f32
    %315 = vector.broadcast %cst_67 : f32 to vector<8x32xf32>
    %316 = arith.maximumf %314, %315 : vector<8x32xf32>
    %317 = vector.broadcast %270 : vector<1x32xf32> to vector<8x32xf32>
    %318 = arith.mulf %316, %317 : vector<8x32xf32>
    %cst_68 = arith.constant dense<0.000000e+00> : vector<8xf32>
    %319 = vector.multi_reduction <add>, %318, %cst_68 [1] : vector<8x32xf32> to vector<8xf32>
    %320 = vector.shape_cast %319 : vector<8xf32> to vector<8x1xf32>
    %321 = vector.extract_strided_slice %274 {offsets = [8, 0], sizes = [8, 32], strides = [1, 1]} : vector<24x32xf32> to vector<8x32xf32>
    %322 = vector.broadcast %279 : vector<8x1xf32> to vector<8x32xf32>
    %323 = arith.mulf %321, %322 : vector<8x32xf32>
    %324 = vector.shape_cast %323 : vector<8x32xf32> to vector<1x8x32xf32>
    %cst_69 = arith.constant dense<0.000000e+00> : vector<1xf32>
    %325 = vector.multi_reduction <add>, %324, %cst_69 [1, 2] : vector<1x8x32xf32> to vector<1xf32>
    %326 = vector.shape_cast %325 : vector<1xf32> to vector<1x1x1xf32>
    %327 = vector.extract %326[0, 0, 0] : f32 from vector<1x1x1xf32>
    %328 = vector.broadcast %327 : f32 to vector<1x1xf32>
    %cst_70 = arith.constant 6.400000e+01 : f32
    %329 = vector.broadcast %cst_70 : f32 to vector<1x1xf32>
    %330 = arith.divf %328, %329 : vector<1x1xf32>
    %331 = vector.broadcast %330 : vector<1x1xf32> to vector<8x32xf32>
    %332 = arith.subf %321, %331 : vector<8x32xf32>
    %333 = vector.broadcast %279 : vector<8x1xf32> to vector<8x32xf32>
    %334 = arith.mulf %332, %333 : vector<8x32xf32>
    %335 = arith.mulf %334, %334 : vector<8x32xf32>
    %336 = vector.shape_cast %335 : vector<8x32xf32> to vector<1x8x32xf32>
    %cst_71 = arith.constant dense<0.000000e+00> : vector<1xf32>
    %337 = vector.multi_reduction <add>, %336, %cst_71 [1, 2] : vector<1x8x32xf32> to vector<1xf32>
    %338 = vector.shape_cast %337 : vector<1xf32> to vector<1x1x1xf32>
    %339 = vector.extract %338[0, 0, 0] : f32 from vector<1x1x1xf32>
    %340 = vector.broadcast %339 : f32 to vector<1x1xf32>
    %cst_72 = arith.constant 6.400000e+01 : f32
    %341 = vector.broadcast %cst_72 : f32 to vector<1x1xf32>
    %342 = arith.divf %340, %341 : vector<1x1xf32>
    %343 = vector.broadcast %330 : vector<1x1xf32> to vector<8x32xf32>
    %344 = arith.subf %321, %343 : vector<8x32xf32>
    %cst_73 = arith.constant 9.99999974E-6 : f32
    %345 = vector.broadcast %cst_73 : f32 to vector<1x1xf32>
    %346 = arith.addf %342, %345 : vector<1x1xf32>
    %347 = math.rsqrt %346 : vector<1x1xf32>
    %348 = vector.broadcast %347 : vector<1x1xf32> to vector<8x32xf32>
    %349 = arith.mulf %344, %348 : vector<8x32xf32>
    %350 = vector.extract_strided_slice %268 {offsets = [0, 1], sizes = [1, 1], strides = [1, 1]} : vector<1x3xf32> to vector<1x1xf32>
    %351 = vector.broadcast %350 : vector<1x1xf32> to vector<8x32xf32>
    %352 = arith.mulf %349, %351 : vector<8x32xf32>
    %353 = vector.extract_strided_slice %269 {offsets = [0, 1], sizes = [1, 1], strides = [1, 1]} : vector<1x3xf32> to vector<1x1xf32>
    %354 = vector.broadcast %353 : vector<1x1xf32> to vector<8x32xf32>
    %355 = arith.addf %352, %354 : vector<8x32xf32>
    %cst_74 = arith.constant 0.000000e+00 : f32
    %356 = vector.broadcast %cst_74 : f32 to vector<8x32xf32>
    %357 = arith.maximumf %355, %356 : vector<8x32xf32>
    %358 = vector.broadcast %270 : vector<1x32xf32> to vector<8x32xf32>
    %359 = arith.mulf %357, %358 : vector<8x32xf32>
    %cst_75 = arith.constant dense<0.000000e+00> : vector<8xf32>
    %360 = vector.multi_reduction <add>, %359, %cst_75 [1] : vector<8x32xf32> to vector<8xf32>
    %361 = vector.shape_cast %360 : vector<8xf32> to vector<8x1xf32>
    %362 = vector.extract_strided_slice %274 {offsets = [16, 0], sizes = [8, 32], strides = [1, 1]} : vector<24x32xf32> to vector<8x32xf32>
    %363 = vector.broadcast %279 : vector<8x1xf32> to vector<8x32xf32>
    %364 = arith.mulf %362, %363 : vector<8x32xf32>
    %365 = vector.shape_cast %364 : vector<8x32xf32> to vector<1x8x32xf32>
    %cst_76 = arith.constant dense<0.000000e+00> : vector<1xf32>
    %366 = vector.multi_reduction <add>, %365, %cst_76 [1, 2] : vector<1x8x32xf32> to vector<1xf32>
    %367 = vector.shape_cast %366 : vector<1xf32> to vector<1x1x1xf32>
    %368 = vector.extract %367[0, 0, 0] : f32 from vector<1x1x1xf32>
    %369 = vector.broadcast %368 : f32 to vector<1x1xf32>
    %cst_77 = arith.constant 6.400000e+01 : f32
    %370 = vector.broadcast %cst_77 : f32 to vector<1x1xf32>
    %371 = arith.divf %369, %370 : vector<1x1xf32>
    %372 = vector.broadcast %371 : vector<1x1xf32> to vector<8x32xf32>
    %373 = arith.subf %362, %372 : vector<8x32xf32>
    %374 = vector.broadcast %279 : vector<8x1xf32> to vector<8x32xf32>
    %375 = arith.mulf %373, %374 : vector<8x32xf32>
    %376 = arith.mulf %375, %375 : vector<8x32xf32>
    %377 = vector.shape_cast %376 : vector<8x32xf32> to vector<1x8x32xf32>
    %cst_78 = arith.constant dense<0.000000e+00> : vector<1xf32>
    %378 = vector.multi_reduction <add>, %377, %cst_78 [1, 2] : vector<1x8x32xf32> to vector<1xf32>
    %379 = vector.shape_cast %378 : vector<1xf32> to vector<1x1x1xf32>
    %380 = vector.extract %379[0, 0, 0] : f32 from vector<1x1x1xf32>
    %381 = vector.broadcast %380 : f32 to vector<1x1xf32>
    %cst_79 = arith.constant 6.400000e+01 : f32
    %382 = vector.broadcast %cst_79 : f32 to vector<1x1xf32>
    %383 = arith.divf %381, %382 : vector<1x1xf32>
    %384 = vector.broadcast %371 : vector<1x1xf32> to vector<8x32xf32>
    %385 = arith.subf %362, %384 : vector<8x32xf32>
    %cst_80 = arith.constant 9.99999974E-6 : f32
    %386 = vector.broadcast %cst_80 : f32 to vector<1x1xf32>
    %387 = arith.addf %383, %386 : vector<1x1xf32>
    %388 = math.rsqrt %387 : vector<1x1xf32>
    %389 = vector.broadcast %388 : vector<1x1xf32> to vector<8x32xf32>
    %390 = arith.mulf %385, %389 : vector<8x32xf32>
    %391 = vector.extract_strided_slice %268 {offsets = [0, 2], sizes = [1, 1], strides = [1, 1]} : vector<1x3xf32> to vector<1x1xf32>
    %392 = vector.broadcast %391 : vector<1x1xf32> to vector<8x32xf32>
    %393 = arith.mulf %390, %392 : vector<8x32xf32>
    %394 = vector.extract_strided_slice %269 {offsets = [0, 2], sizes = [1, 1], strides = [1, 1]} : vector<1x3xf32> to vector<1x1xf32>
    %395 = vector.broadcast %394 : vector<1x1xf32> to vector<8x32xf32>
    %396 = arith.addf %393, %395 : vector<8x32xf32>
    %cst_81 = arith.constant 0.000000e+00 : f32
    %397 = vector.broadcast %cst_81 : f32 to vector<8x32xf32>
    %398 = arith.maximumf %396, %397 : vector<8x32xf32>
    %399 = vector.broadcast %270 : vector<1x32xf32> to vector<8x32xf32>
    %400 = arith.mulf %398, %399 : vector<8x32xf32>
    %cst_82 = arith.constant dense<0.000000e+00> : vector<8xf32>
    %401 = vector.multi_reduction <add>, %400, %cst_82 [1] : vector<8x32xf32> to vector<8xf32>
    %402 = vector.shape_cast %401 : vector<8xf32> to vector<8x1xf32>
    %403 = tpu.concatenate %320, %361, %402 in 1 : vector<8x1xf32>, vector<8x1xf32>, vector<8x1xf32> -> vector<8x3xf32>
    %cst_83 = arith.constant dense<0xFF800000> : vector<8xf32>
    %404 = vector.multi_reduction <maximumf>, %403, %cst_83 [1] : vector<8x3xf32> to vector<8xf32>
    %405 = vector.shape_cast %404 : vector<8xf32> to vector<8x1xf32>
    %406 = vector.broadcast %405 : vector<8x1xf32> to vector<8x3xf32>
    %407 = arith.subf %403, %406 : vector<8x3xf32>
    %408 = math.exp %407 : vector<8x3xf32>
    %cst_84 = arith.constant dense<0.000000e+00> : vector<8xf32>
    %409 = vector.multi_reduction <add>, %408, %cst_84 [1] : vector<8x3xf32> to vector<8xf32>
    %410 = vector.shape_cast %409 : vector<8xf32> to vector<8x1xf32>
    %411 = vector.broadcast %410 : vector<8x1xf32> to vector<8x3xf32>
    %412 = arith.divf %408, %411 : vector<8x3xf32>
    %cst_85 = arith.constant 0.000000e+00 : f32
    %413 = vector.broadcast %cst_85 : f32 to vector<8x64xf32>
    %414 = vector.extract_strided_slice %412 {offsets = [0, 0], sizes = [8, 1], strides = [1, 1]} : vector<8x3xf32> to vector<8x1xf32>
    %415 = vector.broadcast %414 : vector<8x1xf32> to vector<8x64xf32>
    %416 = arith.mulf %415, %254 : vector<8x64xf32>
    %417 = arith.addf %413, %416 : vector<8x64xf32>
    %418 = vector.extract_strided_slice %412 {offsets = [0, 1], sizes = [8, 1], strides = [1, 1]} : vector<8x3xf32> to vector<8x1xf32>
    %419 = vector.broadcast %418 : vector<8x1xf32> to vector<8x64xf32>
    %420 = arith.mulf %419, %259 : vector<8x64xf32>
    %421 = arith.addf %417, %420 : vector<8x64xf32>
    %422 = vector.extract_strided_slice %412 {offsets = [0, 2], sizes = [8, 1], strides = [1, 1]} : vector<8x3xf32> to vector<8x1xf32>
    %423 = vector.broadcast %422 : vector<8x1xf32> to vector<8x64xf32>
    %424 = arith.mulf %423, %264 : vector<8x64xf32>
    %425 = arith.addf %421, %424 : vector<8x64xf32>
    %426 = arith.truncf %425 : vector<8x64xf32> to vector<8x64xbf16>
    %c0_86 = arith.constant 0 : index
    %c0_87 = arith.constant 0 : index
    %427 = vector.load %arg11[%c0_86, %c0_87] : memref<64x5xbf16, #tpu.memory_space<vmem>>, vector<64x5xbf16>
    %cst_88 = arith.constant dense<0.000000e+00> : vector<8x5xf32>
    %428 = tpu.matmul %426, %427, %cst_88 {dimension_numbers = #tpu.dot_dimension_numbers<[1], [0], [0], [1], [0, 0, 1, 1], [], []>} : vector<8x64xbf16>, vector<64x5xbf16>, vector<8x5xf32> -> vector<8x5xf32>
    %c0_89 = arith.constant 0 : index
    %c0_90 = arith.constant 0 : index
    %429 = vector.load %arg12[%c0_89, %c0_90] : memref<1x5xf32, #tpu.memory_space<vmem>>, vector<1x5xf32>
    %430 = vector.broadcast %429 : vector<1x5xf32> to vector<8x5xf32>
    %431 = arith.addf %428, %430 : vector<8x5xf32>
    %c0_91 = arith.constant 0 : index
    %c0_92 = arith.constant 0 : index
    %432 = vector.load %arg13[%c0_91, %c0_92] : memref<8x5xf32, #tpu.memory_space<vmem>>, vector<8x5xf32>
    tpu.vector_store %arg13[%c0_91, %c0_92], %431 {strides = array<i32>} : memref<8x5xf32, #tpu.memory_space<vmem>>, vector<8x5xf32>,
    return
  }
}

</mosaic_0001>

<llo_original>
// kernel: han_forward.3
$region0: #{han_forward.3}
  #allocation0 [shape = 'u32[]', space=smem, size = 0x4, offset = 0x4, fixed_abs, tag = 'smem constant byte address 0x4 - core index']
  #allocation1 [shape = 'u32[72,128]{1,0:T(1,128)}', space=vmem, size = 0x9000, scoped, tag = 'internal scratch']
  %s0 = inlined_call_operand.vmem [shape: bf16[24,64], index: 0, kind: input, shape index: {}]
  %s1 = inlined_call_operand.vmem [shape: s32[8,1], index: 1, kind: input, shape index: {}]
  %s2 = inlined_call_operand.vmem [shape: bf16[3,64,64], index: 2, kind: input, shape index: {}]
  %s3 = inlined_call_operand.vmem [shape: bf16[3,64,64], index: 3, kind: input, shape index: {}]
  %s4 = inlined_call_operand.vmem [shape: f32[3,64], index: 4, kind: input, shape index: {}]
  %s5 = inlined_call_operand.vmem [shape: f32[3,64], index: 5, kind: input, shape index: {}]
  %s6 = inlined_call_operand.vmem [shape: bf16[64,32], index: 6, kind: input, shape index: {}]
  %s7 = inlined_call_operand.vmem [shape: f32[1,32], index: 7, kind: input, shape index: {}]
  %s8 = inlined_call_operand.vmem [shape: f32[1,3], index: 8, kind: input, shape index: {}]
  %s9 = inlined_call_operand.vmem [shape: f32[1,3], index: 9, kind: input, shape index: {}]
  %s10 = inlined_call_operand.vmem [shape: f32[1,32], index: 10, kind: input, shape index: {}]
  %s11 = inlined_call_operand.vmem [shape: bf16[64,5], index: 11, kind: input, shape index: {}]
  %s12 = inlined_call_operand.vmem [shape: f32[1,5], index: 12, kind: input, shape index: {}]
  %s13 = inlined_call_operand.vmem [shape: f32[8,5], index: 13, kind: output, shape index: {}]
  %s14 = sld [smem:[#allocation0]]
  $region62: #{han_forward.3} parent=0
    _
  %s16 = ssub.s32 1, %s14
  %s17 = scalar_select 0, %s16, %s14
  // Predicated region
  $region2: #{han_forward.3} parent=0 // pred_check
    _
  $region3: #{han_forward.3} parent=0 // pred_check_branch
    %19 = sbr.rel (0) target = $region5
  $region4: #{han_forward.3} parent=0 // pred_region
    _
  $region5: #{han_forward.3} parent=0 // pred_fallthru
    _
  // Predicated region
  $region6: #{han_forward.3} parent=0 // pred_check
    _
  $region7: #{han_forward.3} parent=0 // pred_check_branch
    %21 = sbr.rel (0) target = $region9
  $region8: #{han_forward.3} parent=0 // pred_region
    _
  $region9: #{han_forward.3} parent=0 // pred_fallthru
    _
  // Predicated region
  $region10: #{han_forward.3} parent=0 // pred_check
    _
  $region11: #{han_forward.3} parent=0 // pred_check_branch
    %23 = sbr.rel (0) target = $region13
  $region12: #{han_forward.3} parent=0 // pred_region
    _
  $region13: #{han_forward.3} parent=0 // pred_fallthru
    _
  // Predicated region
  $region14: #{han_forward.3} parent=0 // pred_check
    _
  $region15: #{han_forward.3} parent=0 // pred_check_branch
    %25 = sbr.rel (0) target = $region17
  $region16: #{han_forward.3} parent=0 // pred_region
    _
  $region17: #{han_forward.3} parent=0 // pred_fallthru
    _
  // Predicated region
  $region18: #{han_forward.3} parent=0 // pred_check
    _
  $region19: #{han_forward.3} parent=0 // pred_check_branch
    %27 = sbr.rel (0) target = $region21
  $region20: #{han_forward.3} parent=0 // pred_region
    _
  $region21: #{han_forward.3} parent=0 // pred_fallthru
    _
  // Predicated region
  $region22: #{han_forward.3} parent=0 // pred_check
    _
  $region23: #{han_forward.3} parent=0 // pred_check_branch
    %29 = sbr.rel (0) target = $region25
  $region24: #{han_forward.3} parent=0 // pred_region
    _
  $region25: #{han_forward.3} parent=0 // pred_fallthru
    _
  // Predicated region
  $region26: #{han_forward.3} parent=0 // pred_check
    _
  $region27: #{han_forward.3} parent=0 // pred_check_branch
    %31 = sbr.rel (0) target = $region29
  $region28: #{han_forward.3} parent=0 // pred_region
    _
  $region29: #{han_forward.3} parent=0 // pred_fallthru
    _
  // Predicated region
  $region30: #{han_forward.3} parent=0 // pred_check
    _
  $region31: #{han_forward.3} parent=0 // pred_check_branch
    %33 = sbr.rel (0) target = $region33
  $region32: #{han_forward.3} parent=0 // pred_region
    _
  $region33: #{han_forward.3} parent=0 // pred_fallthru
    _
  // Predicated region
  $region34: #{han_forward.3} parent=0 // pred_check
    _
  $region35: #{han_forward.3} parent=0 // pred_check_branch
    %35 = sbr.rel (0) target = $region37
  $region36: #{han_forward.3} parent=0 // pred_region
    _
  $region37: #{han_forward.3} parent=0 // pred_fallthru
    _
  // Predicated region
  $region38: #{han_forward.3} parent=0 // pred_check
    _
  $region39: #{han_forward.3} parent=0 // pred_check_branch
    %37 = sbr.rel (0) target = $region41
  $region40: #{han_forward.3} parent=0 // pred_region
    _
  $region41: #{han_forward.3} parent=0 // pred_fallthru
    _
  // Predicated region
  $region42: #{han_forward.3} parent=0 // pred_check
    _
  $region43: #{han_forward.3} parent=0 // pred_check_branch
    %39 = sbr.rel (0) target = $region45
  $region44: #{han_forward.3} parent=0 // pred_region
    _
  $region45: #{han_forward.3} parent=0 // pred_fallthru
    _
  // Predicated region
  $region46: #{han_forward.3} parent=0 // pred_check
    _
  $region47: #{han_forward.3} parent=0 // pred_check_branch
    %41 = sbr.rel (0) target = $region49
  $region48: #{han_forward.3} parent=0 // pred_region
    _
  $region49: #{han_forward.3} parent=0 // pred_fallthru
    _
  // Predicated region
  $region50: #{han_forward.3} parent=0 // pred_check
    _
  $region51: #{han_forward.3} parent=0 // pred_check_branch
    %43 = sbr.rel (0) target = $region53
  $region52: #{han_forward.3} parent=0 // pred_region
    _
  $region53: #{han_forward.3} parent=0 // pred_fallthru
    _
  %v45 = vld [vmem:[%s0] sm:$0xf]
  %v46 = vld [vmem:[%s0 + $0x4] sm:$0xf]
  %v47 = vld [vmem:[%s0 + $0x8] sm:$0xf]
  %v48 = vld [vmem:[%s1] sm:$0xff]
  %v49 = vld [vmem:[%s4] sm:$0x7]
  %v50 = vld [vmem:[%s5] sm:$0x7]
  %v51 = vlaneseq
  %v52 = vand.u32 %v51, 127
  %vm53 = vcmp.lt.s32.totalorder %v52, 32
  %v54 = vsel %vm53, 1, 0
  %v55 = vcvt.s32.f32 %v54
  %v56 = vsub.f32 1.0, %v55
  %v57 = vld [vmem:[%s2] sm:$0xf]
  %v58 = vld [vmem:[%s2 + $0x4] sm:$0xf]
  %v59 = vld [vmem:[%s2 + $0x8] sm:$0xf]
  %v60 = vld [vmem:[%s2 + $0xc] sm:$0xf]
  %v61 = vld [vmem:[%s2 + $0x10] sm:$0xf]
  %v62 = vld [vmem:[%s2 + $0x14] sm:$0xf]
  %v63 = vld [vmem:[%s2 + $0x18] sm:$0xf]
  %v64 = vld [vmem:[%s2 + $0x1c] sm:$0xf]
  %v65 = vperm.slane %v49, 0
  %v69 = vunpack.c.l.b16 %v45
  %v70 = vunpack.c.l.b16 %v46
  %v71 = vunpack.c.l.b16 %v47
  %v72 = vpack.c.b16 %v70, %v69
  %v73 = vpack.c.b16 %v71, %v71
  %v82 = vunpack.c.l.b16 %v57
  %v83 = vunpack.c.l.b16 %v58
  %v84 = vunpack.c.l.b16 %v59
  %v85 = vunpack.c.l.b16 %v60
  %v86 = vunpack.c.l.b16 %v61
  %v87 = vunpack.c.l.b16 %v62
  %v88 = vunpack.c.l.b16 %v63
  %v89 = vunpack.c.l.b16 %v64
  %v90 = vpack.c.b16 %v83, %v82
  %v91 = vpack.c.b16 %v85, %v84
  %v92 = vpack.c.b16 %v87, %v86
  %v93 = vpack.c.b16 %v89, %v88
  %vm98 = vcmask 523264
  %v100 = vsel %vm98, %v72, 0
  %v103 = vsel %vm98, %v73, 0
  %105 = vmatpush.bf16.msra.mxu0 0
  %106 = vmatpush.bf16.msra.mxu0 0
  %107 = vmatpush.bf16.msra.mxu0 0
  %108 = vmatpush.bf16.msra.mxu0 0
  %109 = vmatpush.bf16.msra.mxu0 %v93
  %110 = vmatpush.bf16.msra.mxu0 %v92
  %111 = vmatpush.bf16.msra.mxu0 %v91
  %112 = vmatpush.bf16.msra.mxu0 %v90
  %113 = vmatmul.bf16.gmra.mxu0 %v100
  %v114 = vpop.f32.mrf.mxu0
  %v115 = vadd.f32 %v65, %v114
  %v116 = vpop.f32.mrf.mxu0
  %v117 = vadd.f32 %v65, %v116
  %118 = vmatmul.bf16.gmra.mxu0 %v103
  %v119 = vpop.f32.mrf.mxu0
  %v120 = vadd.f32 %v65, %v119
  %v121 = vpop.f32.mrf.mxu0
  %122 = vdwg.mxu0
  %s123 = scalar_lea.vmem %s2, 32
  %v124 = vld [vmem:[%s123] sm:$0xf]
  %v125 = vld [vmem:[%s123 + $0x4] sm:$0xf]
  %v126 = vld [vmem:[%s123 + $0x8] sm:$0xf]
  %v127 = vld [vmem:[%s123 + $0xc] sm:$0xf]
  %v128 = vld [vmem:[%s123 + $0x10] sm:$0xf]
  %v129 = vld [vmem:[%s123 + $0x14] sm:$0xf]
  %v130 = vld [vmem:[%s123 + $0x18] sm:$0xf]
  %v131 = vld [vmem:[%s123 + $0x1c] sm:$0xf]
  %v132 = vperm.slane %v49, 1
  %v141 = vunpack.c.l.b16 %v124
  %v142 = vunpack.c.l.b16 %v125
  %v143 = vunpack.c.l.b16 %v126
  %v144 = vunpack.c.l.b16 %v127
  %v145 = vunpack.c.l.b16 %v128
  %v146 = vunpack.c.l.b16 %v129
  %v147 = vunpack.c.l.b16 %v130
  %v148 = vunpack.c.l.b16 %v131
  %v149 = vpack.c.b16 %v142, %v141
  %v150 = vpack.c.b16 %v144, %v143
  %v151 = vpack.c.b16 %v146, %v145
  %v152 = vpack.c.b16 %v148, %v147
  %157 = vmatpush.bf16.msra.mxu0 0
  %158 = vmatpush.bf16.msra.mxu0 0
  %159 = vmatpush.bf16.msra.mxu0 0
  %160 = vmatpush.bf16.msra.mxu0 0
  %161 = vmatpush.bf16.msra.mxu0 %v152
  %162 = vmatpush.bf16.msra.mxu0 %v151
  %163 = vmatpush.bf16.msra.mxu0 %v150
  %164 = vmatpush.bf16.msra.mxu0 %v149
  %165 = vmatmul.bf16.gmra.mxu0 %v100
  %v166 = vpop.f32.mrf.mxu0
  %v167 = vadd.f32 %v132, %v166
  %v168 = vpop.f32.mrf.mxu0
  %v169 = vadd.f32 %v132, %v168
  %170 = vmatmul.bf16.gmra.mxu0 %v103
  %v171 = vpop.f32.mrf.mxu0
  %v172 = vadd.f32 %v132, %v171
  %v173 = vpop.f32.mrf.mxu0
  %174 = vdwg.mxu0
  %s175 = scalar_lea.vmem %s2, 64
  %v176 = vld [vmem:[%s175] sm:$0xf]
  %v177 = vld [vmem:[%s175 + $0x4] sm:$0xf]
  %v178 = vld [vmem:[%s175 + $0x8] sm:$0xf]
  %v179 = vld [vmem:[%s175 + $0xc] sm:$0xf]
  %v180 = vld [vmem:[%s175 + $0x10] sm:$0xf]
  %v181 = vld [vmem:[%s175 + $0x14] sm:$0xf]
  %v182 = vld [vmem:[%s175 + $0x18] sm:$0xf]
  %v183 = vld [vmem:[%s175 + $0x1c] sm:$0xf]
  %v184 = vperm.slane %v49, 2
  %v193 = vunpack.c.l.b16 %v176
  %v194 = vunpack.c.l.b16 %v177
  %v195 = vunpack.c.l.b16 %v178
  %v196 = vunpack.c.l.b16 %v179
  %v197 = vunpack.c.l.b16 %v180
  %v198 = vunpack.c.l.b16 %v181
  %v199 = vunpack.c.l.b16 %v182
  %v200 = vunpack.c.l.b16 %v183
  %v201 = vpack.c.b16 %v194, %v193
  %v202 = vpack.c.b16 %v196, %v195
  %v203 = vpack.c.b16 %v198, %v197
  %v204 = vpack.c.b16 %v200, %v199
  %209 = vmatpush.bf16.msra.mxu0 0
  %210 = vmatpush.bf16.msra.mxu0 0
  %211 = vmatpush.bf16.msra.mxu0 0
  %212 = vmatpush.bf16.msra.mxu0 0
  %213 = vmatpush.bf16.msra.mxu0 %v204
  %214 = vmatpush.bf16.msra.mxu0 %v203
  %215 = vmatpush.bf16.msra.mxu0 %v202
  %216 = vmatpush.bf16.msra.mxu0 %v201
  %217 = vmatmul.bf16.gmra.mxu0 %v100
  %v218 = vpop.f32.mrf.mxu0
  %v219 = vadd.f32 %v184, %v218
  %v220 = vpop.f32.mrf.mxu0
  %v221 = vadd.f32 %v184, %v220
  %222 = vmatmul.bf16.gmra.mxu0 %v103
  %v223 = vpop.f32.mrf.mxu0
  %v224 = vadd.f32 %v184, %v223
  %v225 = vpop.f32.mrf.mxu0
  %226 = vdwg.mxu0
  %v227 = vld [vmem:[%s3] sm:$0xf]
  %v228 = vld [vmem:[%s3 + $0x4] sm:$0xf]
  %v229 = vld [vmem:[%s3 + $0x8] sm:$0xf]
  %v230 = vld [vmem:[%s3 + $0xc] sm:$0xf]
  %v231 = vld [vmem:[%s3 + $0x10] sm:$0xf]
  %v232 = vld [vmem:[%s3 + $0x14] sm:$0xf]
  %v233 = vld [vmem:[%s3 + $0x18] sm:$0xf]
  %v234 = vld [vmem:[%s3 + $0x1c] sm:$0xf]
  %s235 = scalar_lea.vmem %s3, 32
  %v236 = vld [vmem:[%s235] sm:$0xf]
  %v237 = vld [vmem:[%s235 + $0x4] sm:$0xf]
  %v238 = vld [vmem:[%s235 + $0x8] sm:$0xf]
  %v239 = vld [vmem:[%s235 + $0xc] sm:$0xf]
  %v240 = vld [vmem:[%s235 + $0x10] sm:$0xf]
  %v241 = vld [vmem:[%s235 + $0x14] sm:$0xf]
  %v242 = vld [vmem:[%s235 + $0x18] sm:$0xf]
  %v243 = vld [vmem:[%s235 + $0x1c] sm:$0xf]
  %s244 = scalar_lea.vmem %s3, 64
  %v245 = vld [vmem:[%s244] sm:$0xf]
  %v246 = vld [vmem:[%s244 + $0x4] sm:$0xf]
  %v247 = vld [vmem:[%s244 + $0x8] sm:$0xf]
  %v248 = vld [vmem:[%s244 + $0xc] sm:$0xf]
  %v249 = vld [vmem:[%s244 + $0x10] sm:$0xf]
  %v250 = vld [vmem:[%s244 + $0x14] sm:$0xf]
  %v251 = vld [vmem:[%s244 + $0x18] sm:$0xf]
  %v252 = vld [vmem:[%s244 + $0x1c] sm:$0xf]
  %v253 = vmul.f32 %v55, %v115
  %v254 = vmul.f32 %v56, %v120
  %v255 = vadd.f32 %v253, %v254
  %v256 = vmul.f32 %v55, %v167
  %v257 = vmul.f32 %v56, %v172
  %v258 = vadd.f32 %v256, %v257
  %v259 = vmul.f32 %v55, %v219
  %v260 = vmul.f32 %v56, %v224
  %v261 = vadd.f32 %v259, %v260
  %v262 = vperm.slane %v50, 0
  %v271 = vunpack.c.l.b16 %v227
  %v272 = vunpack.c.l.b16 %v228
  %v273 = vunpack.c.l.b16 %v229
  %v274 = vunpack.c.l.b16 %v230
  %v275 = vunpack.c.l.b16 %v231
  %v276 = vunpack.c.l.b16 %v232
  %v277 = vunpack.c.l.b16 %v233
  %v278 = vunpack.c.l.b16 %v234
  %v279 = vpack.c.b16 %v272, %v271
  %v280 = vpack.c.b16 %v274, %v273
  %v281 = vpack.c.b16 %v276, %v275
  %v282 = vpack.c.b16 %v278, %v277
  %v288 = vsel %vm98, 0, 0
  %290 = vmatpush.bf16.msra.mxu0 0
  %291 = vmatpush.bf16.msra.mxu0 0
  %292 = vmatpush.bf16.msra.mxu0 0
  %293 = vmatpush.bf16.msra.mxu0 0
  %294 = vmatpush.bf16.msra.mxu0 %v282
  %295 = vmatpush.bf16.msra.mxu0 %v281
  %296 = vmatpush.bf16.msra.mxu0 %v280
  %297 = vmatpush.bf16.msra.mxu0 %v279
  %298 = vmatmul.bf16.gmra.mxu0 %v288
  %v299 = vpop.f32.mrf.mxu0
  %v300 = vadd.f32 %v262, %v299
  %v301 = vpop.f32.mrf.mxu0
  %302 = vdwg.mxu0
  %v303 = vperm.slane %v50, 1
  %v312 = vunpack.c.l.b16 %v236
  %v313 = vunpack.c.l.b16 %v237
  %v314 = vunpack.c.l.b16 %v238
  %v315 = vunpack.c.l.b16 %v239
  %v316 = vunpack.c.l.b16 %v240
  %v317 = vunpack.c.l.b16 %v241
  %v318 = vunpack.c.l.b16 %v242
  %v319 = vunpack.c.l.b16 %v243
  %v320 = vpack.c.b16 %v313, %v312
  %v321 = vpack.c.b16 %v315, %v314
  %v322 = vpack.c.b16 %v317, %v316
  %v323 = vpack.c.b16 %v319, %v318
  %328 = vmatpush.bf16.msra.mxu0 0
  %329 = vmatpush.bf16.msra.mxu0 0
  %330 = vmatpush.bf16.msra.mxu0 0
  %331 = vmatpush.bf16.msra.mxu0 0
  %332 = vmatpush.bf16.msra.mxu0 %v323
  %333 = vmatpush.bf16.msra.mxu0 %v322
  %334 = vmatpush.bf16.msra.mxu0 %v321
  %335 = vmatpush.bf16.msra.mxu0 %v320
  %336 = vmatmul.bf16.gmra.mxu0 %v288
  %v337 = vpop.f32.mrf.mxu0
  %v338 = vadd.f32 %v303, %v337
  %v339 = vpop.f32.mrf.mxu0
  %340 = vdwg.mxu0
  %v341 = vperm.slane %v50, 2
  %v350 = vunpack.c.l.b16 %v245
  %v351 = vunpack.c.l.b16 %v246
  %v352 = vunpack.c.l.b16 %v247
  %v353 = vunpack.c.l.b16 %v248
  %v354 = vunpack.c.l.b16 %v249
  %v355 = vunpack.c.l.b16 %v250
  %v356 = vunpack.c.l.b16 %v251
  %v357 = vunpack.c.l.b16 %v252
  %v358 = vpack.c.b16 %v351, %v350
  %v359 = vpack.c.b16 %v353, %v352
  %v360 = vpack.c.b16 %v355, %v354
  %v361 = vpack.c.b16 %v357, %v356
  %366 = vmatpush.bf16.msra.mxu0 0
  %367 = vmatpush.bf16.msra.mxu0 0
  %368 = vmatpush.bf16.msra.mxu0 0
  %369 = vmatpush.bf16.msra.mxu0 0
  %370 = vmatpush.bf16.msra.mxu0 %v361
  %371 = vmatpush.bf16.msra.mxu0 %v360
  %372 = vmatpush.bf16.msra.mxu0 %v359
  %373 = vmatpush.bf16.msra.mxu0 %v358
  %374 = vmatmul.bf16.gmra.mxu0 %v288
  %v375 = vpop.f32.mrf.mxu0
  %v376 = vadd.f32 %v341, %v375
  %v377 = vpop.f32.mrf.mxu0
  %378 = vdwg.mxu0
  %v379 = vadd.f32 %v255, %v300
  %v380 = vxor.u32 %v379, 2147483648
  %v381 = vmul.f32 %v380, 1.442695
  %v382 = vpow.pop %v381
  %v383 = vadd.f32 %v382, 1.0
  %v384 = vrcp.pop %v383
  %v385 = vmul.f32 %v383, %v384
  %v386 = vsub.f32 1.0, %v385
  %v387 = vmul.f32 %v384, %v386
  %v388 = vadd.f32 %v384, %v387
  %vm389 = vweird.f32 %v383
  %vm390 = vweird.f32 %v384
  %vm391 = vmor %vm389, %vm390
  %v392 = vsel %vm391, %v384, %v388
  %v393 = vand.u32 2147483647, %v383
  %vm394 = vcmp.eq.f32.partialorder %v393, 8.507059e+37
  %v395 = vand.u32 %v383, 2147483648
  %v396 = vor.u32 1.1754944e-38, %v395
  %v397 = vsel %vm394, %v396, %v392
  %v398 = vmul.f32 1.0, %v397
  %v399 = vadd.f32 %v258, %v338
  %v400 = vxor.u32 %v399, 2147483648
  %v401 = vmul.f32 %v400, 1.442695
  %v402 = vpow.pop %v401
  %v403 = vadd.f32 %v402, 1.0
  %v404 = vrcp.pop %v403
  %v405 = vmul.f32 %v403, %v404
  %v406 = vsub.f32 1.0, %v405
  %v407 = vmul.f32 %v404, %v406
  %v408 = vadd.f32 %v404, %v407
  %vm409 = vweird.f32 %v403
  %vm410 = vweird.f32 %v404
  %vm411 = vmor %vm409, %vm410
  %v412 = vsel %vm411, %v404, %v408
  %v413 = vand.u32 2147483647, %v403
  %vm414 = vcmp.eq.f32.partialorder %v413, 8.507059e+37
  %v415 = vand.u32 %v403, 2147483648
  %v416 = vor.u32 1.1754944e-38, %v415
  %v417 = vsel %vm414, %v416, %v412
  %v418 = vmul.f32 1.0, %v417
  %v419 = vmul.f32 %v398, %v376
  %v420 = vadd.f32 %v261, %v419
  %v421 = vtanh.pop %v420
  %v422 = vsub.f32 1.0, %v418
  %v423 = vmul.f32 %v422, %v421
  %v424 = vmul.f32 %v418, 0.0
  %v425 = vadd.f32 %v423, %v424
  %vm426 = vcmp.gt.s32.totalorder %v48, 0
  %v427 = vsel %vm426, 1, 0
  %v428 = vcvt.s32.f32 %v427
  %vm429 = vcmp.gt.s32.totalorder %v48, 2
  %v430 = vsel %vm429, 1, 0
  %v431 = vcvt.s32.f32 %v430
  %433 = vset.pattern.permute.xlu0 0
  %434 = vperm.xlu0 %433, %v428
  %v435 = vpop.permute.xlu0 %434
  %v437 = vmul.f32 %v55, %v435
  %439 = vset.pattern.permute.xlu0 0
  %440 = vperm.xlu0 %439, %v431
  %v441 = vpop.permute.xlu0 %440
  %v443 = vmul.f32 %v56, %v441
  %v444 = vadd.f32 %v437, %v443
  %v445 = vmul.f32 %v444, %v425
  %v446 = vsub.f32 1.0, %v444
  %v447 = vmul.f32 %v446, 0.0
  %v448 = vadd.f32 %v445, %v447
  %v449 = vmul.f32 %v55, %v117
  %v450 = vmul.f32 %v56, %v117
  %v451 = vadd.f32 %v449, %v450
  %v452 = vmul.f32 %v55, %v169
  %v453 = vmul.f32 %v56, %v169
  %v454 = vadd.f32 %v452, %v453
  %v455 = vmul.f32 %v55, %v221
  %v456 = vmul.f32 %v56, %v221
  %v457 = vadd.f32 %v455, %v456
  %v458 = vpack.c.bf16 %v448, %v448
  %v460 = vsel %vm98, %v458, 0
  %462 = vmatpush.bf16.msra.mxu0 0
  %463 = vmatpush.bf16.msra.mxu0 0
  %464 = vmatpush.bf16.msra.mxu0 0
  %465 = vmatpush.bf16.msra.mxu0 0
  %466 = vmatpush.bf16.msra.mxu0 %v282
  %467 = vmatpush.bf16.msra.mxu0 %v281
  %468 = vmatpush.bf16.msra.mxu0 %v280
  %469 = vmatpush.bf16.msra.mxu0 %v279
  %470 = vmatmul.bf16.gmra.mxu0 %v460
  %v471 = vpop.f32.mrf.mxu0
  %v472 = vadd.f32 %v262, %v471
  %v473 = vpop.f32.mrf.mxu0
  %474 = vdwg.mxu0
  %475 = vmatpush.bf16.msra.mxu0 0
  %476 = vmatpush.bf16.msra.mxu0 0
  %477 = vmatpush.bf16.msra.mxu0 0
  %478 = vmatpush.bf16.msra.mxu0 0
  %479 = vmatpush.bf16.msra.mxu0 %v323
  %480 = vmatpush.bf16.msra.mxu0 %v322
  %481 = vmatpush.bf16.msra.mxu0 %v321
  %482 = vmatpush.bf16.msra.mxu0 %v320
  %483 = vmatmul.bf16.gmra.mxu0 %v460
  %v484 = vpop.f32.mrf.mxu0
  %v485 = vadd.f32 %v303, %v484
  %v486 = vpop.f32.mrf.mxu0
  %487 = vdwg.mxu0
  %488 = vmatpush.bf16.msra.mxu0 0
  %489 = vmatpush.bf16.msra.mxu0 0
  %490 = vmatpush.bf16.msra.mxu0 0
  %491 = vmatpush.bf16.msra.mxu0 0
  %492 = vmatpush.bf16.msra.mxu0 %v361
  %493 = vmatpush.bf16.msra.mxu0 %v360
  %494 = vmatpush.bf16.msra.mxu0 %v359
  %495 = vmatpush.bf16.msra.mxu0 %v358
  %496 = vmatmul.bf16.gmra.mxu0 %v460
  %v497 = vpop.f32.mrf.mxu0
  %v498 = vadd.f32 %v341, %v497
  %v499 = vpop.f32.mrf.mxu0
  %500 = vdwg.mxu0
  %v501 = vadd.f32 %v451, %v472
  %v502 = vxor.u32 %v501, 2147483648
  %v503 = vmul.f32 %v502, 1.442695
  %v504 = vpow.pop %v503
  %v505 = vadd.f32 %v504, 1.0
  %v506 = vrcp.pop %v505
  %v507 = vmul.f32 %v505, %v506
  %v508 = vsub.f32 1.0, %v507
  %v509 = vmul.f32 %v506, %v508
  %v510 = vadd.f32 %v506, %v509
  %vm511 = vweird.f32 %v505
  %vm512 = vweird.f32 %v506
  %vm513 = vmor %vm511, %vm512
  %v514 = vsel %vm513, %v506, %v510
  %v515 = vand.u32 2147483647, %v505
  %vm516 = vcmp.eq.f32.partialorder %v515, 8.507059e+37
  %v517 = vand.u32 %v505, 2147483648
  %v518 = vor.u32 1.1754944e-38, %v517
  %v519 = vsel %vm516, %v518, %v514
  %v520 = vmul.f32 1.0, %v519
  %v521 = vadd.f32 %v454, %v485
  %v522 = vxor.u32 %v521, 2147483648
  %v523 = vmul.f32 %v522, 1.442695
  %v524 = vpow.pop %v523
  %v525 = vadd.f32 %v524, 1.0
  %v526 = vrcp.pop %v525
  %v527 = vmul.f32 %v525, %v526
  %v528 = vsub.f32 1.0, %v527
  %v529 = vmul.f32 %v526, %v528
  %v530 = vadd.f32 %v526, %v529
  %vm531 = vweird.f32 %v525
  %vm532 = vweird.f32 %v526
  %vm533 = vmor %vm531, %vm532
  %v534 = vsel %vm533, %v526, %v530
  %v535 = vand.u32 2147483647, %v525
  %vm536 = vcmp.eq.f32.partialorder %v535, 8.507059e+37
  %v537 = vand.u32 %v525, 2147483648
  %v538 = vor.u32 1.1754944e-38, %v537
  %v539 = vsel %vm536, %v538, %v534
  %v540 = vmul.f32 1.0, %v539
  %v541 = vmul.f32 %v520, %v498
  %v542 = vadd.f32 %v457, %v541
  %v543 = vtanh.pop %v542
  %v544 = vsub.f32 1.0, %v540
  %v545 = vmul.f32 %v544, %v543
  %v546 = vmul.f32 %v540, %v448
  %v547 = vadd.f32 %v545, %v546
  %vm548 = vcmp.gt.s32.totalorder %v48, 1
  %v549 = vsel %vm548, 1, 0
  %v550 = vcvt.s32.f32 %v549
  %552 = vset.pattern.permute.xlu0 0
  %553 = vperm.xlu0 %552, %v550
  %v554 = vpop.permute.xlu0 %553
  %v556 = vmul.f32 %v55, %v554
  %v557 = vmul.f32 %v56, %v554
  %v558 = vadd.f32 %v556, %v557
  %v559 = vmul.f32 %v558, %v547
  %v560 = vsub.f32 1.0, %v558
  %v561 = vmul.f32 %v560, %v448
  %v562 = vadd.f32 %v559, %v561
  %v563 = vmul.f32 %v55, %v120
  %v564 = vmul.f32 %v56, %v115
  %v565 = vadd.f32 %v563, %v564
  %v566 = vmul.f32 %v55, %v172
  %v567 = vmul.f32 %v56, %v167
  %v568 = vadd.f32 %v566, %v567
  %v569 = vmul.f32 %v55, %v224
  %v570 = vmul.f32 %v56, %v219
  %v571 = vadd.f32 %v569, %v570
  %v572 = vpack.c.bf16 %v562, %v562
  %v574 = vsel %vm98, %v572, 0
  %576 = vmatpush.bf16.msra.mxu0 0
  %577 = vmatpush.bf16.msra.mxu0 0
  %578 = vmatpush.bf16.msra.mxu0 0
  %579 = vmatpush.bf16.msra.mxu0 0
  %580 = vmatpush.bf16.msra.mxu0 %v282
  %581 = vmatpush.bf16.msra.mxu0 %v281
  %582 = vmatpush.bf16.msra.mxu0 %v280
  %583 = vmatpush.bf16.msra.mxu0 %v279
  %584 = vmatmul.bf16.gmra.mxu0 %v574
  %v585 = vpop.f32.mrf.mxu0
  %v586 = vadd.f32 %v262, %v585
  %v587 = vpop.f32.mrf.mxu0
  %588 = vdwg.mxu0
  %589 = vmatpush.bf16.msra.mxu0 0
  %590 = vmatpush.bf16.msra.mxu0 0
  %591 = vmatpush.bf16.msra.mxu0 0
  %592 = vmatpush.bf16.msra.mxu0 0
  %593 = vmatpush.bf16.msra.mxu0 %v323
  %594 = vmatpush.bf16.msra.mxu0 %v322
  %595 = vmatpush.bf16.msra.mxu0 %v321
  %596 = vmatpush.bf16.msra.mxu0 %v320
  %597 = vmatmul.bf16.gmra.mxu0 %v574
  %v598 = vpop.f32.mrf.mxu0
  %v599 = vadd.f32 %v303, %v598
  %v600 = vpop.f32.mrf.mxu0
  %601 = vdwg.mxu0
  %602 = vmatpush.bf16.msra.mxu0 0
  %603 = vmatpush.bf16.msra.mxu0 0
  %604 = vmatpush.bf16.msra.mxu0 0
  %605 = vmatpush.bf16.msra.mxu0 0
  %606 = vmatpush.bf16.msra.mxu0 %v361
  %607 = vmatpush.bf16.msra.mxu0 %v360
  %608 = vmatpush.bf16.msra.mxu0 %v359
  %609 = vmatpush.bf16.msra.mxu0 %v358
  %610 = vmatmul.bf16.gmra.mxu0 %v574
  %v611 = vpop.f32.mrf.mxu0
  %v612 = vadd.f32 %v341, %v611
  %v613 = vpop.f32.mrf.mxu0
  %614 = vdwg.mxu0
  %v615 = vadd.f32 %v565, %v586
  %v616 = vxor.u32 %v615, 2147483648
  %v617 = vmul.f32 %v616, 1.442695
  %v618 = vpow.pop %v617
  %v619 = vadd.f32 %v618, 1.0
  %v620 = vrcp.pop %v619
  %v621 = vmul.f32 %v619, %v620
  %v622 = vsub.f32 1.0, %v621
  %v623 = vmul.f32 %v620, %v622
  %v624 = vadd.f32 %v620, %v623
  %vm625 = vweird.f32 %v619
  %vm626 = vweird.f32 %v620
  %vm627 = vmor %vm625, %vm626
  %v628 = vsel %vm627, %v620, %v624
  %v629 = vand.u32 2147483647, %v619
  %vm630 = vcmp.eq.f32.partialorder %v629, 8.507059e+37
  %v631 = vand.u32 %v619, 2147483648
  %v632 = vor.u32 1.1754944e-38, %v631
  %v633 = vsel %vm630, %v632, %v628
  %v634 = vmul.f32 1.0, %v633
  %v635 = vadd.f32 %v568, %v599
  %v636 = vxor.u32 %v635, 2147483648
  %v637 = vmul.f32 %v636, 1.442695
  %v638 = vpow.pop %v637
  %v639 = vadd.f32 %v638, 1.0
  %v640 = vrcp.pop %v639
  %v641 = vmul.f32 %v639, %v640
  %v642 = vsub.f32 1.0, %v641
  %v643 = vmul.f32 %v640, %v642
  %v644 = vadd.f32 %v640, %v643
  %vm645 = vweird.f32 %v639
  %vm646 = vweird.f32 %v640
  %vm647 = vmor %vm645, %vm646
  %v648 = vsel %vm647, %v640, %v644
  %v649 = vand.u32 2147483647, %v639
  %vm650 = vcmp.eq.f32.partialorder %v649, 8.507059e+37
  %v651 = vand.u32 %v639, 2147483648
  %v652 = vor.u32 1.1754944e-38, %v651
  %v653 = vsel %vm650, %v652, %v648
  %v654 = vmul.f32 1.0, %v653
  %v655 = vmul.f32 %v634, %v612
  %v656 = vadd.f32 %v571, %v655
  %v657 = vtanh.pop %v656
  %v658 = vsub.f32 1.0, %v654
  %v659 = vmul.f32 %v658, %v657
  %v660 = vmul.f32 %v654, %v562
  %v661 = vadd.f32 %v659, %v660
  %v662 = vmul.f32 %v55, %v441
  %v663 = vmul.f32 %v56, %v435
  %v664 = vadd.f32 %v662, %v663
  %v665 = vmul.f32 %v664, %v661
  %v666 = vmul.f32 %v55, %v445
  %v667 = vmul.f32 %v56, %v665
  %v668 = vadd.f32 %v666, %v667
  %v669 = vmul.f32 %v55, %v559
  %v670 = vmul.f32 %v56, %v559
  %v671 = vadd.f32 %v669, %v670
  %v672 = vmul.f32 %v55, %v665
  %v673 = vmul.f32 %v56, %v445
  %v674 = vadd.f32 %v672, %v673
  %v675 = vld [vmem:[%s6] sm:$0xf]
  %v676 = vld [vmem:[%s6 + $0x4] sm:$0xf]
  %v677 = vld [vmem:[%s6 + $0x8] sm:$0xf]
  %v678 = vld [vmem:[%s6 + $0xc] sm:$0xf]
  %v679 = vld [vmem:[%s6 + $0x10] sm:$0xf]
  %v680 = vld [vmem:[%s6 + $0x14] sm:$0xf]
  %v681 = vld [vmem:[%s6 + $0x18] sm:$0xf]
  %v682 = vld [vmem:[%s6 + $0x1c] sm:$0xf]
  %v683 = vld [vmem:[%s7] sm:$0x1]
  %v684 = vld [vmem:[%s8] sm:$0x1]
  %v685 = vld [vmem:[%s9] sm:$0x1]
  %v686 = vld [vmem:[%s10] sm:$0x1]
  %v687 = vpack.c.bf16 %v671, %v668
  %v688 = vpack.c.bf16 %v674, %v674
  %v690 = vperm.slane %v683, 0
  %v700 = vunpack.c.l.b16 %v675
  %v701 = vunpack.c.l.b16 %v676
  %v702 = vunpack.c.l.b16 %v677
  %v703 = vunpack.c.l.b16 %v678
  %v704 = vunpack.c.l.b16 %v679
  %v705 = vunpack.c.l.b16 %v680
  %v706 = vunpack.c.l.b16 %v681
  %v707 = vunpack.c.l.b16 %v682
  %v708 = vpack.c.b16 %v701, %v700
  %v709 = vpack.c.b16 %v703, %v702
  %v710 = vpack.c.b16 %v705, %v704
  %v711 = vpack.c.b16 %v707, %v706
  %v717 = vsel %vm98, %v687, 0
  %v720 = vsel %vm98, %v688, 0
  %722 = vmatpush.bf16.msra.mxu0 0
  %723 = vmatpush.bf16.msra.mxu0 0
  %724 = vmatpush.bf16.msra.mxu0 0
  %725 = vmatpush.bf16.msra.mxu0 0
  %726 = vmatpush.bf16.msra.mxu0 %v711
  %727 = vmatpush.bf16.msra.mxu0 %v710
  %728 = vmatpush.bf16.msra.mxu0 %v709
  %729 = vmatpush.bf16.msra.mxu0 %v708
  %730 = vmatmul.bf16.gmra.mxu0 %v717
  %v731 = vpop.f32.mrf.mxu0
  %v732 = vadd.f32 %v690, %v731
  %v733 = vpop.f32.mrf.mxu0
  %v734 = vadd.f32 %v690, %v733
  %735 = vmatmul.bf16.gmra.mxu0 %v720
  %v736 = vpop.f32.mrf.mxu0
  %v737 = vadd.f32 %v690, %v736
  %v738 = vpop.f32.mrf.mxu0
  %739 = vdwg.mxu0
  %v740 = vlaneseq
  %v741 = vshrl.u32 %v740, 7
  %vm742 = vcmp.lt.s32.totalorder %v741, 2
  %v743 = vsel %vm742, 1, 0
  %v744 = vcvt.s32.f32 %v743
  %v745 = vmul.f32 %v732, %v744
  %vm746 = vcmask 261120
  %v747 = vsel %vm746, %v745, 0.0
  %748 = vadd.xlane.f32.xlu0 %v747
  %v749 = vpop.xlane.xlu0 %748
  %v750 = vrot.slane %v749, 4
  %v751 = vadd.f32 %v749, %v750
  %v752 = vrot.slane %v751, 2
  %v753 = vadd.f32 %v751, %v752
  %v754 = vrot.slane %v753, 1
  %v755 = vadd.f32 %v753, %v754
  %s756 = vtos %v755
  %v757 = vstv %s756
  %v758 = vrcp.pop 64.0
  %v759 = vmul.f32 64.0, %v758
  %v760 = vsub.f32 1.0, %v759
  %v761 = vmul.f32 %v758, %v760
  %v762 = vadd.f32 %v758, %v761
  %vm763 = vweird.f32 %v758
  %v764 = vsel %vm763, %v758, %v762
  %v765 = vmul.f32 %v757, %v764
  %v766 = vsub.f32 %v732, %v765
  %v767 = vmul.f32 %v766, %v744
  %v768 = vmul.f32 %v767, %v767
  %v769 = vsel %vm746, %v768, 0.0
  %770 = vadd.xlane.f32.xlu0 %v769
  %v771 = vpop.xlane.xlu0 %770
  %v772 = vrot.slane %v771, 4
  %v773 = vadd.f32 %v771, %v772
  %v774 = vrot.slane %v773, 2
  %v775 = vadd.f32 %v773, %v774
  %v776 = vrot.slane %v775, 1
  %v777 = vadd.f32 %v775, %v776
  %s778 = vtos %v777
  %v779 = vstv %s778
  %v780 = vmul.f32 %v779, %v764
  %v781 = vadd.f32 %v780, 1e-05
  %v782 = vrsqrt.pop %v781
  %v783 = vmul.f32 %v782, %v781
  %v784 = vmul.f32 %v783, %v782
  %v785 = vmul.f32 0.5, %v784
  %v786 = vsub.f32 1.5, %v785
  %v787 = vmul.f32 %v782, %v786
  %vm788 = vweird.f32 %v781
  %vm789 = vweird.f32 %v782
  %vm790 = vmor %vm788, %vm789
  %v791 = vsel %vm790, %v782, %v787
  %v792 = vmul.f32 %v766, %v791
  %v794 = vperm.slane %v684, 0
  %795 = vset.pattern.permute.xlu0 0
  %796 = vperm.xlu0 %795, %v794
  %v797 = vpop.permute.xlu0 %796
  %v799 = vmul.f32 %v792, %v797
  %v801 = vperm.slane %v685, 0
  %802 = vset.pattern.permute.xlu0 0
  %803 = vperm.xlu0 %802, %v801
  %v804 = vpop.permute.xlu0 %803
  %v806 = vadd.f32 %v799, %v804
  %v807 = vmax.f32 %v806, 0.0
  %v809 = vperm.slane %v686, 0
  %v811 = vmul.f32 %v807, %v809
  %v812 = vsel %vm746, %v811, 0.0
  %813 = vadd.xlane.f32.xlu0 %v812
  %v814 = vpop.xlane.xlu0 %813
  %v815 = vmul.f32 %v734, %v744
  %v816 = vsel %vm746, %v815, 0.0
  %817 = vadd.xlane.f32.xlu0 %v816
  %v818 = vpop.xlane.xlu0 %817
  %v819 = vrot.slane %v818, 4
  %v820 = vadd.f32 %v818, %v819
  %v821 = vrot.slane %v820, 2
  %v822 = vadd.f32 %v820, %v821
  %v823 = vrot.slane %v822, 1
  %v824 = vadd.f32 %v822, %v823
  %s825 = vtos %v824
  %v826 = vstv %s825
  %v827 = vmul.f32 %v826, %v764
  %v828 = vsub.f32 %v734, %v827
  %v829 = vmul.f32 %v828, %v744
  %v830 = vmul.f32 %v829, %v829
  %v831 = vsel %vm746, %v830, 0.0
  %832 = vadd.xlane.f32.xlu0 %v831
  %v833 = vpop.xlane.xlu0 %832
  %v834 = vrot.slane %v833, 4
  %v835 = vadd.f32 %v833, %v834
  %v836 = vrot.slane %v835, 2
  %v837 = vadd.f32 %v835, %v836
  %v838 = vrot.slane %v837, 1
  %v839 = vadd.f32 %v837, %v838
  %s840 = vtos %v839
  %v841 = vstv %s840
  %v842 = vmul.f32 %v841, %v764
  %v843 = vadd.f32 %v842, 1e-05
  %v844 = vrsqrt.pop %v843
  %v845 = vmul.f32 %v844, %v843
  %v846 = vmul.f32 %v845, %v844
  %v847 = vmul.f32 0.5, %v846
  %v848 = vsub.f32 1.5, %v847
  %v849 = vmul.f32 %v844, %v848
  %vm850 = vweird.f32 %v843
  %vm851 = vweird.f32 %v844
  %vm852 = vmor %vm850, %vm851
  %v853 = vsel %vm852, %v844, %v849
  %v854 = vmul.f32 %v828, %v853
  %855 = vset.pattern.permute.xlu0 1
  %856 = vperm.xlu0 %855, %v794
  %v857 = vpop.permute.xlu0 %856
  %v859 = vmul.f32 %v854, %v857
  %860 = vset.pattern.permute.xlu0 1
  %861 = vperm.xlu0 %860, %v801
  %v862 = vpop.permute.xlu0 %861
  %v864 = vadd.f32 %v859, %v862
  %v865 = vmax.f32 %v864, 0.0
  %v866 = vmul.f32 %v865, %v809
  %v867 = vsel %vm746, %v866, 0.0
  %868 = vadd.xlane.f32.xlu0 %v867
  %v869 = vpop.xlane.xlu0 %868
  %v870 = vmul.f32 %v737, %v744
  %v871 = vsel %vm746, %v870, 0.0
  %872 = vadd.xlane.f32.xlu0 %v871
  %v873 = vpop.xlane.xlu0 %872
  %v874 = vrot.slane %v873, 4
  %v875 = vadd.f32 %v873, %v874
  %v876 = vrot.slane %v875, 2
  %v877 = vadd.f32 %v875, %v876
  %v878 = vrot.slane %v877, 1
  %v879 = vadd.f32 %v877, %v878
  %s880 = vtos %v879
  %v881 = vstv %s880
  %v882 = vmul.f32 %v881, %v764
  %v883 = vsub.f32 %v737, %v882
  %v884 = vmul.f32 %v883, %v744
  %v885 = vmul.f32 %v884, %v884
  %v886 = vsel %vm746, %v885, 0.0
  %887 = vadd.xlane.f32.xlu0 %v886
  %v888 = vpop.xlane.xlu0 %887
  %v889 = vrot.slane %v888, 4
  %v890 = vadd.f32 %v888, %v889
  %v891 = vrot.slane %v890, 2
  %v892 = vadd.f32 %v890, %v891
  %v893 = vrot.slane %v892, 1
  %v894 = vadd.f32 %v892, %v893
  %s895 = vtos %v894
  %v896 = vstv %s895
  %v897 = vmul.f32 %v896, %v764
  %v898 = vadd.f32 %v897, 1e-05
  %v899 = vrsqrt.pop %v898
  %v900 = vmul.f32 %v899, %v898
  %v901 = vmul.f32 %v900, %v899
  %v902 = vmul.f32 0.5, %v901
  %v903 = vsub.f32 1.5, %v902
  %v904 = vmul.f32 %v899, %v903
  %vm905 = vweird.f32 %v898
  %vm906 = vweird.f32 %v899
  %vm907 = vmor %vm905, %vm906
  %v908 = vsel %vm907, %v899, %v904
  %v909 = vmul.f32 %v883, %v908
  %910 = vset.pattern.permute.xlu0 2
  %911 = vperm.xlu0 %910, %v794
  %v912 = vpop.permute.xlu0 %911
  %v914 = vmul.f32 %v909, %v912
  %915 = vset.pattern.permute.xlu0 2
  %916 = vperm.xlu0 %915, %v801
  %v917 = vpop.permute.xlu0 %916
  %v919 = vadd.f32 %v914, %v917
  %v920 = vmax.f32 %v919, 0.0
  %v921 = vmul.f32 %v920, %v809
  %v922 = vsel %vm746, %v921, 0.0
  %923 = vadd.xlane.f32.xlu0 %v922
  %v924 = vpop.xlane.xlu0 %923
  %vm925 = vcmask 7168
  %v926 = vsel %vm925, %v814, %v869
  %vm927 = vcmask 15360
  %v928 = vsel %vm927, %v926, %v924
  %vm929 = vcmask 23552
  %v930 = vsel %vm929, %v928, -inf
  %931 = vmax.xlane.f32.xlu0 %v930
  %v932 = vpop.xlane.xlu0 %931
  %v933 = vsub.f32 %v928, %v932
  %v934 = vmul.f32 %v933, 1.442695
  %v935 = vpow.pop %v934
  %v936 = vsel %vm929, %v935, 0.0
  %937 = vadd.xlane.f32.xlu0 %v936
  %v938 = vpop.xlane.xlu0 %937
  %v939 = vrcp.pop %v938
  %v940 = vmul.f32 %v938, %v939
  %v941 = vsub.f32 1.0, %v940
  %v942 = vmul.f32 %v939, %v941
  %v943 = vadd.f32 %v939, %v942
  %vm944 = vweird.f32 %v938
  %vm945 = vweird.f32 %v939
  %vm946 = vmor %vm944, %vm945
  %v947 = vsel %vm946, %v939, %v943
  %v948 = vand.u32 2147483647, %v938
  %vm949 = vcmp.eq.f32.partialorder %v948, 8.507059e+37
  %v950 = vand.u32 %v938, 2147483648
  %v951 = vor.u32 1.1754944e-38, %v950
  %v952 = vsel %vm949, %v951, %v947
  %v953 = vmul.f32 %v935, %v952
  %955 = vset.pattern.permute.xlu0 0
  %956 = vperm.xlu0 %955, %v953
  %v957 = vpop.permute.xlu0 %956
  %v959 = vmul.f32 %v957, %v668
  %v960 = vadd.f32 %v959, 0.0
  %961 = vset.pattern.permute.xlu0 1
  %962 = vperm.xlu0 %961, %v953
  %v963 = vpop.permute.xlu0 %962
  %v965 = vmul.f32 %v963, %v671
  %v966 = vadd.f32 %v960, %v965
  %967 = vset.pattern.permute.xlu0 2
  %968 = vperm.xlu0 %967, %v953
  %v969 = vpop.permute.xlu0 %968
  %v971 = vmul.f32 %v969, %v674
  %v972 = vadd.f32 %v966, %v971
  %v973 = vpack.c.bf16 %v972, %v972
  %v974 = vld [vmem:[%s11] sm:$0xf]
  %v975 = vld [vmem:[%s11 + $0x4] sm:$0xf]
  %v976 = vld [vmem:[%s11 + $0x8] sm:$0xf]
  %v977 = vld [vmem:[%s11 + $0xc] sm:$0xf]
  %v978 = vld [vmem:[%s11 + $0x10] sm:$0xf]
  %v979 = vld [vmem:[%s11 + $0x14] sm:$0xf]
  %v980 = vld [vmem:[%s11 + $0x18] sm:$0xf]
  %v981 = vld [vmem:[%s11 + $0x1c] sm:$0xf]
  %v982 = vld [vmem:[%s12] sm:$0x1]
  %v984 = vperm.slane %v982, 0
  %v994 = vunpack.c.l.b16 %v974
  %v995 = vunpack.c.l.b16 %v975
  %v996 = vunpack.c.l.b16 %v976
  %v997 = vunpack.c.l.b16 %v977
  %v998 = vunpack.c.l.b16 %v978
  %v999 = vunpack.c.l.b16 %v979
  %v1000 = vunpack.c.l.b16 %v980
  %v1001 = vunpack.c.l.b16 %v981
  %v1002 = vpack.c.b16 %v995, %v994
  %v1003 = vpack.c.b16 %v997, %v996
  %v1004 = vpack.c.b16 %v999, %v998
  %v1005 = vpack.c.b16 %v1001, %v1000
  %v1011 = vsel %vm98, %v973, 0
  %1013 = vmatpush.bf16.msra.mxu0 0
  %1014 = vmatpush.bf16.msra.mxu0 0
  %1015 = vmatpush.bf16.msra.mxu0 0
  %1016 = vmatpush.bf16.msra.mxu0 0
  %1017 = vmatpush.bf16.msra.mxu0 %v1005
  %1018 = vmatpush.bf16.msra.mxu0 %v1004
  %1019 = vmatpush.bf16.msra.mxu0 %v1003
  %1020 = vmatpush.bf16.msra.mxu0 %v1002
  %1021 = vmatmul.bf16.gmra.mxu0 %v1011
  %v1022 = vpop.f32.mrf.mxu0
  %v1023 = vadd.f32 %v984, %v1022
  %v1024 = vpop.f32.mrf.mxu0
  %1025 = vdwg.mxu0
  %vm1026 = vcmask 39936
  %1027 = vst.msk [vmem:[%s13] sm:$0xff] %vm1026, %v1023
  // Predicated region
  $region54: #{han_forward.3} parent=0 // pred_check
    _
  $region55: #{han_forward.3} parent=0 // pred_check_branch
    %1029 = sbr.rel (0) target = $region57
  $region56: #{han_forward.3} parent=0 // pred_region
    _
  $region57: #{han_forward.3} parent=0 // pred_fallthru
    _
  // Predicated region
  $region58: #{han_forward.3} parent=0 // pred_check
    _
  $region59: #{han_forward.3} parent=0 // pred_check_branch
    %1031 = sbr.rel (0) target = $region61
  $region60: #{han_forward.3} parent=0 // pred_region
    _
  $region61: #{han_forward.3} parent=0 // pred_fallthru
    _

// kernel: han_forward.2
$region0: #{han_forward.2}
  #allocation0 [shape = 'u32[]', space=smem, size = 0x4, offset = 0x4, fixed_abs, tag = 'smem constant byte address 0x4 - core index']
  #allocation1 [shape = 'u32[72,128]{1,0:T(1,128)}', space=vmem, size = 0x9000, scoped, tag = 'internal scratch']
  %s0 = inlined_call_operand.vmem [shape: bf16[64,32], index: 0, kind: input, shape index: {}]
  %s1 = inlined_call_operand.vmem [shape: s32[8,1], index: 1, kind: input, shape index: {}]
  %s2 = inlined_call_operand.vmem [shape: bf16[3,32,64], index: 2, kind: input, shape index: {}]
  %s3 = inlined_call_operand.vmem [shape: bf16[3,64,64], index: 3, kind: input, shape index: {}]
  %s4 = inlined_call_operand.vmem [shape: f32[3,64], index: 4, kind: input, shape index: {}]
  %s5 = inlined_call_operand.vmem [shape: f32[3,64], index: 5, kind: input, shape index: {}]
  %s6 = inlined_call_operand.vmem [shape: bf16[64,32], index: 6, kind: input, shape index: {}]
  %s7 = inlined_call_operand.vmem [shape: f32[1,32], index: 7, kind: input, shape index: {}]
  %s8 = inlined_call_operand.vmem [shape: f32[1,8], index: 8, kind: input, shape index: {}]
  %s9 = inlined_call_operand.vmem [shape: f32[1,8], index: 9, kind: input, shape index: {}]
  %s10 = inlined_call_operand.vmem [shape: f32[1,32], index: 10, kind: input, shape index: {}]
  %s11 = inlined_call_operand.vmem [shape: f32[8,64], index: 11, kind: output, shape index: {}]
  %s12 = sld [smem:[#allocation0]]
  $region54: #{han_forward.2} parent=0
    _
  %s14 = ssub.s32 1, %s12
  %s15 = scalar_select 0, %s14, %s12
  // Predicated region
  $region2: #{han_forward.2} parent=0 // pred_check
    _
  $region3: #{han_forward.2} parent=0 // pred_check_branch
    %17 = sbr.rel (0) target = $region5
  $region4: #{han_forward.2} parent=0 // pred_region
    _
  $region5: #{han_forward.2} parent=0 // pred_fallthru
    _
  // Predicated region
  $region6: #{han_forward.2} parent=0 // pred_check
    _
  $region7: #{han_forward.2} parent=0 // pred_check_branch
    %19 = sbr.rel (0) target = $region9
  $region8: #{han_forward.2} parent=0 // pred_region
    _
  $region9: #{han_forward.2} parent=0 // pred_fallthru
    _
  // Predicated region
  $region10: #{han_forward.2} parent=0 // pred_check
    _
  $region11: #{han_forward.2} parent=0 // pred_check_branch
    %21 = sbr.rel (0) target = $region13
  $region12: #{han_forward.2} parent=0 // pred_region
    _
  $region13: #{han_forward.2} parent=0 // pred_fallthru
    _
  // Predicated region
  $region14: #{han_forward.2} parent=0 // pred_check
    _
  $region15: #{han_forward.2} parent=0 // pred_check_branch
    %23 = sbr.rel (0) target = $region17
  $region16: #{han_forward.2} parent=0 // pred_region
    _
  $region17: #{han_forward.2} parent=0 // pred_fallthru
    _
  // Predicated region
  $region18: #{han_forward.2} parent=0 // pred_check
    _
  $region19: #{han_forward.2} parent=0 // pred_check_branch
    %25 = sbr.rel (0) target = $region21
  $region20: #{han_forward.2} parent=0 // pred_region
    _
  $region21: #{han_forward.2} parent=0 // pred_fallthru
    _
  // Predicated region
  $region22: #{han_forward.2} parent=0 // pred_check
    _
  $region23: #{han_forward.2} parent=0 // pred_check_branch
    %27 = sbr.rel (0) target = $region25
  $region24: #{han_forward.2} parent=0 // pred_region
    _
  $region25: #{han_forward.2} parent=0 // pred_fallthru
    _
  // Predicated region
  $region26: #{han_forward.2} parent=0 // pred_check
    _
  $region27: #{han_forward.2} parent=0 // pred_check_branch
    %29 = sbr.rel (0) target = $region29
  $region28: #{han_forward.2} parent=0 // pred_region
    _
  $region29: #{han_forward.2} parent=0 // pred_fallthru
    _
  // Predicated region
  $region30: #{han_forward.2} parent=0 // pred_check
    _
  $region31: #{han_forward.2} parent=0 // pred_check_branch
    %31 = sbr.rel (0) target = $region33
  $region32: #{han_forward.2} parent=0 // pred_region
    _
  $region33: #{han_forward.2} parent=0 // pred_fallthru
    _
  // Predicated region
  $region34: #{han_forward.2} parent=0 // pred_check
    _
  $region35: #{han_forward.2} parent=0 // pred_check_branch
    %33 = sbr.rel (0) target = $region37
  $region36: #{han_forward.2} parent=0 // pred_region
    _
  $region37: #{han_forward.2} parent=0 // pred_fallthru
    _
  // Predicated region
  $region38: #{han_forward.2} parent=0 // pred_check
    _
  $region39: #{han_forward.2} parent=0 // pred_check_branch
    %35 = sbr.rel (0) target = $region41
  $region40: #{han_forward.2} parent=0 // pred_region
    _
  $region41: #{han_forward.2} parent=0 // pred_fallthru
    _
  // Predicated region
  $region42: #{han_forward.2} parent=0 // pred_check
    _
  $region43: #{han_forward.2} parent=0 // pred_check_branch
    %37 = sbr.rel (0) target = $region45
  $region44: #{han_forward.2} parent=0 // pred_region
    _
  $region45: #{han_forward.2} parent=0 // pred_fallthru
    _
  %v39 = vld [vmem:[%s0] sm:$0xf]
  %v40 = vld [vmem:[%s0 + $0x4] sm:$0xf]
  %v41 = vld [vmem:[%s0 + $0x8] sm:$0xf]
  %v42 = vld [vmem:[%s0 + $0xc] sm:$0xf]
  %v43 = vld [vmem:[%s0 + $0x10] sm:$0xf]
  %v44 = vld [vmem:[%s0 + $0x14] sm:$0xf]
  %v45 = vld [vmem:[%s0 + $0x18] sm:$0xf]
  %v46 = vld [vmem:[%s0 + $0x1c] sm:$0xf]
  %v47 = vld [vmem:[%s1] sm:$0xff]
  %v48 = vld [vmem:[%s4] sm:$0x7]
  %v49 = vld [vmem:[%s5] sm:$0x7]
  %v50 = vlaneseq
  %v51 = vand.u32 %v50, 127
  %vm52 = vcmp.lt.s32.totalorder %v51, 32
  %v53 = vsel %vm52, 1, 0
  %v54 = vcvt.s32.f32 %v53
  %v55 = vsub.f32 1.0, %v54
  %v56 = vld [vmem:[%s2] sm:$0xf]
  %v57 = vld [vmem:[%s2 + $0x4] sm:$0xf]
  %v58 = vld [vmem:[%s2 + $0x8] sm:$0xf]
  %v59 = vld [vmem:[%s2 + $0xc] sm:$0xf]
  %v60 = vperm.slane %v48, 0
  %v69 = vunpack.c.l.b16 %v39
  %v70 = vunpack.c.l.b16 %v40
  %v71 = vunpack.c.l.b16 %v41
  %v72 = vunpack.c.l.b16 %v42
  %v73 = vunpack.c.l.b16 %v43
  %v74 = vunpack.c.l.b16 %v44
  %v75 = vunpack.c.l.b16 %v45
  %v76 = vunpack.c.l.b16 %v46
  %v77 = vpack.c.b16 %v70, %v69
  %v78 = vpack.c.b16 %v72, %v71
  %v79 = vpack.c.b16 %v74, %v73
  %v80 = vpack.c.b16 %v76, %v75
  %v85 = vunpack.c.l.b16 %v56
  %v86 = vunpack.c.l.b16 %v57
  %v87 = vunpack.c.l.b16 %v58
  %v88 = vunpack.c.l.b16 %v59
  %v89 = vpack.c.b16 %v86, %v85
  %v90 = vpack.c.b16 %v88, %v87
  %vm93 = vcmask 261120
  %v95 = vsel %vm93, %v77, 0
  %v98 = vsel %vm93, %v78, 0
  %v101 = vsel %vm93, %v79, 0
  %v104 = vsel %vm93, %v80, 0
  %106 = vmatpush.bf16.msra.mxu0 0
  %107 = vmatpush.bf16.msra.mxu0 0
  %108 = vmatpush.bf16.msra.mxu0 0
  %109 = vmatpush.bf16.msra.mxu0 0
  %110 = vmatpush.bf16.msra.mxu0 0
  %111 = vmatpush.bf16.msra.mxu0 0
  %112 = vmatpush.bf16.msra.mxu0 %v90
  %113 = vmatpush.bf16.msra.mxu0 %v89
  %114 = vmatmul.bf16.gmra.mxu0 %v95
  %v115 = vpop.f32.mrf.mxu0
  %v116 = vadd.f32 %v60, %v115
  %v117 = vpop.f32.mrf.mxu0
  %v118 = vadd.f32 %v60, %v117
  %119 = vmatmul.bf16.gmra.mxu0 %v98
  %v120 = vpop.f32.mrf.mxu0
  %v121 = vadd.f32 %v60, %v120
  %v122 = vpop.f32.mrf.mxu0
  %v123 = vadd.f32 %v60, %v122
  %124 = vmatmul.bf16.gmra.mxu0 %v101
  %v125 = vpop.f32.mrf.mxu0
  %v126 = vadd.f32 %v60, %v125
  %v127 = vpop.f32.mrf.mxu0
  %v128 = vadd.f32 %v60, %v127
  %129 = vmatmul.bf16.gmra.mxu0 %v104
  %v130 = vpop.f32.mrf.mxu0
  %v131 = vadd.f32 %v60, %v130
  %v132 = vpop.f32.mrf.mxu0
  %v133 = vadd.f32 %v60, %v132
  %134 = vdwg.mxu0
  %s135 = scalar_lea.vmem %s2, 16
  %v136 = vld [vmem:[%s135] sm:$0xf]
  %v137 = vld [vmem:[%s135 + $0x4] sm:$0xf]
  %v138 = vld [vmem:[%s135 + $0x8] sm:$0xf]
  %v139 = vld [vmem:[%s135 + $0xc] sm:$0xf]
  %v140 = vperm.slane %v48, 1
  %v145 = vunpack.c.l.b16 %v136
  %v146 = vunpack.c.l.b16 %v137
  %v147 = vunpack.c.l.b16 %v138
  %v148 = vunpack.c.l.b16 %v139
  %v149 = vpack.c.b16 %v146, %v145
  %v150 = vpack.c.b16 %v148, %v147
  %153 = vmatpush.bf16.msra.mxu0 0
  %154 = vmatpush.bf16.msra.mxu0 0
  %155 = vmatpush.bf16.msra.mxu0 0
  %156 = vmatpush.bf16.msra.mxu0 0
  %157 = vmatpush.bf16.msra.mxu0 0
  %158 = vmatpush.bf16.msra.mxu0 0
  %159 = vmatpush.bf16.msra.mxu0 %v150
  %160 = vmatpush.bf16.msra.mxu0 %v149
  %161 = vmatmul.bf16.gmra.mxu0 %v95
  %v162 = vpop.f32.mrf.mxu0
  %v163 = vadd.f32 %v140, %v162
  %v164 = vpop.f32.mrf.mxu0
  %v165 = vadd.f32 %v140, %v164
  %166 = vmatmul.bf16.gmra.mxu0 %v98
  %v167 = vpop.f32.mrf.mxu0
  %v168 = vadd.f32 %v140, %v167
  %v169 = vpop.f32.mrf.mxu0
  %v170 = vadd.f32 %v140, %v169
  %171 = vmatmul.bf16.gmra.mxu0 %v101
  %v172 = vpop.f32.mrf.mxu0
  %v173 = vadd.f32 %v140, %v172
  %v174 = vpop.f32.mrf.mxu0
  %v175 = vadd.f32 %v140, %v174
  %176 = vmatmul.bf16.gmra.mxu0 %v104
  %v177 = vpop.f32.mrf.mxu0
  %v178 = vadd.f32 %v140, %v177
  %v179 = vpop.f32.mrf.mxu0
  %v180 = vadd.f32 %v140, %v179
  %181 = vdwg.mxu0
  %s182 = scalar_lea.vmem %s2, 32
  %v183 = vld [vmem:[%s182] sm:$0xf]
  %v184 = vld [vmem:[%s182 + $0x4] sm:$0xf]
  %v185 = vld [vmem:[%s182 + $0x8] sm:$0xf]
  %v186 = vld [vmem:[%s182 + $0xc] sm:$0xf]
  %v187 = vperm.slane %v48, 2
  %v192 = vunpack.c.l.b16 %v183
  %v193 = vunpack.c.l.b16 %v184
  %v194 = vunpack.c.l.b16 %v185
  %v195 = vunpack.c.l.b16 %v186
  %v196 = vpack.c.b16 %v193, %v192
  %v197 = vpack.c.b16 %v195, %v194
  %200 = vmatpush.bf16.msra.mxu0 0
  %201 = vmatpush.bf16.msra.mxu0 0
  %202 = vmatpush.bf16.msra.mxu0 0
  %203 = vmatpush.bf16.msra.mxu0 0
  %204 = vmatpush.bf16.msra.mxu0 0
  %205 = vmatpush.bf16.msra.mxu0 0
  %206 = vmatpush.bf16.msra.mxu0 %v197
  %207 = vmatpush.bf16.msra.mxu0 %v196
  %208 = vmatmul.bf16.gmra.mxu0 %v95
  %v209 = vpop.f32.mrf.mxu0
  %v210 = vadd.f32 %v187, %v209
  %v211 = vpop.f32.mrf.mxu0
  %v212 = vadd.f32 %v187, %v211
  %213 = vmatmul.bf16.gmra.mxu0 %v98
  %v214 = vpop.f32.mrf.mxu0
  %v215 = vadd.f32 %v187, %v214
  %v216 = vpop.f32.mrf.mxu0
  %v217 = vadd.f32 %v187, %v216
  %218 = vmatmul.bf16.gmra.mxu0 %v101
  %v219 = vpop.f32.mrf.mxu0
  %v220 = vadd.f32 %v187, %v219
  %v221 = vpop.f32.mrf.mxu0
  %v222 = vadd.f32 %v187, %v221
  %223 = vmatmul.bf16.gmra.mxu0 %v104
  %v224 = vpop.f32.mrf.mxu0
  %v225 = vadd.f32 %v187, %v224
  %v226 = vpop.f32.mrf.mxu0
  %v227 = vadd.f32 %v187, %v226
  %228 = vdwg.mxu0
  %v229 = vld [vmem:[%s3] sm:$0xf]
  %v230 = vld [vmem:[%s3 + $0x4] sm:$0xf]
  %v231 = vld [vmem:[%s3 + $0x8] sm:$0xf]
  %v232 = vld [vmem:[%s3 + $0xc] sm:$0xf]
  %v233 = vld [vmem:[%s3 + $0x10] sm:$0xf]
  %v234 = vld [vmem:[%s3 + $0x14] sm:$0xf]
  %v235 = vld [vmem:[%s3 + $0x18] sm:$0xf]
  %v236 = vld [vmem:[%s3 + $0x1c] sm:$0xf]
  %s237 = scalar_lea.vmem %s3, 32
  %v238 = vld [vmem:[%s237] sm:$0xf]
  %v239 = vld [vmem:[%s237 + $0x4] sm:$0xf]
  %v240 = vld [vmem:[%s237 + $0x8] sm:$0xf]
  %v241 = vld [vmem:[%s237 + $0xc] sm:$0xf]
  %v242 = vld [vmem:[%s237 + $0x10] sm:$0xf]
  %v243 = vld [vmem:[%s237 + $0x14] sm:$0xf]
  %v244 = vld [vmem:[%s237 + $0x18] sm:$0xf]
  %v245 = vld [vmem:[%s237 + $0x1c] sm:$0xf]
  %s246 = scalar_lea.vmem %s3, 64
  %v247 = vld [vmem:[%s246] sm:$0xf]
  %v248 = vld [vmem:[%s246 + $0x4] sm:$0xf]
  %v249 = vld [vmem:[%s246 + $0x8] sm:$0xf]
  %v250 = vld [vmem:[%s246 + $0xc] sm:$0xf]
  %v251 = vld [vmem:[%s246 + $0x10] sm:$0xf]
  %v252 = vld [vmem:[%s246 + $0x14] sm:$0xf]
  %v253 = vld [vmem:[%s246 + $0x18] sm:$0xf]
  %v254 = vld [vmem:[%s246 + $0x1c] sm:$0xf]
  %v255 = vmul.f32 %v54, %v116
  %v256 = vmul.f32 %v55, %v133
  %v257 = vadd.f32 %v255, %v256
  %v258 = vmul.f32 %v54, %v163
  %v259 = vmul.f32 %v55, %v180
  %v260 = vadd.f32 %v258, %v259
  %v261 = vmul.f32 %v54, %v210
  %v262 = vmul.f32 %v55, %v227
  %v263 = vadd.f32 %v261, %v262
  %v264 = vperm.slane %v49, 0
  %v273 = vunpack.c.l.b16 %v229
  %v274 = vunpack.c.l.b16 %v230
  %v275 = vunpack.c.l.b16 %v231
  %v276 = vunpack.c.l.b16 %v232
  %v277 = vunpack.c.l.b16 %v233
  %v278 = vunpack.c.l.b16 %v234
  %v279 = vunpack.c.l.b16 %v235
  %v280 = vunpack.c.l.b16 %v236
  %v281 = vpack.c.b16 %v274, %v273
  %v282 = vpack.c.b16 %v276, %v275
  %v283 = vpack.c.b16 %v278, %v277
  %v284 = vpack.c.b16 %v280, %v279
  %vm289 = vcmask 523264
  %v291 = vsel %vm289, 0, 0
  %293 = vmatpush.bf16.msra.mxu0 0
  %294 = vmatpush.bf16.msra.mxu0 0
  %295 = vmatpush.bf16.msra.mxu0 0
  %296 = vmatpush.bf16.msra.mxu0 0
  %297 = vmatpush.bf16.msra.mxu0 %v284
  %298 = vmatpush.bf16.msra.mxu0 %v283
  %299 = vmatpush.bf16.msra.mxu0 %v282
  %300 = vmatpush.bf16.msra.mxu0 %v281
  %301 = vmatmul.bf16.gmra.mxu0 %v291
  %v302 = vpop.f32.mrf.mxu0
  %v303 = vadd.f32 %v264, %v302
  %v304 = vpop.f32.mrf.mxu0
  %305 = vdwg.mxu0
  %v306 = vperm.slane %v49, 1
  %v315 = vunpack.c.l.b16 %v238
  %v316 = vunpack.c.l.b16 %v239
  %v317 = vunpack.c.l.b16 %v240
  %v318 = vunpack.c.l.b16 %v241
  %v319 = vunpack.c.l.b16 %v242
  %v320 = vunpack.c.l.b16 %v243
  %v321 = vunpack.c.l.b16 %v244
  %v322 = vunpack.c.l.b16 %v245
  %v323 = vpack.c.b16 %v316, %v315
  %v324 = vpack.c.b16 %v318, %v317
  %v325 = vpack.c.b16 %v320, %v319
  %v326 = vpack.c.b16 %v322, %v321
  %331 = vmatpush.bf16.msra.mxu0 0
  %332 = vmatpush.bf16.msra.mxu0 0
  %333 = vmatpush.bf16.msra.mxu0 0
  %334 = vmatpush.bf16.msra.mxu0 0
  %335 = vmatpush.bf16.msra.mxu0 %v326
  %336 = vmatpush.bf16.msra.mxu0 %v325
  %337 = vmatpush.bf16.msra.mxu0 %v324
  %338 = vmatpush.bf16.msra.mxu0 %v323
  %339 = vmatmul.bf16.gmra.mxu0 %v291
  %v340 = vpop.f32.mrf.mxu0
  %v341 = vadd.f32 %v306, %v340
  %v342 = vpop.f32.mrf.mxu0
  %343 = vdwg.mxu0
  %v344 = vperm.slane %v49, 2
  %v353 = vunpack.c.l.b16 %v247
  %v354 = vunpack.c.l.b16 %v248
  %v355 = vunpack.c.l.b16 %v249
  %v356 = vunpack.c.l.b16 %v250
  %v357 = vunpack.c.l.b16 %v251
  %v358 = vunpack.c.l.b16 %v252
  %v359 = vunpack.c.l.b16 %v253
  %v360 = vunpack.c.l.b16 %v254
  %v361 = vpack.c.b16 %v354, %v353
  %v362 = vpack.c.b16 %v356, %v355
  %v363 = vpack.c.b16 %v358, %v357
  %v364 = vpack.c.b16 %v360, %v359
  %369 = vmatpush.bf16.msra.mxu0 0
  %370 = vmatpush.bf16.msra.mxu0 0
  %371 = vmatpush.bf16.msra.mxu0 0
  %372 = vmatpush.bf16.msra.mxu0 0
  %373 = vmatpush.bf16.msra.mxu0 %v364
  %374 = vmatpush.bf16.msra.mxu0 %v363
  %375 = vmatpush.bf16.msra.mxu0 %v362
  %376 = vmatpush.bf16.msra.mxu0 %v361
  %377 = vmatmul.bf16.gmra.mxu0 %v291
  %v378 = vpop.f32.mrf.mxu0
  %v379 = vadd.f32 %v344, %v378
  %v380 = vpop.f32.mrf.mxu0
  %381 = vdwg.mxu0
  %v382 = vadd.f32 %v257, %v303
  %v383 = vxor.u32 %v382, 2147483648
  %v384 = vmul.f32 %v383, 1.442695
  %v385 = vpow.pop %v384
  %v386 = vadd.f32 %v385, 1.0
  %v387 = vrcp.pop %v386
  %v388 = vmul.f32 %v386, %v387
  %v389 = vsub.f32 1.0, %v388
  %v390 = vmul.f32 %v387, %v389
  %v391 = vadd.f32 %v387, %v390
  %vm392 = vweird.f32 %v386
  %vm393 = vweird.f32 %v387
  %vm394 = vmor %vm392, %vm393
  %v395 = vsel %vm394, %v387, %v391
  %v396 = vand.u32 2147483647, %v386
  %vm397 = vcmp.eq.f32.partialorder %v396, 8.507059e+37
  %v398 = vand.u32 %v386, 2147483648
  %v399 = vor.u32 1.1754944e-38, %v398
  %v400 = vsel %vm397, %v399, %v395
  %v401 = vmul.f32 1.0, %v400
  %v402 = vadd.f32 %v260, %v341
  %v403 = vxor.u32 %v402, 2147483648
  %v404 = vmul.f32 %v403, 1.442695
  %v405 = vpow.pop %v404
  %v406 = vadd.f32 %v405, 1.0
  %v407 = vrcp.pop %v406
  %v408 = vmul.f32 %v406, %v407
  %v409 = vsub.f32 1.0, %v408
  %v410 = vmul.f32 %v407, %v409
  %v411 = vadd.f32 %v407, %v410
  %vm412 = vweird.f32 %v406
  %vm413 = vweird.f32 %v407
  %vm414 = vmor %vm412, %vm413
  %v415 = vsel %vm414, %v407, %v411
  %v416 = vand.u32 2147483647, %v406
  %vm417 = vcmp.eq.f32.partialorder %v416, 8.507059e+37
  %v418 = vand.u32 %v406, 2147483648
  %v419 = vor.u32 1.1754944e-38, %v418
  %v420 = vsel %vm417, %v419, %v415
  %v421 = vmul.f32 1.0, %v420
  %v422 = vmul.f32 %v401, %v379
  %v423 = vadd.f32 %v263, %v422
  %v424 = vtanh.pop %v423
  %v425 = vsub.f32 1.0, %v421
  %v426 = vmul.f32 %v425, %v424
  %v427 = vmul.f32 %v421, 0.0
  %v428 = vadd.f32 %v426, %v427
  %vm429 = vcmp.gt.s32.totalorder %v47, 0
  %v430 = vsel %vm429, 1, 0
  %v431 = vcvt.s32.f32 %v430
  %vm432 = vcmp.gt.s32.totalorder %v47, 7
  %v433 = vsel %vm432, 1, 0
  %v434 = vcvt.s32.f32 %v433
  %436 = vset.pattern.permute.xlu0 0
  %437 = vperm.xlu0 %436, %v431
  %v438 = vpop.permute.xlu0 %437
  %v440 = vmul.f32 %v54, %v438
  %442 = vset.pattern.permute.xlu0 0
  %443 = vperm.xlu0 %442, %v434
  %v444 = vpop.permute.xlu0 %443
  %v446 = vmul.f32 %v55, %v444
  %v447 = vadd.f32 %v440, %v446
  %v448 = vmul.f32 %v447, %v428
  %v449 = vsub.f32 1.0, %v447
  %v450 = vmul.f32 %v449, 0.0
  %v451 = vadd.f32 %v448, %v450
  %v452 = vmul.f32 %v54, %v118
  %v453 = vmul.f32 %v55, %v131
  %v454 = vadd.f32 %v452, %v453
  %v455 = vmul.f32 %v54, %v165
  %v456 = vmul.f32 %v55, %v178
  %v457 = vadd.f32 %v455, %v456
  %v458 = vmul.f32 %v54, %v212
  %v459 = vmul.f32 %v55, %v225
  %v460 = vadd.f32 %v458, %v459
  %v461 = vpack.c.bf16 %v451, %v451
  %v463 = vsel %vm289, %v461, 0
  %465 = vmatpush.bf16.msra.mxu0 0
  %466 = vmatpush.bf16.msra.mxu0 0
  %467 = vmatpush.bf16.msra.mxu0 0
  %468 = vmatpush.bf16.msra.mxu0 0
  %469 = vmatpush.bf16.msra.mxu0 %v284
  %470 = vmatpush.bf16.msra.mxu0 %v283
  %471 = vmatpush.bf16.msra.mxu0 %v282
  %472 = vmatpush.bf16.msra.mxu0 %v281
  %473 = vmatmul.bf16.gmra.mxu0 %v463
  %v474 = vpop.f32.mrf.mxu0
  %v475 = vadd.f32 %v264, %v474
  %v476 = vpop.f32.mrf.mxu0
  %477 = vdwg.mxu0
  %478 = vmatpush.bf16.msra.mxu0 0
  %479 = vmatpush.bf16.msra.mxu0 0
  %480 = vmatpush.bf16.msra.mxu0 0
  %481 = vmatpush.bf16.msra.mxu0 0
  %482 = vmatpush.bf16.msra.mxu0 %v326
  %483 = vmatpush.bf16.msra.mxu0 %v325
  %484 = vmatpush.bf16.msra.mxu0 %v324
  %485 = vmatpush.bf16.msra.mxu0 %v323
  %486 = vmatmul.bf16.gmra.mxu0 %v463
  %v487 = vpop.f32.mrf.mxu0
  %v488 = vadd.f32 %v306, %v487
  %v489 = vpop.f32.mrf.mxu0
  %490 = vdwg.mxu0
  %491 = vmatpush.bf16.msra.mxu0 0
  %492 = vmatpush.bf16.msra.mxu0 0
  %493 = vmatpush.bf16.msra.mxu0 0
  %494 = vmatpush.bf16.msra.mxu0 0
  %495 = vmatpush.bf16.msra.mxu0 %v364
  %496 = vmatpush.bf16.msra.mxu0 %v363
  %497 = vmatpush.bf16.msra.mxu0 %v362
  %498 = vmatpush.bf16.msra.mxu0 %v361
  %499 = vmatmul.bf16.gmra.mxu0 %v463
  %v500 = vpop.f32.mrf.mxu0
  %v501 = vadd.f32 %v344, %v500
  %v502 = vpop.f32.mrf.mxu0
  %503 = vdwg.mxu0
  %v504 = vadd.f32 %v454, %v475
  %v505 = vxor.u32 %v504, 2147483648
  %v506 = vmul.f32 %v505, 1.442695
  %v507 = vpow.pop %v506
  %v508 = vadd.f32 %v507, 1.0
  %v509 = vrcp.pop %v508
  %v510 = vmul.f32 %v508, %v509
  %v511 = vsub.f32 1.0, %v510
  %v512 = vmul.f32 %v509, %v511
  %v513 = vadd.f32 %v509, %v512
  %vm514 = vweird.f32 %v508
  %vm515 = vweird.f32 %v509
  %vm516 = vmor %vm514, %vm515
  %v517 = vsel %vm516, %v509, %v513
  %v518 = vand.u32 2147483647, %v508
  %vm519 = vcmp.eq.f32.partialorder %v518, 8.507059e+37
  %v520 = vand.u32 %v508, 2147483648
  %v521 = vor.u32 1.1754944e-38, %v520
  %v522 = vsel %vm519, %v521, %v517
  %v523 = vmul.f32 1.0, %v522
  %v524 = vadd.f32 %v457, %v488
  %v525 = vxor.u32 %v524, 2147483648
  %v526 = vmul.f32 %v525, 1.442695
  %v527 = vpow.pop %v526
  %v528 = vadd.f32 %v527, 1.0
  %v529 = vrcp.pop %v528
  %v530 = vmul.f32 %v528, %v529
  %v531 = vsub.f32 1.0, %v530
  %v532 = vmul.f32 %v529, %v531
  %v533 = vadd.f32 %v529, %v532
  %vm534 = vweird.f32 %v528
  %vm535 = vweird.f32 %v529
  %vm536 = vmor %vm534, %vm535
  %v537 = vsel %vm536, %v529, %v533
  %v538 = vand.u32 2147483647, %v528
  %vm539 = vcmp.eq.f32.partialorder %v538, 8.507059e+37
  %v540 = vand.u32 %v528, 2147483648
  %v541 = vor.u32 1.1754944e-38, %v540
  %v542 = vsel %vm539, %v541, %v537
  %v543 = vmul.f32 1.0, %v542
  %v544 = vmul.f32 %v523, %v501
  %v545 = vadd.f32 %v460, %v544
  %v546 = vtanh.pop %v545
  %v547 = vsub.f32 1.0, %v543
  %v548 = vmul.f32 %v547, %v546
  %v549 = vmul.f32 %v543, %v451
  %v550 = vadd.f32 %v548, %v549
  %vm551 = vcmp.gt.s32.totalorder %v47, 1
  %v552 = vsel %vm551, 1, 0
  %v553 = vcvt.s32.f32 %v552
  %vm554 = vcmp.gt.s32.totalorder %v47, 6
  %v555 = vsel %vm554, 1, 0
  %v556 = vcvt.s32.f32 %v555
  %558 = vset.pattern.permute.xlu0 0
  %559 = vperm.xlu0 %558, %v553
  %v560 = vpop.permute.xlu0 %559
  %v562 = vmul.f32 %v54, %v560
  %564 = vset.pattern.permute.xlu0 0
  %565 = vperm.xlu0 %564, %v556
  %v566 = vpop.permute.xlu0 %565
  %v568 = vmul.f32 %v55, %v566
  %v569 = vadd.f32 %v562, %v568
  %v570 = vmul.f32 %v569, %v550
  %v571 = vsub.f32 1.0, %v569
  %v572 = vmul.f32 %v571, %v451
  %v573 = vadd.f32 %v570, %v572
  %v574 = vmul.f32 %v54, %v121
  %v575 = vmul.f32 %v55, %v128
  %v576 = vadd.f32 %v574, %v575
  %v577 = vmul.f32 %v54, %v168
  %v578 = vmul.f32 %v55, %v175
  %v579 = vadd.f32 %v577, %v578
  %v580 = vmul.f32 %v54, %v215
  %v581 = vmul.f32 %v55, %v222
  %v582 = vadd.f32 %v580, %v581
  %v583 = vpack.c.bf16 %v573, %v573
  %v585 = vsel %vm289, %v583, 0
  %587 = vmatpush.bf16.msra.mxu0 0
  %588 = vmatpush.bf16.msra.mxu0 0
  %589 = vmatpush.bf16.msra.mxu0 0
  %590 = vmatpush.bf16.msra.mxu0 0
  %591 = vmatpush.bf16.msra.mxu0 %v284
  %592 = vmatpush.bf16.msra.mxu0 %v283
  %593 = vmatpush.bf16.msra.mxu0 %v282
  %594 = vmatpush.bf16.msra.mxu0 %v281
  %595 = vmatmul.bf16.gmra.mxu0 %v585
  %v596 = vpop.f32.mrf.mxu0
  %v597 = vadd.f32 %v264, %v596
  %v598 = vpop.f32.mrf.mxu0
  %599 = vdwg.mxu0
  %600 = vmatpush.bf16.msra.mxu0 0
  %601 = vmatpush.bf16.msra.mxu0 0
  %602 = vmatpush.bf16.msra.mxu0 0
  %603 = vmatpush.bf16.msra.mxu0 0
  %604 = vmatpush.bf16.msra.mxu0 %v326
  %605 = vmatpush.bf16.msra.mxu0 %v325
  %606 = vmatpush.bf16.msra.mxu0 %v324
  %607 = vmatpush.bf16.msra.mxu0 %v323
  %608 = vmatmul.bf16.gmra.mxu0 %v585
  %v609 = vpop.f32.mrf.mxu0
  %v610 = vadd.f32 %v306, %v609
  %v611 = vpop.f32.mrf.mxu0
  %612 = vdwg.mxu0
  %613 = vmatpush.bf16.msra.mxu0 0
  %614 = vmatpush.bf16.msra.mxu0 0
  %615 = vmatpush.bf16.msra.mxu0 0
  %616 = vmatpush.bf16.msra.mxu0 0
  %617 = vmatpush.bf16.msra.mxu0 %v364
  %618 = vmatpush.bf16.msra.mxu0 %v363
  %619 = vmatpush.bf16.msra.mxu0 %v362
  %620 = vmatpush.bf16.msra.mxu0 %v361
  %621 = vmatmul.bf16.gmra.mxu0 %v585
  %v622 = vpop.f32.mrf.mxu0
  %v623 = vadd.f32 %v344, %v622
  %v624 = vpop.f32.mrf.mxu0
  %625 = vdwg.mxu0
  %v626 = vadd.f32 %v576, %v597
  %v627 = vxor.u32 %v626, 2147483648
  %v628 = vmul.f32 %v627, 1.442695
  %v629 = vpow.pop %v628
  %v630 = vadd.f32 %v629, 1.0
  %v631 = vrcp.pop %v630
  %v632 = vmul.f32 %v630, %v631
  %v633 = vsub.f32 1.0, %v632
  %v634 = vmul.f32 %v631, %v633
  %v635 = vadd.f32 %v631, %v634
  %vm636 = vweird.f32 %v630
  %vm637 = vweird.f32 %v631
  %vm638 = vmor %vm636, %vm637
  %v639 = vsel %vm638, %v631, %v635
  %v640 = vand.u32 2147483647, %v630
  %vm641 = vcmp.eq.f32.partialorder %v640, 8.507059e+37
  %v642 = vand.u32 %v630, 2147483648
  %v643 = vor.u32 1.1754944e-38, %v642
  %v644 = vsel %vm641, %v643, %v639
  %v645 = vmul.f32 1.0, %v644
  %v646 = vadd.f32 %v579, %v610
  %v647 = vxor.u32 %v646, 2147483648
  %v648 = vmul.f32 %v647, 1.442695
  %v649 = vpow.pop %v648
  %v650 = vadd.f32 %v649, 1.0
  %v651 = vrcp.pop %v650
  %v652 = vmul.f32 %v650, %v651
  %v653 = vsub.f32 1.0, %v652
  %v654 = vmul.f32 %v651, %v653
  %v655 = vadd.f32 %v651, %v654
  %vm656 = vweird.f32 %v650
  %vm657 = vweird.f32 %v651
  %vm658 = vmor %vm656, %vm657
  %v659 = vsel %vm658, %v651, %v655
  %v660 = vand.u32 2147483647, %v650
  %vm661 = vcmp.eq.f32.partialorder %v660, 8.507059e+37
  %v662 = vand.u32 %v650, 2147483648
  %v663 = vor.u32 1.1754944e-38, %v662
  %v664 = vsel %vm661, %v663, %v659
  %v665 = vmul.f32 1.0, %v664
  %v666 = vmul.f32 %v645, %v623
  %v667 = vadd.f32 %v582, %v666
  %v668 = vtanh.pop %v667
  %v669 = vsub.f32 1.0, %v665
  %v670 = vmul.f32 %v669, %v668
  %v671 = vmul.f32 %v665, %v573
  %v672 = vadd.f32 %v670, %v671
  %vm673 = vcmp.gt.s32.totalorder %v47, 2
  %v674 = vsel %vm673, 1, 0
  %v675 = vcvt.s32.f32 %v674
  %vm676 = vcmp.gt.s32.totalorder %v47, 5
  %v677 = vsel %vm676, 1, 0
  %v678 = vcvt.s32.f32 %v677
  %680 = vset.pattern.permute.xlu0 0
  %681 = vperm.xlu0 %680, %v675
  %v682 = vpop.permute.xlu0 %681
  %v684 = vmul.f32 %v54, %v682
  %686 = vset.pattern.permute.xlu0 0
  %687 = vperm.xlu0 %686, %v678
  %v688 = vpop.permute.xlu0 %687
  %v690 = vmul.f32 %v55, %v688
  %v691 = vadd.f32 %v684, %v690
  %v692 = vmul.f32 %v691, %v672
  %v693 = vsub.f32 1.0, %v691
  %v694 = vmul.f32 %v693, %v573
  %v695 = vadd.f32 %v692, %v694
  %v696 = vmul.f32 %v54, %v123
  %v697 = vmul.f32 %v55, %v126
  %v698 = vadd.f32 %v696, %v697
  %v699 = vmul.f32 %v54, %v170
  %v700 = vmul.f32 %v55, %v173
  %v701 = vadd.f32 %v699, %v700
  %v702 = vmul.f32 %v54, %v217
  %v703 = vmul.f32 %v55, %v220
  %v704 = vadd.f32 %v702, %v703
  %v705 = vpack.c.bf16 %v695, %v695
  %v707 = vsel %vm289, %v705, 0
  %709 = vmatpush.bf16.msra.mxu0 0
  %710 = vmatpush.bf16.msra.mxu0 0
  %711 = vmatpush.bf16.msra.mxu0 0
  %712 = vmatpush.bf16.msra.mxu0 0
  %713 = vmatpush.bf16.msra.mxu0 %v284
  %714 = vmatpush.bf16.msra.mxu0 %v283
  %715 = vmatpush.bf16.msra.mxu0 %v282
  %716 = vmatpush.bf16.msra.mxu0 %v281
  %717 = vmatmul.bf16.gmra.mxu0 %v707
  %v718 = vpop.f32.mrf.mxu0
  %v719 = vadd.f32 %v264, %v718
  %v720 = vpop.f32.mrf.mxu0
  %721 = vdwg.mxu0
  %722 = vmatpush.bf16.msra.mxu0 0
  %723 = vmatpush.bf16.msra.mxu0 0
  %724 = vmatpush.bf16.msra.mxu0 0
  %725 = vmatpush.bf16.msra.mxu0 0
  %726 = vmatpush.bf16.msra.mxu0 %v326
  %727 = vmatpush.bf16.msra.mxu0 %v325
  %728 = vmatpush.bf16.msra.mxu0 %v324
  %729 = vmatpush.bf16.msra.mxu0 %v323
  %730 = vmatmul.bf16.gmra.mxu0 %v707
  %v731 = vpop.f32.mrf.mxu0
  %v732 = vadd.f32 %v306, %v731
  %v733 = vpop.f32.mrf.mxu0
  %734 = vdwg.mxu0
  %735 = vmatpush.bf16.msra.mxu0 0
  %736 = vmatpush.bf16.msra.mxu0 0
  %737 = vmatpush.bf16.msra.mxu0 0
  %738 = vmatpush.bf16.msra.mxu0 0
  %739 = vmatpush.bf16.msra.mxu0 %v364
  %740 = vmatpush.bf16.msra.mxu0 %v363
  %741 = vmatpush.bf16.msra.mxu0 %v362
  %742 = vmatpush.bf16.msra.mxu0 %v361
  %743 = vmatmul.bf16.gmra.mxu0 %v707
  %v744 = vpop.f32.mrf.mxu0
  %v745 = vadd.f32 %v344, %v744
  %v746 = vpop.f32.mrf.mxu0
  %747 = vdwg.mxu0
  %v748 = vadd.f32 %v698, %v719
  %v749 = vxor.u32 %v748, 2147483648
  %v750 = vmul.f32 %v749, 1.442695
  %v751 = vpow.pop %v750
  %v752 = vadd.f32 %v751, 1.0
  %v753 = vrcp.pop %v752
  %v754 = vmul.f32 %v752, %v753
  %v755 = vsub.f32 1.0, %v754
  %v756 = vmul.f32 %v753, %v755
  %v757 = vadd.f32 %v753, %v756
  %vm758 = vweird.f32 %v752
  %vm759 = vweird.f32 %v753
  %vm760 = vmor %vm758, %vm759
  %v761 = vsel %vm760, %v753, %v757
  %v762 = vand.u32 2147483647, %v752
  %vm763 = vcmp.eq.f32.partialorder %v762, 8.507059e+37
  %v764 = vand.u32 %v752, 2147483648
  %v765 = vor.u32 1.1754944e-38, %v764
  %v766 = vsel %vm763, %v765, %v761
  %v767 = vmul.f32 1.0, %v766
  %v768 = vadd.f32 %v701, %v732
  %v769 = vxor.u32 %v768, 2147483648
  %v770 = vmul.f32 %v769, 1.442695
  %v771 = vpow.pop %v770
  %v772 = vadd.f32 %v771, 1.0
  %v773 = vrcp.pop %v772
  %v774 = vmul.f32 %v772, %v773
  %v775 = vsub.f32 1.0, %v774
  %v776 = vmul.f32 %v773, %v775
  %v777 = vadd.f32 %v773, %v776
  %vm778 = vweird.f32 %v772
  %vm779 = vweird.f32 %v773
  %vm780 = vmor %vm778, %vm779
  %v781 = vsel %vm780, %v773, %v777
  %v782 = vand.u32 2147483647, %v772
  %vm783 = vcmp.eq.f32.partialorder %v782, 8.507059e+37
  %v784 = vand.u32 %v772, 2147483648
  %v785 = vor.u32 1.1754944e-38, %v784
  %v786 = vsel %vm783, %v785, %v781
  %v787 = vmul.f32 1.0, %v786
  %v788 = vmul.f32 %v767, %v745
  %v789 = vadd.f32 %v704, %v788
  %v790 = vtanh.pop %v789
  %v791 = vsub.f32 1.0, %v787
  %v792 = vmul.f32 %v791, %v790
  %v793 = vmul.f32 %v787, %v695
  %v794 = vadd.f32 %v792, %v793
  %vm795 = vcmp.gt.s32.totalorder %v47, 3
  %v796 = vsel %vm795, 1, 0
  %v797 = vcvt.s32.f32 %v796
  %vm798 = vcmp.gt.s32.totalorder %v47, 4
  %v799 = vsel %vm798, 1, 0
  %v800 = vcvt.s32.f32 %v799
  %802 = vset.pattern.permute.xlu0 0
  %803 = vperm.xlu0 %802, %v797
  %v804 = vpop.permute.xlu0 %803
  %v806 = vmul.f32 %v54, %v804
  %808 = vset.pattern.permute.xlu0 0
  %809 = vperm.xlu0 %808, %v800
  %v810 = vpop.permute.xlu0 %809
  %v812 = vmul.f32 %v55, %v810
  %v813 = vadd.f32 %v806, %v812
  %v814 = vmul.f32 %v813, %v794
  %v815 = vsub.f32 1.0, %v813
  %v816 = vmul.f32 %v815, %v695
  %v817 = vadd.f32 %v814, %v816
  %v818 = vmul.f32 %v54, %v126
  %v819 = vmul.f32 %v55, %v123
  %v820 = vadd.f32 %v818, %v819
  %v821 = vmul.f32 %v54, %v173
  %v822 = vmul.f32 %v55, %v170
  %v823 = vadd.f32 %v821, %v822
  %v824 = vmul.f32 %v54, %v220
  %v825 = vmul.f32 %v55, %v217
  %v826 = vadd.f32 %v824, %v825
  %v827 = vpack.c.bf16 %v817, %v817
  %v829 = vsel %vm289, %v827, 0
  %831 = vmatpush.bf16.msra.mxu0 0
  %832 = vmatpush.bf16.msra.mxu0 0
  %833 = vmatpush.bf16.msra.mxu0 0
  %834 = vmatpush.bf16.msra.mxu0 0
  %835 = vmatpush.bf16.msra.mxu0 %v284
  %836 = vmatpush.bf16.msra.mxu0 %v283
  %837 = vmatpush.bf16.msra.mxu0 %v282
  %838 = vmatpush.bf16.msra.mxu0 %v281
  %839 = vmatmul.bf16.gmra.mxu0 %v829
  %v840 = vpop.f32.mrf.mxu0
  %v841 = vadd.f32 %v264, %v840
  %v842 = vpop.f32.mrf.mxu0
  %843 = vdwg.mxu0
  %844 = vmatpush.bf16.msra.mxu0 0
  %845 = vmatpush.bf16.msra.mxu0 0
  %846 = vmatpush.bf16.msra.mxu0 0
  %847 = vmatpush.bf16.msra.mxu0 0
  %848 = vmatpush.bf16.msra.mxu0 %v326
  %849 = vmatpush.bf16.msra.mxu0 %v325
  %850 = vmatpush.bf16.msra.mxu0 %v324
  %851 = vmatpush.bf16.msra.mxu0 %v323
  %852 = vmatmul.bf16.gmra.mxu0 %v829
  %v853 = vpop.f32.mrf.mxu0
  %v854 = vadd.f32 %v306, %v853
  %v855 = vpop.f32.mrf.mxu0
  %856 = vdwg.mxu0
  %857 = vmatpush.bf16.msra.mxu0 0
  %858 = vmatpush.bf16.msra.mxu0 0
  %859 = vmatpush.bf16.msra.mxu0 0
  %860 = vmatpush.bf16.msra.mxu0 0
  %861 = vmatpush.bf16.msra.mxu0 %v364
  %862 = vmatpush.bf16.msra.mxu0 %v363
  %863 = vmatpush.bf16.msra.mxu0 %v362
  %864 = vmatpush.bf16.msra.mxu0 %v361
  %865 = vmatmul.bf16.gmra.mxu0 %v829
  %v866 = vpop.f32.mrf.mxu0
  %v867 = vadd.f32 %v344, %v866
  %v868 = vpop.f32.mrf.mxu0
  %869 = vdwg.mxu0
  %v870 = vadd.f32 %v820, %v841
  %v871 = vxor.u32 %v870, 2147483648
  %v872 = vmul.f32 %v871, 1.442695
  %v873 = vpow.pop %v872
  %v874 = vadd.f32 %v873, 1.0
  %v875 = vrcp.pop %v874
  %v876 = vmul.f32 %v874, %v875
  %v877 = vsub.f32 1.0, %v876
  %v878 = vmul.f32 %v875, %v877
  %v879 = vadd.f32 %v875, %v878
  %vm880 = vweird.f32 %v874
  %vm881 = vweird.f32 %v875
  %vm882 = vmor %vm880, %vm881
  %v883 = vsel %vm882, %v875, %v879
  %v884 = vand.u32 2147483647, %v874
  %vm885 = vcmp.eq.f32.partialorder %v884, 8.507059e+37
  %v886 = vand.u32 %v874, 2147483648
  %v887 = vor.u32 1.1754944e-38, %v886
  %v888 = vsel %vm885, %v887, %v883
  %v889 = vmul.f32 1.0, %v888
  %v890 = vadd.f32 %v823, %v854
  %v891 = vxor.u32 %v890, 2147483648
  %v892 = vmul.f32 %v891, 1.442695
  %v893 = vpow.pop %v892
  %v894 = vadd.f32 %v893, 1.0
  %v895 = vrcp.pop %v894
  %v896 = vmul.f32 %v894, %v895
  %v897 = vsub.f32 1.0, %v896
  %v898 = vmul.f32 %v895, %v897
  %v899 = vadd.f32 %v895, %v898
  %vm900 = vweird.f32 %v894
  %vm901 = vweird.f32 %v895
  %vm902 = vmor %vm900, %vm901
  %v903 = vsel %vm902, %v895, %v899
  %v904 = vand.u32 2147483647, %v894
  %vm905 = vcmp.eq.f32.partialorder %v904, 8.507059e+37
  %v906 = vand.u32 %v894, 2147483648
  %v907 = vor.u32 1.1754944e-38, %v906
  %v908 = vsel %vm905, %v907, %v903
  %v909 = vmul.f32 1.0, %v908
  %v910 = vmul.f32 %v889, %v867
  %v911 = vadd.f32 %v826, %v910
  %v912 = vtanh.pop %v911
  %v913 = vsub.f32 1.0, %v909
  %v914 = vmul.f32 %v913, %v912
  %v915 = vmul.f32 %v909, %v817
  %v916 = vadd.f32 %v914, %v915
  %v917 = vmul.f32 %v54, %v810
  %v918 = vmul.f32 %v55, %v804
  %v919 = vadd.f32 %v917, %v918
  %v920 = vmul.f32 %v919, %v916
  %v921 = vsub.f32 1.0, %v919
  %v922 = vmul.f32 %v921, %v817
  %v923 = vadd.f32 %v920, %v922
  %v924 = vmul.f32 %v54, %v128
  %v925 = vmul.f32 %v55, %v121
  %v926 = vadd.f32 %v924, %v925
  %v927 = vmul.f32 %v54, %v175
  %v928 = vmul.f32 %v55, %v168
  %v929 = vadd.f32 %v927, %v928
  %v930 = vmul.f32 %v54, %v222
  %v931 = vmul.f32 %v55, %v215
  %v932 = vadd.f32 %v930, %v931
  %v933 = vpack.c.bf16 %v923, %v923
  %v935 = vsel %vm289, %v933, 0
  %937 = vmatpush.bf16.msra.mxu0 0
  %938 = vmatpush.bf16.msra.mxu0 0
  %939 = vmatpush.bf16.msra.mxu0 0
  %940 = vmatpush.bf16.msra.mxu0 0
  %941 = vmatpush.bf16.msra.mxu0 %v284
  %942 = vmatpush.bf16.msra.mxu0 %v283
  %943 = vmatpush.bf16.msra.mxu0 %v282
  %944 = vmatpush.bf16.msra.mxu0 %v281
  %945 = vmatmul.bf16.gmra.mxu0 %v935
  %v946 = vpop.f32.mrf.mxu0
  %v947 = vadd.f32 %v264, %v946
  %v948 = vpop.f32.mrf.mxu0
  %949 = vdwg.mxu0
  %950 = vmatpush.bf16.msra.mxu0 0
  %951 = vmatpush.bf16.msra.mxu0 0
  %952 = vmatpush.bf16.msra.mxu0 0
  %953 = vmatpush.bf16.msra.mxu0 0
  %954 = vmatpush.bf16.msra.mxu0 %v326
  %955 = vmatpush.bf16.msra.mxu0 %v325
  %956 = vmatpush.bf16.msra.mxu0 %v324
  %957 = vmatpush.bf16.msra.mxu0 %v323
  %958 = vmatmul.bf16.gmra.mxu0 %v935
  %v959 = vpop.f32.mrf.mxu0
  %v960 = vadd.f32 %v306, %v959
  %v961 = vpop.f32.mrf.mxu0
  %962 = vdwg.mxu0
  %963 = vmatpush.bf16.msra.mxu0 0
  %964 = vmatpush.bf16.msra.mxu0 0
  %965 = vmatpush.bf16.msra.mxu0 0
  %966 = vmatpush.bf16.msra.mxu0 0
  %967 = vmatpush.bf16.msra.mxu0 %v364
  %968 = vmatpush.bf16.msra.mxu0 %v363
  %969 = vmatpush.bf16.msra.mxu0 %v362
  %970 = vmatpush.bf16.msra.mxu0 %v361
  %971 = vmatmul.bf16.gmra.mxu0 %v935
  %v972 = vpop.f32.mrf.mxu0
  %v973 = vadd.f32 %v344, %v972
  %v974 = vpop.f32.mrf.mxu0
  %975 = vdwg.mxu0
  %v976 = vadd.f32 %v926, %v947
  %v977 = vxor.u32 %v976, 2147483648
  %v978 = vmul.f32 %v977, 1.442695
  %v979 = vpow.pop %v978
  %v980 = vadd.f32 %v979, 1.0
  %v981 = vrcp.pop %v980
  %v982 = vmul.f32 %v980, %v981
  %v983 = vsub.f32 1.0, %v982
  %v984 = vmul.f32 %v981, %v983
  %v985 = vadd.f32 %v981, %v984
  %vm986 = vweird.f32 %v980
  %vm987 = vweird.f32 %v981
  %vm988 = vmor %vm986, %vm987
  %v989 = vsel %vm988, %v981, %v985
  %v990 = vand.u32 2147483647, %v980
  %vm991 = vcmp.eq.f32.partialorder %v990, 8.507059e+37
  %v992 = vand.u32 %v980, 2147483648
  %v993 = vor.u32 1.1754944e-38, %v992
  %v994 = vsel %vm991, %v993, %v989
  %v995 = vmul.f32 1.0, %v994
  %v996 = vadd.f32 %v929, %v960
  %v997 = vxor.u32 %v996, 2147483648
  %v998 = vmul.f32 %v997, 1.442695
  %v999 = vpow.pop %v998
  %v1000 = vadd.f32 %v999, 1.0
  %v1001 = vrcp.pop %v1000
  %v1002 = vmul.f32 %v1000, %v1001
  %v1003 = vsub.f32 1.0, %v1002
  %v1004 = vmul.f32 %v1001, %v1003
  %v1005 = vadd.f32 %v1001, %v1004
  %vm1006 = vweird.f32 %v1000
  %vm1007 = vweird.f32 %v1001
  %vm1008 = vmor %vm1006, %vm1007
  %v1009 = vsel %vm1008, %v1001, %v1005
  %v1010 = vand.u32 2147483647, %v1000
  %vm1011 = vcmp.eq.f32.partialorder %v1010, 8.507059e+37
  %v1012 = vand.u32 %v1000, 2147483648
  %v1013 = vor.u32 1.1754944e-38, %v1012
  %v1014 = vsel %vm1011, %v1013, %v1009
  %v1015 = vmul.f32 1.0, %v1014
  %v1016 = vmul.f32 %v995, %v973
  %v1017 = vadd.f32 %v932, %v1016
  %v1018 = vtanh.pop %v1017
  %v1019 = vsub.f32 1.0, %v1015
  %v1020 = vmul.f32 %v1019, %v1018
  %v1021 = vmul.f32 %v1015, %v923
  %v1022 = vadd.f32 %v1020, %v1021
  %v1023 = vmul.f32 %v54, %v688
  %v1024 = vmul.f32 %v55, %v682
  %v1025 = vadd.f32 %v1023, %v1024
  %v1026 = vmul.f32 %v1025, %v1022
  %v1027 = vsub.f32 1.0, %v1025
  %v1028 = vmul.f32 %v1027, %v923
  %v1029 = vadd.f32 %v1026, %v1028
  %v1030 = vmul.f32 %v54, %v131
  %v1031 = vmul.f32 %v55, %v118
  %v1032 = vadd.f32 %v1030, %v1031
  %v1033 = vmul.f32 %v54, %v178
  %v1034 = vmul.f32 %v55, %v165
  %v1035 = vadd.f32 %v1033, %v1034
  %v1036 = vmul.f32 %v54, %v225
  %v1037 = vmul.f32 %v55, %v212
  %v1038 = vadd.f32 %v1036, %v1037
  %v1039 = vpack.c.bf16 %v1029, %v1029
  %v1041 = vsel %vm289, %v1039, 0
  %1043 = vmatpush.bf16.msra.mxu0 0
  %1044 = vmatpush.bf16.msra.mxu0 0
  %1045 = vmatpush.bf16.msra.mxu0 0
  %1046 = vmatpush.bf16.msra.mxu0 0
  %1047 = vmatpush.bf16.msra.mxu0 %v284
  %1048 = vmatpush.bf16.msra.mxu0 %v283
  %1049 = vmatpush.bf16.msra.mxu0 %v282
  %1050 = vmatpush.bf16.msra.mxu0 %v281
  %1051 = vmatmul.bf16.gmra.mxu0 %v1041
  %v1052 = vpop.f32.mrf.mxu0
  %v1053 = vadd.f32 %v264, %v1052
  %v1054 = vpop.f32.mrf.mxu0
  %1055 = vdwg.mxu0
  %1056 = vmatpush.bf16.msra.mxu0 0
  %1057 = vmatpush.bf16.msra.mxu0 0
  %1058 = vmatpush.bf16.msra.mxu0 0
  %1059 = vmatpush.bf16.msra.mxu0 0
  %1060 = vmatpush.bf16.msra.mxu0 %v326
  %1061 = vmatpush.bf16.msra.mxu0 %v325
  %1062 = vmatpush.bf16.msra.mxu0 %v324
  %1063 = vmatpush.bf16.msra.mxu0 %v323
  %1064 = vmatmul.bf16.gmra.mxu0 %v1041
  %v1065 = vpop.f32.mrf.mxu0
  %v1066 = vadd.f32 %v306, %v1065
  %v1067 = vpop.f32.mrf.mxu0
  %1068 = vdwg.mxu0
  %1069 = vmatpush.bf16.msra.mxu0 0
  %1070 = vmatpush.bf16.msra.mxu0 0
  %1071 = vmatpush.bf16.msra.mxu0 0
  %1072 = vmatpush.bf16.msra.mxu0 0
  %1073 = vmatpush.bf16.msra.mxu0 %v364
  %1074 = vmatpush.bf16.msra.mxu0 %v363
  %1075 = vmatpush.bf16.msra.mxu0 %v362
  %1076 = vmatpush.bf16.msra.mxu0 %v361
  %1077 = vmatmul.bf16.gmra.mxu0 %v1041
  %v1078 = vpop.f32.mrf.mxu0
  %v1079 = vadd.f32 %v344, %v1078
  %v1080 = vpop.f32.mrf.mxu0
  %1081 = vdwg.mxu0
  %v1082 = vadd.f32 %v1032, %v1053
  %v1083 = vxor.u32 %v1082, 2147483648
  %v1084 = vmul.f32 %v1083, 1.442695
  %v1085 = vpow.pop %v1084
  %v1086 = vadd.f32 %v1085, 1.0
  %v1087 = vrcp.pop %v1086
  %v1088 = vmul.f32 %v1086, %v1087
  %v1089 = vsub.f32 1.0, %v1088
  %v1090 = vmul.f32 %v1087, %v1089
  %v1091 = vadd.f32 %v1087, %v1090
  %vm1092 = vweird.f32 %v1086
  %vm1093 = vweird.f32 %v1087
  %vm1094 = vmor %vm1092, %vm1093
  %v1095 = vsel %vm1094, %v1087, %v1091
  %v1096 = vand.u32 2147483647, %v1086
  %vm1097 = vcmp.eq.f32.partialorder %v1096, 8.507059e+37
  %v1098 = vand.u32 %v1086, 2147483648
  %v1099 = vor.u32 1.1754944e-38, %v1098
  %v1100 = vsel %vm1097, %v1099, %v1095
  %v1101 = vmul.f32 1.0, %v1100
  %v1102 = vadd.f32 %v1035, %v1066
  %v1103 = vxor.u32 %v1102, 2147483648
  %v1104 = vmul.f32 %v1103, 1.442695
  %v1105 = vpow.pop %v1104
  %v1106 = vadd.f32 %v1105, 1.0
  %v1107 = vrcp.pop %v1106
  %v1108 = vmul.f32 %v1106, %v1107
  %v1109 = vsub.f32 1.0, %v1108
  %v1110 = vmul.f32 %v1107, %v1109
  %v1111 = vadd.f32 %v1107, %v1110
  %vm1112 = vweird.f32 %v1106
  %vm1113 = vweird.f32 %v1107
  %vm1114 = vmor %vm1112, %vm1113
  %v1115 = vsel %vm1114, %v1107, %v1111
  %v1116 = vand.u32 2147483647, %v1106
  %vm1117 = vcmp.eq.f32.partialorder %v1116, 8.507059e+37
  %v1118 = vand.u32 %v1106, 2147483648
  %v1119 = vor.u32 1.1754944e-38, %v1118
  %v1120 = vsel %vm1117, %v1119, %v1115
  %v1121 = vmul.f32 1.0, %v1120
  %v1122 = vmul.f32 %v1101, %v1079
  %v1123 = vadd.f32 %v1038, %v1122
  %v1124 = vtanh.pop %v1123
  %v1125 = vsub.f32 1.0, %v1121
  %v1126 = vmul.f32 %v1125, %v1124
  %v1127 = vmul.f32 %v1121, %v1029
  %v1128 = vadd.f32 %v1126, %v1127
  %v1129 = vmul.f32 %v54, %v566
  %v1130 = vmul.f32 %v55, %v560
  %v1131 = vadd.f32 %v1129, %v1130
  %v1132 = vmul.f32 %v1131, %v1128
  %v1133 = vsub.f32 1.0, %v1131
  %v1134 = vmul.f32 %v1133, %v1029
  %v1135 = vadd.f32 %v1132, %v1134
  %v1136 = vmul.f32 %v54, %v133
  %v1137 = vmul.f32 %v55, %v116
  %v1138 = vadd.f32 %v1136, %v1137
  %v1139 = vmul.f32 %v54, %v180
  %v1140 = vmul.f32 %v55, %v163
  %v1141 = vadd.f32 %v1139, %v1140
  %v1142 = vmul.f32 %v54, %v227
  %v1143 = vmul.f32 %v55, %v210
  %v1144 = vadd.f32 %v1142, %v1143
  %v1145 = vpack.c.bf16 %v1135, %v1135
  %v1147 = vsel %vm289, %v1145, 0
  %1149 = vmatpush.bf16.msra.mxu0 0
  %1150 = vmatpush.bf16.msra.mxu0 0
  %1151 = vmatpush.bf16.msra.mxu0 0
  %1152 = vmatpush.bf16.msra.mxu0 0
  %1153 = vmatpush.bf16.msra.mxu0 %v284
  %1154 = vmatpush.bf16.msra.mxu0 %v283
  %1155 = vmatpush.bf16.msra.mxu0 %v282
  %1156 = vmatpush.bf16.msra.mxu0 %v281
  %1157 = vmatmul.bf16.gmra.mxu0 %v1147
  %v1158 = vpop.f32.mrf.mxu0
  %v1159 = vadd.f32 %v264, %v1158
  %v1160 = vpop.f32.mrf.mxu0
  %1161 = vdwg.mxu0
  %1162 = vmatpush.bf16.msra.mxu0 0
  %1163 = vmatpush.bf16.msra.mxu0 0
  %1164 = vmatpush.bf16.msra.mxu0 0
  %1165 = vmatpush.bf16.msra.mxu0 0
  %1166 = vmatpush.bf16.msra.mxu0 %v326
  %1167 = vmatpush.bf16.msra.mxu0 %v325
  %1168 = vmatpush.bf16.msra.mxu0 %v324
  %1169 = vmatpush.bf16.msra.mxu0 %v323
  %1170 = vmatmul.bf16.gmra.mxu0 %v1147
  %v1171 = vpop.f32.mrf.mxu0
  %v1172 = vadd.f32 %v306, %v1171
  %v1173 = vpop.f32.mrf.mxu0
  %1174 = vdwg.mxu0
  %1175 = vmatpush.bf16.msra.mxu0 0
  %1176 = vmatpush.bf16.msra.mxu0 0
  %1177 = vmatpush.bf16.msra.mxu0 0
  %1178 = vmatpush.bf16.msra.mxu0 0
  %1179 = vmatpush.bf16.msra.mxu0 %v364
  %1180 = vmatpush.bf16.msra.mxu0 %v363
  %1181 = vmatpush.bf16.msra.mxu0 %v362
  %1182 = vmatpush.bf16.msra.mxu0 %v361
  %1183 = vmatmul.bf16.gmra.mxu0 %v1147
  %v1184 = vpop.f32.mrf.mxu0
  %v1185 = vadd.f32 %v344, %v1184
  %v1186 = vpop.f32.mrf.mxu0
  %1187 = vdwg.mxu0
  %v1188 = vadd.f32 %v1138, %v1159
  %v1189 = vxor.u32 %v1188, 2147483648
  %v1190 = vmul.f32 %v1189, 1.442695
  %v1191 = vpow.pop %v1190
  %v1192 = vadd.f32 %v1191, 1.0
  %v1193 = vrcp.pop %v1192
  %v1194 = vmul.f32 %v1192, %v1193
  %v1195 = vsub.f32 1.0, %v1194
  %v1196 = vmul.f32 %v1193, %v1195
  %v1197 = vadd.f32 %v1193, %v1196
  %vm1198 = vweird.f32 %v1192
  %vm1199 = vweird.f32 %v1193
  %vm1200 = vmor %vm1198, %vm1199
  %v1201 = vsel %vm1200, %v1193, %v1197
  %v1202 = vand.u32 2147483647, %v1192
  %vm1203 = vcmp.eq.f32.partialorder %v1202, 8.507059e+37
  %v1204 = vand.u32 %v1192, 2147483648
  %v1205 = vor.u32 1.1754944e-38, %v1204
  %v1206 = vsel %vm1203, %v1205, %v1201
  %v1207 = vmul.f32 1.0, %v1206
  %v1208 = vadd.f32 %v1141, %v1172
  %v1209 = vxor.u32 %v1208, 2147483648
  %v1210 = vmul.f32 %v1209, 1.442695
  %v1211 = vpow.pop %v1210
  %v1212 = vadd.f32 %v1211, 1.0
  %v1213 = vrcp.pop %v1212
  %v1214 = vmul.f32 %v1212, %v1213
  %v1215 = vsub.f32 1.0, %v1214
  %v1216 = vmul.f32 %v1213, %v1215
  %v1217 = vadd.f32 %v1213, %v1216
  %vm1218 = vweird.f32 %v1212
  %vm1219 = vweird.f32 %v1213
  %vm1220 = vmor %vm1218, %vm1219
  %v1221 = vsel %vm1220, %v1213, %v1217
  %v1222 = vand.u32 2147483647, %v1212
  %vm1223 = vcmp.eq.f32.partialorder %v1222, 8.507059e+37
  %v1224 = vand.u32 %v1212, 2147483648
  %v1225 = vor.u32 1.1754944e-38, %v1224
  %v1226 = vsel %vm1223, %v1225, %v1221
  %v1227 = vmul.f32 1.0, %v1226
  %v1228 = vmul.f32 %v1207, %v1185
  %v1229 = vadd.f32 %v1144, %v1228
  %v1230 = vtanh.pop %v1229
  %v1231 = vsub.f32 1.0, %v1227
  %v1232 = vmul.f32 %v1231, %v1230
  %v1233 = vmul.f32 %v1227, %v1135
  %v1234 = vadd.f32 %v1232, %v1233
  %v1235 = vmul.f32 %v54, %v444
  %v1236 = vmul.f32 %v55, %v438
  %v1237 = vadd.f32 %v1235, %v1236
  %v1238 = vmul.f32 %v1237, %v1234
  %v1239 = vmul.f32 %v54, %v448
  %v1240 = vmul.f32 %v55, %v1238
  %v1241 = vadd.f32 %v1239, %v1240
  %v1242 = vmul.f32 %v54, %v570
  %v1243 = vmul.f32 %v55, %v1132
  %v1244 = vadd.f32 %v1242, %v1243
  %v1245 = vmul.f32 %v54, %v692
  %v1246 = vmul.f32 %v55, %v1026
  %v1247 = vadd.f32 %v1245, %v1246
  %v1248 = vmul.f32 %v54, %v814
  %v1249 = vmul.f32 %v55, %v920
  %v1250 = vadd.f32 %v1248, %v1249
  %v1251 = vmul.f32 %v54, %v920
  %v1252 = vmul.f32 %v55, %v814
  %v1253 = vadd.f32 %v1251, %v1252
  %v1254 = vmul.f32 %v54, %v1026
  %v1255 = vmul.f32 %v55, %v692
  %v1256 = vadd.f32 %v1254, %v1255
  %v1257 = vmul.f32 %v54, %v1132
  %v1258 = vmul.f32 %v55, %v570
  %v1259 = vadd.f32 %v1257, %v1258
  %v1260 = vmul.f32 %v54, %v1238
  %v1261 = vmul.f32 %v55, %v448
  %v1262 = vadd.f32 %v1260, %v1261
  %v1263 = vld [vmem:[%s6] sm:$0xf]
  %v1264 = vld [vmem:[%s6 + $0x4] sm:$0xf]
  %v1265 = vld [vmem:[%s6 + $0x8] sm:$0xf]
  %v1266 = vld [vmem:[%s6 + $0xc] sm:$0xf]
  %v1267 = vld [vmem:[%s6 + $0x10] sm:$0xf]
  %v1268 = vld [vmem:[%s6 + $0x14] sm:$0xf]
  %v1269 = vld [vmem:[%s6 + $0x18] sm:$0xf]
  %v1270 = vld [vmem:[%s6 + $0x1c] sm:$0xf]
  %v1271 = vld [vmem:[%s7] sm:$0x1]
  %v1272 = vld [vmem:[%s8] sm:$0x1]
  %v1273 = vld [vmem:[%s9] sm:$0x1]
  %v1274 = vld [vmem:[%s10] sm:$0x1]
  %v1275 = vpack.c.bf16 %v1244, %v1241
  %v1276 = vpack.c.bf16 %v1250, %v1247
  %v1277 = vpack.c.bf16 %v1256, %v1253
  %v1278 = vpack.c.bf16 %v1262, %v1259
  %v1280 = vperm.slane %v1271, 0
  %v1290 = vunpack.c.l.b16 %v1263
  %v1291 = vunpack.c.l.b16 %v1264
  %v1292 = vunpack.c.l.b16 %v1265
  %v1293 = vunpack.c.l.b16 %v1266
  %v1294 = vunpack.c.l.b16 %v1267
  %v1295 = vunpack.c.l.b16 %v1268
  %v1296 = vunpack.c.l.b16 %v1269
  %v1297 = vunpack.c.l.b16 %v1270
  %v1298 = vpack.c.b16 %v1291, %v1290
  %v1299 = vpack.c.b16 %v1293, %v1292
  %v1300 = vpack.c.b16 %v1295, %v1294
  %v1301 = vpack.c.b16 %v1297, %v1296
  %v1307 = vsel %vm289, %v1275, 0
  %v1310 = vsel %vm289, %v1276, 0
  %v1313 = vsel %vm289, %v1277, 0
  %v1316 = vsel %vm289, %v1278, 0
  %1318 = vmatpush.bf16.msra.mxu0 0
  %1319 = vmatpush.bf16.msra.mxu0 0
  %1320 = vmatpush.bf16.msra.mxu0 0
  %1321 = vmatpush.bf16.msra.mxu0 0
  %1322 = vmatpush.bf16.msra.mxu0 %v1301
  %1323 = vmatpush.bf16.msra.mxu0 %v1300
  %1324 = vmatpush.bf16.msra.mxu0 %v1299
  %1325 = vmatpush.bf16.msra.mxu0 %v1298
  %1326 = vmatmul.bf16.gmra.mxu0 %v1307
  %v1327 = vpop.f32.mrf.mxu0
  %v1328 = vadd.f32 %v1280, %v1327
  %v1329 = vpop.f32.mrf.mxu0
  %v1330 = vadd.f32 %v1280, %v1329
  %1331 = vmatmul.bf16.gmra.mxu0 %v1310
  %v1332 = vpop.f32.mrf.mxu0
  %v1333 = vadd.f32 %v1280, %v1332
  %v1334 = vpop.f32.mrf.mxu0
  %v1335 = vadd.f32 %v1280, %v1334
  %1336 = vmatmul.bf16.gmra.mxu0 %v1313
  %v1337 = vpop.f32.mrf.mxu0
  %v1338 = vadd.f32 %v1280, %v1337
  %v1339 = vpop.f32.mrf.mxu0
  %v1340 = vadd.f32 %v1280, %v1339
  %1341 = vmatmul.bf16.gmra.mxu0 %v1316
  %v1342 = vpop.f32.mrf.mxu0
  %v1343 = vadd.f32 %v1280, %v1342
  %v1344 = vpop.f32.mrf.mxu0
  %v1345 = vadd.f32 %v1280, %v1344
  %1346 = vdwg.mxu0
  %v1347 = vlaneseq
  %v1348 = vshrl.u32 %v1347, 7
  %vm1349 = vcmp.lt.s32.totalorder %v1348, 6
  %v1350 = vsel %vm1349, 1, 0
  %v1351 = vcvt.s32.f32 %v1350
  %v1352 = vmul.f32 %v1328, %v1351
  %v1353 = vsel %vm93, %v1352, 0.0
  %1354 = vadd.xlane.f32.xlu0 %v1353
  %v1355 = vpop.xlane.xlu0 %1354
  %v1356 = vrot.slane %v1355, 4
  %v1357 = vadd.f32 %v1355, %v1356
  %v1358 = vrot.slane %v1357, 2
  %v1359 = vadd.f32 %v1357, %v1358
  %v1360 = vrot.slane %v1359, 1
  %v1361 = vadd.f32 %v1359, %v1360
  %s1362 = vtos %v1361
  %v1363 = vstv %s1362
  %v1364 = vrcp.pop 192.0
  %v1365 = vmul.f32 192.0, %v1364
  %v1366 = vsub.f32 1.0, %v1365
  %v1367 = vmul.f32 %v1364, %v1366
  %v1368 = vadd.f32 %v1364, %v1367
  %vm1369 = vweird.f32 %v1364
  %v1370 = vsel %vm1369, %v1364, %v1368
  %v1371 = vmul.f32 %v1363, %v1370
  %v1372 = vsub.f32 %v1328, %v1371
  %v1373 = vmul.f32 %v1372, %v1351
  %v1374 = vmul.f32 %v1373, %v1373
  %v1375 = vsel %vm93, %v1374, 0.0
  %1376 = vadd.xlane.f32.xlu0 %v1375
  %v1377 = vpop.xlane.xlu0 %1376
  %v1378 = vrot.slane %v1377, 4
  %v1379 = vadd.f32 %v1377, %v1378
  %v1380 = vrot.slane %v1379, 2
  %v1381 = vadd.f32 %v1379, %v1380
  %v1382 = vrot.slane %v1381, 1
  %v1383 = vadd.f32 %v1381, %v1382
  %s1384 = vtos %v1383
  %v1385 = vstv %s1384
  %v1386 = vmul.f32 %v1385, %v1370
  %v1387 = vadd.f32 %v1386, 1e-05
  %v1388 = vrsqrt.pop %v1387
  %v1389 = vmul.f32 %v1388, %v1387
  %v1390 = vmul.f32 %v1389, %v1388
  %v1391 = vmul.f32 0.5, %v1390
  %v1392 = vsub.f32 1.5, %v1391
  %v1393 = vmul.f32 %v1388, %v1392
  %vm1394 = vweird.f32 %v1387
  %vm1395 = vweird.f32 %v1388
  %vm1396 = vmor %vm1394, %vm1395
  %v1397 = vsel %vm1396, %v1388, %v1393
  %v1398 = vmul.f32 %v1372, %v1397
  %v1400 = vperm.slane %v1272, 0
  %1401 = vset.pattern.permute.xlu0 0
  %1402 = vperm.xlu0 %1401, %v1400
  %v1403 = vpop.permute.xlu0 %1402
  %v1405 = vmul.f32 %v1398, %v1403
  %v1407 = vperm.slane %v1273, 0
  %1408 = vset.pattern.permute.xlu0 0
  %1409 = vperm.xlu0 %1408, %v1407
  %v1410 = vpop.permute.xlu0 %1409
  %v1412 = vadd.f32 %v1405, %v1410
  %v1413 = vmax.f32 %v1412, 0.0
  %v1415 = vperm.slane %v1274, 0
  %v1417 = vmul.f32 %v1413, %v1415
  %v1418 = vsel %vm93, %v1417, 0.0
  %1419 = vadd.xlane.f32.xlu0 %v1418
  %v1420 = vpop.xlane.xlu0 %1419
  %v1421 = vmul.f32 %v1330, %v1351
  %v1422 = vsel %vm93, %v1421, 0.0
  %1423 = vadd.xlane.f32.xlu0 %v1422
  %v1424 = vpop.xlane.xlu0 %1423
  %v1425 = vrot.slane %v1424, 4
  %v1426 = vadd.f32 %v1424, %v1425
  %v1427 = vrot.slane %v1426, 2
  %v1428 = vadd.f32 %v1426, %v1427
  %v1429 = vrot.slane %v1428, 1
  %v1430 = vadd.f32 %v1428, %v1429
  %s1431 = vtos %v1430
  %v1432 = vstv %s1431
  %v1433 = vmul.f32 %v1432, %v1370
  %v1434 = vsub.f32 %v1330, %v1433
  %v1435 = vmul.f32 %v1434, %v1351
  %v1436 = vmul.f32 %v1435, %v1435
  %v1437 = vsel %vm93, %v1436, 0.0
  %1438 = vadd.xlane.f32.xlu0 %v1437
  %v1439 = vpop.xlane.xlu0 %1438
  %v1440 = vrot.slane %v1439, 4
  %v1441 = vadd.f32 %v1439, %v1440
  %v1442 = vrot.slane %v1441, 2
  %v1443 = vadd.f32 %v1441, %v1442
  %v1444 = vrot.slane %v1443, 1
  %v1445 = vadd.f32 %v1443, %v1444
  %s1446 = vtos %v1445
  %v1447 = vstv %s1446
  %v1448 = vmul.f32 %v1447, %v1370
  %v1449 = vadd.f32 %v1448, 1e-05
  %v1450 = vrsqrt.pop %v1449
  %v1451 = vmul.f32 %v1450, %v1449
  %v1452 = vmul.f32 %v1451, %v1450
  %v1453 = vmul.f32 0.5, %v1452
  %v1454 = vsub.f32 1.5, %v1453
  %v1455 = vmul.f32 %v1450, %v1454
  %vm1456 = vweird.f32 %v1449
  %vm1457 = vweird.f32 %v1450
  %vm1458 = vmor %vm1456, %vm1457
  %v1459 = vsel %vm1458, %v1450, %v1455
  %v1460 = vmul.f32 %v1434, %v1459
  %1461 = vset.pattern.permute.xlu0 1
  %1462 = vperm.xlu0 %1461, %v1400
  %v1463 = vpop.permute.xlu0 %1462
  %v1465 = vmul.f32 %v1460, %v1463
  %1466 = vset.pattern.permute.xlu0 1
  %1467 = vperm.xlu0 %1466, %v1407
  %v1468 = vpop.permute.xlu0 %1467
  %v1470 = vadd.f32 %v1465, %v1468
  %v1471 = vmax.f32 %v1470, 0.0
  %v1472 = vmul.f32 %v1471, %v1415
  %v1473 = vsel %vm93, %v1472, 0.0
  %1474 = vadd.xlane.f32.xlu0 %v1473
  %v1475 = vpop.xlane.xlu0 %1474
  %v1476 = vmul.f32 %v1333, %v1351
  %v1477 = vsel %vm93, %v1476, 0.0
  %1478 = vadd.xlane.f32.xlu0 %v1477
  %v1479 = vpop.xlane.xlu0 %1478
  %v1480 = vrot.slane %v1479, 4
  %v1481 = vadd.f32 %v1479, %v1480
  %v1482 = vrot.slane %v1481, 2
  %v1483 = vadd.f32 %v1481, %v1482
  %v1484 = vrot.slane %v1483, 1
  %v1485 = vadd.f32 %v1483, %v1484
  %s1486 = vtos %v1485
  %v1487 = vstv %s1486
  %v1488 = vmul.f32 %v1487, %v1370
  %v1489 = vsub.f32 %v1333, %v1488
  %v1490 = vmul.f32 %v1489, %v1351
  %v1491 = vmul.f32 %v1490, %v1490
  %v1492 = vsel %vm93, %v1491, 0.0
  %1493 = vadd.xlane.f32.xlu0 %v1492
  %v1494 = vpop.xlane.xlu0 %1493
  %v1495 = vrot.slane %v1494, 4
  %v1496 = vadd.f32 %v1494, %v1495
  %v1497 = vrot.slane %v1496, 2
  %v1498 = vadd.f32 %v1496, %v1497
  %v1499 = vrot.slane %v1498, 1
  %v1500 = vadd.f32 %v1498, %v1499
  %s1501 = vtos %v1500
  %v1502 = vstv %s1501
  %v1503 = vmul.f32 %v1502, %v1370
  %v1504 = vadd.f32 %v1503, 1e-05
  %v1505 = vrsqrt.pop %v1504
  %v1506 = vmul.f32 %v1505, %v1504
  %v1507 = vmul.f32 %v1506, %v1505
  %v1508 = vmul.f32 0.5, %v1507
  %v1509 = vsub.f32 1.5, %v1508
  %v1510 = vmul.f32 %v1505, %v1509
  %vm1511 = vweird.f32 %v1504
  %vm1512 = vweird.f32 %v1505
  %vm1513 = vmor %vm1511, %vm1512
  %v1514 = vsel %vm1513, %v1505, %v1510
  %v1515 = vmul.f32 %v1489, %v1514
  %1516 = vset.pattern.permute.xlu0 2
  %1517 = vperm.xlu0 %1516, %v1400
  %v1518 = vpop.permute.xlu0 %1517
  %v1520 = vmul.f32 %v1515, %v1518
  %1521 = vset.pattern.permute.xlu0 2
  %1522 = vperm.xlu0 %1521, %v1407
  %v1523 = vpop.permute.xlu0 %1522
  %v1525 = vadd.f32 %v1520, %v1523
  %v1526 = vmax.f32 %v1525, 0.0
  %v1527 = vmul.f32 %v1526, %v1415
  %v1528 = vsel %vm93, %v1527, 0.0
  %1529 = vadd.xlane.f32.xlu0 %v1528
  %v1530 = vpop.xlane.xlu0 %1529
  %v1531 = vmul.f32 %v1335, %v1351
  %v1532 = vsel %vm93, %v1531, 0.0
  %1533 = vadd.xlane.f32.xlu0 %v1532
  %v1534 = vpop.xlane.xlu0 %1533
  %v1535 = vrot.slane %v1534, 4
  %v1536 = vadd.f32 %v1534, %v1535
  %v1537 = vrot.slane %v1536, 2
  %v1538 = vadd.f32 %v1536, %v1537
  %v1539 = vrot.slane %v1538, 1
  %v1540 = vadd.f32 %v1538, %v1539
  %s1541 = vtos %v1540
  %v1542 = vstv %s1541
  %v1543 = vmul.f32 %v1542, %v1370
  %v1544 = vsub.f32 %v1335, %v1543
  %v1545 = vmul.f32 %v1544, %v1351
  %v1546 = vmul.f32 %v1545, %v1545
  %v1547 = vsel %vm93, %v1546, 0.0
  %1548 = vadd.xlane.f32.xlu0 %v1547
  %v1549 = vpop.xlane.xlu0 %1548
  %v1550 = vrot.slane %v1549, 4
  %v1551 = vadd.f32 %v1549, %v1550
  %v1552 = vrot.slane %v1551, 2
  %v1553 = vadd.f32 %v1551, %v1552
  %v1554 = vrot.slane %v1553, 1
  %v1555 = vadd.f32 %v1553, %v1554
  %s1556 = vtos %v1555
  %v1557 = vstv %s1556
  %v1558 = vmul.f32 %v1557, %v1370
  %v1559 = vadd.f32 %v1558, 1e-05
  %v1560 = vrsqrt.pop %v1559
  %v1561 = vmul.f32 %v1560, %v1559
  %v1562 = vmul.f32 %v1561, %v1560
  %v1563 = vmul.f32 0.5, %v1562
  %v1564 = vsub.f32 1.5, %v1563
  %v1565 = vmul.f32 %v1560, %v1564
  %vm1566 = vweird.f32 %v1559
  %vm1567 = vweird.f32 %v1560
  %vm1568 = vmor %vm1566, %vm1567
  %v1569 = vsel %vm1568, %v1560, %v1565
  %v1570 = vmul.f32 %v1544, %v1569
  %1571 = vset.pattern.permute.xlu0 3
  %1572 = vperm.xlu0 %1571, %v1400
  %v1573 = vpop.permute.xlu0 %1572
  %v1575 = vmul.f32 %v1570, %v1573
  %1576 = vset.pattern.permute.xlu0 3
  %1577 = vperm.xlu0 %1576, %v1407
  %v1578 = vpop.permute.xlu0 %1577
  %v1580 = vadd.f32 %v1575, %v1578
  %v1581 = vmax.f32 %v1580, 0.0
  %v1582 = vmul.f32 %v1581, %v1415
  %v1583 = vsel %vm93, %v1582, 0.0
  %1584 = vadd.xlane.f32.xlu0 %v1583
  %v1585 = vpop.xlane.xlu0 %1584
  %v1586 = vmul.f32 %v1338, %v1351
  %v1587 = vsel %vm93, %v1586, 0.0
  %1588 = vadd.xlane.f32.xlu0 %v1587
  %v1589 = vpop.xlane.xlu0 %1588
  %v1590 = vrot.slane %v1589, 4
  %v1591 = vadd.f32 %v1589, %v1590
  %v1592 = vrot.slane %v1591, 2
  %v1593 = vadd.f32 %v1591, %v1592
  %v1594 = vrot.slane %v1593, 1
  %v1595 = vadd.f32 %v1593, %v1594
  %s1596 = vtos %v1595
  %v1597 = vstv %s1596
  %v1598 = vmul.f32 %v1597, %v1370
  %v1599 = vsub.f32 %v1338, %v1598
  %v1600 = vmul.f32 %v1599, %v1351
  %v1601 = vmul.f32 %v1600, %v1600
  %v1602 = vsel %vm93, %v1601, 0.0
  %1603 = vadd.xlane.f32.xlu0 %v1602
  %v1604 = vpop.xlane.xlu0 %1603
  %v1605 = vrot.slane %v1604, 4
  %v1606 = vadd.f32 %v1604, %v1605
  %v1607 = vrot.slane %v1606, 2
  %v1608 = vadd.f32 %v1606, %v1607
  %v1609 = vrot.slane %v1608, 1
  %v1610 = vadd.f32 %v1608, %v1609
  %s1611 = vtos %v1610
  %v1612 = vstv %s1611
  %v1613 = vmul.f32 %v1612, %v1370
  %v1614 = vadd.f32 %v1613, 1e-05
  %v1615 = vrsqrt.pop %v1614
  %v1616 = vmul.f32 %v1615, %v1614
  %v1617 = vmul.f32 %v1616, %v1615
  %v1618 = vmul.f32 0.5, %v1617
  %v1619 = vsub.f32 1.5, %v1618
  %v1620 = vmul.f32 %v1615, %v1619
  %vm1621 = vweird.f32 %v1614
  %vm1622 = vweird.f32 %v1615
  %vm1623 = vmor %vm1621, %vm1622
  %v1624 = vsel %vm1623, %v1615, %v1620
  %v1625 = vmul.f32 %v1599, %v1624
  %1626 = vset.pattern.permute.xlu0 4
  %1627 = vperm.xlu0 %1626, %v1400
  %v1628 = vpop.permute.xlu0 %1627
  %v1630 = vmul.f32 %v1625, %v1628
  %1631 = vset.pattern.permute.xlu0 4
  %1632 = vperm.xlu0 %1631, %v1407
  %v1633 = vpop.permute.xlu0 %1632
  %v1635 = vadd.f32 %v1630, %v1633
  %v1636 = vmax.f32 %v1635, 0.0
  %v1637 = vmul.f32 %v1636, %v1415
  %v1638 = vsel %vm93, %v1637, 0.0
  %1639 = vadd.xlane.f32.xlu0 %v1638
  %v1640 = vpop.xlane.xlu0 %1639
  %v1641 = vmul.f32 %v1340, %v1351
  %v1642 = vsel %vm93, %v1641, 0.0
  %1643 = vadd.xlane.f32.xlu0 %v1642
  %v1644 = vpop.xlane.xlu0 %1643
  %v1645 = vrot.slane %v1644, 4
  %v1646 = vadd.f32 %v1644, %v1645
  %v1647 = vrot.slane %v1646, 2
  %v1648 = vadd.f32 %v1646, %v1647
  %v1649 = vrot.slane %v1648, 1
  %v1650 = vadd.f32 %v1648, %v1649
  %s1651 = vtos %v1650
  %v1652 = vstv %s1651
  %v1653 = vmul.f32 %v1652, %v1370
  %v1654 = vsub.f32 %v1340, %v1653
  %v1655 = vmul.f32 %v1654, %v1351
  %v1656 = vmul.f32 %v1655, %v1655
  %v1657 = vsel %vm93, %v1656, 0.0
  %1658 = vadd.xlane.f32.xlu0 %v1657
  %v1659 = vpop.xlane.xlu0 %1658
  %v1660 = vrot.slane %v1659, 4
  %v1661 = vadd.f32 %v1659, %v1660
  %v1662 = vrot.slane %v1661, 2
  %v1663 = vadd.f32 %v1661, %v1662
  %v1664 = vrot.slane %v1663, 1
  %v1665 = vadd.f32 %v1663, %v1664
  %s1666 = vtos %v1665
  %v1667 = vstv %s1666
  %v1668 = vmul.f32 %v1667, %v1370
  %v1669 = vadd.f32 %v1668, 1e-05
  %v1670 = vrsqrt.pop %v1669
  %v1671 = vmul.f32 %v1670, %v1669
  %v1672 = vmul.f32 %v1671, %v1670
  %v1673 = vmul.f32 0.5, %v1672
  %v1674 = vsub.f32 1.5, %v1673
  %v1675 = vmul.f32 %v1670, %v1674
  %vm1676 = vweird.f32 %v1669
  %vm1677 = vweird.f32 %v1670
  %vm1678 = vmor %vm1676, %vm1677
  %v1679 = vsel %vm1678, %v1670, %v1675
  %v1680 = vmul.f32 %v1654, %v1679
  %1681 = vset.pattern.permute.xlu0 5
  %1682 = vperm.xlu0 %1681, %v1400
  %v1683 = vpop.permute.xlu0 %1682
  %v1685 = vmul.f32 %v1680, %v1683
  %1686 = vset.pattern.permute.xlu0 5
  %1687 = vperm.xlu0 %1686, %v1407
  %v1688 = vpop.permute.xlu0 %1687
  %v1690 = vadd.f32 %v1685, %v1688
  %v1691 = vmax.f32 %v1690, 0.0
  %v1692 = vmul.f32 %v1691, %v1415
  %v1693 = vsel %vm93, %v1692, 0.0
  %1694 = vadd.xlane.f32.xlu0 %v1693
  %v1695 = vpop.xlane.xlu0 %1694
  %v1696 = vmul.f32 %v1343, %v1351
  %v1697 = vsel %vm93, %v1696, 0.0
  %1698 = vadd.xlane.f32.xlu0 %v1697
  %v1699 = vpop.xlane.xlu0 %1698
  %v1700 = vrot.slane %v1699, 4
  %v1701 = vadd.f32 %v1699, %v1700
  %v1702 = vrot.slane %v1701, 2
  %v1703 = vadd.f32 %v1701, %v1702
  %v1704 = vrot.slane %v1703, 1
  %v1705 = vadd.f32 %v1703, %v1704
  %s1706 = vtos %v1705
  %v1707 = vstv %s1706
  %v1708 = vmul.f32 %v1707, %v1370
  %v1709 = vsub.f32 %v1343, %v1708
  %v1710 = vmul.f32 %v1709, %v1351
  %v1711 = vmul.f32 %v1710, %v1710
  %v1712 = vsel %vm93, %v1711, 0.0
  %1713 = vadd.xlane.f32.xlu0 %v1712
  %v1714 = vpop.xlane.xlu0 %1713
  %v1715 = vrot.slane %v1714, 4
  %v1716 = vadd.f32 %v1714, %v1715
  %v1717 = vrot.slane %v1716, 2
  %v1718 = vadd.f32 %v1716, %v1717
  %v1719 = vrot.slane %v1718, 1
  %v1720 = vadd.f32 %v1718, %v1719
  %s1721 = vtos %v1720
  %v1722 = vstv %s1721
  %v1723 = vmul.f32 %v1722, %v1370
  %v1724 = vadd.f32 %v1723, 1e-05
  %v1725 = vrsqrt.pop %v1724
  %v1726 = vmul.f32 %v1725, %v1724
  %v1727 = vmul.f32 %v1726, %v1725
  %v1728 = vmul.f32 0.5, %v1727
  %v1729 = vsub.f32 1.5, %v1728
  %v1730 = vmul.f32 %v1725, %v1729
  %vm1731 = vweird.f32 %v1724
  %vm1732 = vweird.f32 %v1725
  %vm1733 = vmor %vm1731, %vm1732
  %v1734 = vsel %vm1733, %v1725, %v1730
  %v1735 = vmul.f32 %v1709, %v1734
  %1736 = vset.pattern.permute.xlu0 6
  %1737 = vperm.xlu0 %1736, %v1400
  %v1738 = vpop.permute.xlu0 %1737
  %v1740 = vmul.f32 %v1735, %v1738
  %1741 = vset.pattern.permute.xlu0 6
  %1742 = vperm.xlu0 %1741, %v1407
  %v1743 = vpop.permute.xlu0 %1742
  %v1745 = vadd.f32 %v1740, %v1743
  %v1746 = vmax.f32 %v1745, 0.0
  %v1747 = vmul.f32 %v1746, %v1415
  %v1748 = vsel %vm93, %v1747, 0.0
  %1749 = vadd.xlane.f32.xlu0 %v1748
  %v1750 = vpop.xlane.xlu0 %1749
  %v1751 = vmul.f32 %v1345, %v1351
  %v1752 = vsel %vm93, %v1751, 0.0
  %1753 = vadd.xlane.f32.xlu0 %v1752
  %v1754 = vpop.xlane.xlu0 %1753
  %v1755 = vrot.slane %v1754, 4
  %v1756 = vadd.f32 %v1754, %v1755
  %v1757 = vrot.slane %v1756, 2
  %v1758 = vadd.f32 %v1756, %v1757
  %v1759 = vrot.slane %v1758, 1
  %v1760 = vadd.f32 %v1758, %v1759
  %s1761 = vtos %v1760
  %v1762 = vstv %s1761
  %v1763 = vmul.f32 %v1762, %v1370
  %v1764 = vsub.f32 %v1345, %v1763
  %v1765 = vmul.f32 %v1764, %v1351
  %v1766 = vmul.f32 %v1765, %v1765
  %v1767 = vsel %vm93, %v1766, 0.0
  %1768 = vadd.xlane.f32.xlu0 %v1767
  %v1769 = vpop.xlane.xlu0 %1768
  %v1770 = vrot.slane %v1769, 4
  %v1771 = vadd.f32 %v1769, %v1770
  %v1772 = vrot.slane %v1771, 2
  %v1773 = vadd.f32 %v1771, %v1772
  %v1774 = vrot.slane %v1773, 1
  %v1775 = vadd.f32 %v1773, %v1774
  %s1776 = vtos %v1775
  %v1777 = vstv %s1776
  %v1778 = vmul.f32 %v1777, %v1370
  %v1779 = vadd.f32 %v1778, 1e-05
  %v1780 = vrsqrt.pop %v1779
  %v1781 = vmul.f32 %v1780, %v1779
  %v1782 = vmul.f32 %v1781, %v1780
  %v1783 = vmul.f32 0.5, %v1782
  %v1784 = vsub.f32 1.5, %v1783
  %v1785 = vmul.f32 %v1780, %v1784
  %vm1786 = vweird.f32 %v1779
  %vm1787 = vweird.f32 %v1780
  %vm1788 = vmor %vm1786, %vm1787
  %v1789 = vsel %vm1788, %v1780, %v1785
  %v1790 = vmul.f32 %v1764, %v1789
  %1791 = vset.pattern.permute.xlu0 7
  %1792 = vperm.xlu0 %1791, %v1400
  %v1793 = vpop.permute.xlu0 %1792
  %v1795 = vmul.f32 %v1790, %v1793
  %1796 = vset.pattern.permute.xlu0 7
  %1797 = vperm.xlu0 %1796, %v1407
  %v1798 = vpop.permute.xlu0 %1797
  %v1800 = vadd.f32 %v1795, %v1798
  %v1801 = vmax.f32 %v1800, 0.0
  %v1802 = vmul.f32 %v1801, %v1415
  %v1803 = vsel %vm93, %v1802, 0.0
  %1804 = vadd.xlane.f32.xlu0 %v1803
  %v1805 = vpop.xlane.xlu0 %1804
  %vm1806 = vcmask 7168
  %v1807 = vsel %vm1806, %v1420, %v1475
  %vm1808 = vcmask 15360
  %v1809 = vsel %vm1808, %v1807, %v1530
  %vm1810 = vcmask 23552
  %v1811 = vsel %vm1810, %v1809, %v1585
  %vm1812 = vcmask 31744
  %v1813 = vsel %vm1812, %v1811, %v1640
  %vm1814 = vcmask 39936
  %v1815 = vsel %vm1814, %v1813, %v1695
  %vm1816 = vcmask 48128
  %v1817 = vsel %vm1816, %v1815, %v1750
  %vm1818 = vcmask 56320
  %v1819 = vsel %vm1818, %v1817, %v1805
  %vm1820 = vcmask 64512
  %v1821 = vsel %vm1820, %v1819, -inf
  %1822 = vmax.xlane.f32.xlu0 %v1821
  %v1823 = vpop.xlane.xlu0 %1822
  %v1824 = vsub.f32 %v1819, %v1823
  %v1825 = vmul.f32 %v1824, 1.442695
  %v1826 = vpow.pop %v1825
  %v1827 = vsel %vm1820, %v1826, 0.0
  %1828 = vadd.xlane.f32.xlu0 %v1827
  %v1829 = vpop.xlane.xlu0 %1828
  %v1830 = vrcp.pop %v1829
  %v1831 = vmul.f32 %v1829, %v1830
  %v1832 = vsub.f32 1.0, %v1831
  %v1833 = vmul.f32 %v1830, %v1832
  %v1834 = vadd.f32 %v1830, %v1833
  %vm1835 = vweird.f32 %v1829
  %vm1836 = vweird.f32 %v1830
  %vm1837 = vmor %vm1835, %vm1836
  %v1838 = vsel %vm1837, %v1830, %v1834
  %v1839 = vand.u32 2147483647, %v1829
  %vm1840 = vcmp.eq.f32.partialorder %v1839, 8.507059e+37
  %v1841 = vand.u32 %v1829, 2147483648
  %v1842 = vor.u32 1.1754944e-38, %v1841
  %v1843 = vsel %vm1840, %v1842, %v1838
  %v1844 = vmul.f32 %v1826, %v1843
  %1846 = vset.pattern.permute.xlu0 0
  %1847 = vperm.xlu0 %1846, %v1844
  %v1848 = vpop.permute.xlu0 %1847
  %v1850 = vmul.f32 %v1848, %v1241
  %v1851 = vadd.f32 %v1850, 0.0
  %1852 = vset.pattern.permute.xlu0 1
  %1853 = vperm.xlu0 %1852, %v1844
  %v1854 = vpop.permute.xlu0 %1853
  %v1856 = vmul.f32 %v1854, %v1244
  %v1857 = vadd.f32 %v1851, %v1856
  %1858 = vset.pattern.permute.xlu0 2
  %1859 = vperm.xlu0 %1858, %v1844
  %v1860 = vpop.permute.xlu0 %1859
  %v1862 = vmul.f32 %v1860, %v1247
  %v1863 = vadd.f32 %v1857, %v1862
  %1864 = vset.pattern.permute.xlu0 3
  %1865 = vperm.xlu0 %1864, %v1844
  %v1866 = vpop.permute.xlu0 %1865
  %v1868 = vmul.f32 %v1866, %v1250
  %v1869 = vadd.f32 %v1863, %v1868
  %1870 = vset.pattern.permute.xlu0 4
  %1871 = vperm.xlu0 %1870, %v1844
  %v1872 = vpop.permute.xlu0 %1871
  %v1874 = vmul.f32 %v1872, %v1253
  %v1875 = vadd.f32 %v1869, %v1874
  %1876 = vset.pattern.permute.xlu0 5
  %1877 = vperm.xlu0 %1876, %v1844
  %v1878 = vpop.permute.xlu0 %1877
  %v1880 = vmul.f32 %v1878, %v1256
  %v1881 = vadd.f32 %v1875, %v1880
  %1882 = vset.pattern.permute.xlu0 6
  %1883 = vperm.xlu0 %1882, %v1844
  %v1884 = vpop.permute.xlu0 %1883
  %v1886 = vmul.f32 %v1884, %v1259
  %v1887 = vadd.f32 %v1881, %v1886
  %1888 = vset.pattern.permute.xlu0 7
  %1889 = vperm.xlu0 %1888, %v1844
  %v1890 = vpop.permute.xlu0 %1889
  %v1892 = vmul.f32 %v1890, %v1262
  %v1893 = vadd.f32 %v1887, %v1892
  %1894 = vst.msk [vmem:[%s11] sm:$0xff] %vm289, %v1893
  // Predicated region
  $region46: #{han_forward.2} parent=0 // pred_check
    _
  $region47: #{han_forward.2} parent=0 // pred_check_branch
    %1896 = sbr.rel (0) target = $region49
  $region48: #{han_forward.2} parent=0 // pred_region
    _
  $region49: #{han_forward.2} parent=0 // pred_fallthru
    _
  // Predicated region
  $region50: #{han_forward.2} parent=0 // pred_check
    _
  $region51: #{han_forward.2} parent=0 // pred_check_branch
    %1898 = sbr.rel (0) target = $region53
  $region52: #{han_forward.2} parent=0 // pred_region
    _
  $region53: #{han_forward.2} parent=0 // pred_fallthru
    _

</llo_original>
